<compile_context>
chip_gen: v6e
topology: v6e:2x2x1
jax: 0.10.0
libtpu: 0.0.40
codegen_flags: <defaults>
</compile_context>

<pallas_src>
import functools

import jax
import jax.numpy as jnp
import numpy as np
from jax.experimental import pallas as pl
from jax.experimental.pallas import tpu as pltpu

# ----------------------------- model config ---------------------------------
VOCAB = 64
EMBED = 16
HIDDEN = 32
NUM_LAYERS = 2
SEQ_LEN = 8
BATCH = 2

LANE = 128
SUBLANE = 8


# ----------------------------- weight slab layout ---------------------------
def _slab_layout():
    """Row offsets (all multiples of 8) of each packed weight in the slab."""
    offs = {}
    r = 0
    offs["table0"] = r; r += VOCAB            # emb @ Wih0^T + b0   (VOCAB, 4H)
    offs["whh_0"] = r; r += HIDDEN            # Whh0^T              (H, 4H)
    for l in range(1, NUM_LAYERS):
        offs[f"wih_{l}"] = r; r += HIDDEN     # Wih_l^T             (H, 4H)
        offs[f"whh_{l}"] = r; r += HIDDEN     # Whh_l^T             (H, 4H)
        offs[f"b_{l}"] = r; r += SUBLANE      # bih_l + bhh_l       (1, 4H)
    offs["wdec"] = r; r += HIDDEN             # Wdec^T (lane-pad)   (H, Vpad)
    offs["bdec"] = r; r += SUBLANE            # bdec   (lane-pad)   (1, Vpad)
    return offs, r


SLAB_OFFS, SLAB_ROWS = _slab_layout()
V_PAD = ((VOCAB + LANE - 1) // LANE) * LANE
SLAB_W = max(4 * HIDDEN, V_PAD)               # 128 at this config


# ------------------------------ fused kernel --------------------------------
def _fused_lstm_lm_kernel(L, T, B, BP, H, offs,
                          ids_ref,                       # scalar prefetch (SMEM)
                          slab_ref, h0_ref, c0_ref,      # inputs (VMEM)
                          logits_ref, hn_ref, cn_ref,    # outputs
                          pre0_s, seq_s, h_s, c_s):      # scratch
    G = 4 * H

    # ---- load weights once into registers (loop-invariant matmul RHS) ------
    whh = [slab_ref[offs["whh_0"]:offs["whh_0"] + H, :][:, :G]]
    wih = [None]
    bias = [None]
    for l in range(1, L):
        wih.append(slab_ref[offs[f"wih_{l}"]:offs[f"wih_{l}"] + H, :][:, :G])
        whh.append(slab_ref[offs[f"whh_{l}"]:offs[f"whh_{l}"] + H, :][:, :G])
        bias.append(slab_ref[offs[f"b_{l}"]:offs[f"b_{l}"] + 1, :][:, :G])

    # ---- in-kernel embedding gather: table row = emb[v] @ Wih0^T + b0 -------
    pre0_s[...] = jnp.zeros_like(pre0_s)          # padded rows stay zero
    for t in range(T):
        for b in range(B):
            tok = ids_ref[t, b]                   # SMEM scalar read
            row = slab_ref[pl.ds(offs["table0"] + tok, 1), :]
            pre0_s[t * BP + b:t * BP + b + 1, :] = row[:, :G]

    # ---- padded (BP-sublane) initial hidden / cell state --------------------
    h_s[...] = jnp.zeros_like(h_s)
    c_s[...] = jnp.zeros_like(c_s)
    for l in range(L):
        h_s[l * BP:l * BP + B, :] = h0_ref[l]
        c_s[l * BP:l * BP + B, :] = c0_ref[l]
    h = [h_s[l * BP:(l + 1) * BP, :] for l in range(L)]
    c = [c_s[l * BP:(l + 1) * BP, :] for l in range(L)]

    # ---- wavefronted recurrence: super-step s runs layer l at time t = s-l --
    # (Static Python loop: trip counts are tiny and the boundary conditions
    #  are resolved at trace time, so the per-layer chains can overlap.)
    for s in range(T + L - 1):
        h_prev = list(h)                          # outputs of super-step s-1
        for l in range(L):
            t = s - l
            if t < 0 or t >= T:
                continue
            if l == 0:
                pre = pre0_s[t * BP:(t + 1) * BP, :]          # gathered table
            else:
                pre = jnp.dot(h_prev[l - 1], wih[l],
                              preferred_element_type=jnp.float32) + bias[l]
            gates = pre + jnp.dot(h[l], whh[l],
                                  preferred_element_type=jnp.float32)
            # Transcendentals over the full (BP, 4H) vreg, then slice gates.
            sig = jax.nn.sigmoid(gates)
            tnh = jnp.tanh(gates)
            i_g = sig[:, 0 * H:1 * H]
            f_g = sig[:, 1 * H:2 * H]
            g_g = tnh[:, 2 * H:3 * H]
            o_g = sig[:, 3 * H:4 * H]
            c[l] = f_g * c[l] + i_g * g_g
            h[l] = o_g * jnp.tanh(c[l])
            if l == L - 1:
                seq_s[t * BP:(t + 1) * BP, :] = h[l]

    # ---- final hidden / cell state (only the real batch rows) ---------------
    for l in range(L):
        hn_ref[l] = h[l][0:B, :]
        cn_ref[l] = c[l][0:B, :]

    # ---- fused decoder over the whole sequence (lane-padded to 128) ---------
    dec_w = slab_ref[offs["wdec"]:offs["wdec"] + H, :][:, :V_PAD]
    dec_b = slab_ref[offs["bdec"]:offs["bdec"] + 1, :][:, :V_PAD]
    logits_ref[...] = (jnp.dot(seq_s[...], dec_w,
                               preferred_element_type=jnp.float32) + dec_b)


# --------------------------- parameter preparation --------------------------
def prepare_params(params):
    """One-time prep: fold layer-0 input proj into the embedding table,
    pre-transpose weights, pre-sum biases, lane-pad the decoder, and pack
    everything into a single (SLAB_ROWS, 128) f32 slab (one prologue DMA)."""
    offs = SLAB_OFFS
    G = 4 * HIDDEN
    slab = np.zeros((SLAB_ROWS, SLAB_W), np.float32)

    emb = np.asarray(params["embedding"])
    b0 = np.asarray(params["bih_0"]) + np.asarray(params["bhh_0"])
    slab[offs["table0"]:offs["table0"] + VOCAB, :G] = (
        emb @ np.asarray(params["wih_0"]).T + b0)
    slab[offs["whh_0"]:offs["whh_0"] + HIDDEN, :G] = np.asarray(params["whh_0"]).T
    for l in range(1, NUM_LAYERS):
        slab[offs[f"wih_{l}"]:offs[f"wih_{l}"] + HIDDEN, :G] = (
            np.asarray(params[f"wih_{l}"]).T)
        slab[offs[f"whh_{l}"]:offs[f"whh_{l}"] + HIDDEN, :G] = (
            np.asarray(params[f"whh_{l}"]).T)
        slab[offs[f"b_{l}"], :G] = (
            np.asarray(params[f"bih_{l}"]) + np.asarray(params[f"bhh_{l}"]))
    slab[offs["wdec"]:offs["wdec"] + HIDDEN, :VOCAB] = np.asarray(params["wdec"]).T
    slab[offs["bdec"], :VOCAB] = np.asarray(params["bdec"])
    return jnp.asarray(slab)


# ------------------------------ full forward --------------------------------
@jax.jit
def lstm_lm_forward(x_idx, h0, c0, slab):
    T, B = x_idx.shape
    H = HIDDEN
    L = NUM_LAYERS
    BP = ((B + SUBLANE - 1) // SUBLANE) * SUBLANE       # pad batch to 8 sublanes
    G = 4 * H

    kernel = functools.partial(_fused_lstm_lm_kernel, L, T, B, BP, H, SLAB_OFFS)

    logits_pad, hn, cn = pl.pallas_call(
        kernel,
        out_shape=(
            jax.ShapeDtypeStruct((T * BP, V_PAD), jnp.float32),
            jax.ShapeDtypeStruct((L, B, H), jnp.float32),
            jax.ShapeDtypeStruct((L, B, H), jnp.float32),
        ),
        grid_spec=pltpu.PrefetchScalarGridSpec(
            num_scalar_prefetch=1,           # x_idx -> SMEM, gather done in-kernel
            grid=(1,),
            in_specs=[
                pl.BlockSpec((SLAB_ROWS, SLAB_W), lambda i, ids: (0, 0)),
                pl.BlockSpec((L, B, H), lambda i, ids: (0, 0, 0)),
                pl.BlockSpec((L, B, H), lambda i, ids: (0, 0, 0)),
            ],
            out_specs=[
                pl.BlockSpec((T * BP, V_PAD), lambda i, ids: (0, 0)),
                pl.BlockSpec((L, B, H), lambda i, ids: (0, 0, 0)),
                pl.BlockSpec((L, B, H), lambda i, ids: (0, 0, 0)),
            ],
            scratch_shapes=[
                pltpu.VMEM((T * BP, G), jnp.float32),   # gathered layer-0 pre-acts
                pltpu.VMEM((T * BP, H), jnp.float32),   # top-layer output sequence
                pltpu.VMEM((L * BP, H), jnp.float32),   # padded h state
                pltpu.VMEM((L * BP, H), jnp.float32),   # padded c state
            ],
        ),
        compiler_params=pltpu.CompilerParams(
            dimension_semantics=("arbitrary",)),
    )(x_idx.astype(jnp.int32), slab, h0, c0)

    # Single fused reshape+slice: drop padded batch rows / vocab lanes.
    logits = logits_pad.reshape(T, BP, V_PAD)[:, :B, :VOCAB]
    return logits, (hn, cn)


# --------------------------- pure-JAX reference -----------------------------
def ref_forward(x_idx, h0, c0, params):
    emb = params["embedding"][x_idx]
    inp = emb
    h_ns, c_ns = [], []
    for l in range(NUM_LAYERS):
        wih, whh = params[f"wih_{l}"], params[f"whh_{l}"]
        b = params[f"bih_{l}"] + params[f"bhh_{l}"]

        def step(carry, x_t):
            h, c = carry
            gates = x_t @ wih.T + h @ whh.T + b
            i, f, g, o = jnp.split(gates, 4, axis=-1)
            c = jax.nn.sigmoid(f) * c + jax.nn.sigmoid(i) * jnp.tanh(g)
            h = jax.nn.sigmoid(o) * jnp.tanh(c)
            return (h, c), h

        (hn, cn), outs = jax.lax.scan(step, (h0[l], c0[l]), inp)
        inp = outs
        h_ns.append(hn)
        c_ns.append(cn)
    flat = inp.reshape(-1, HIDDEN)
    dec = flat @ params["wdec"].T + params["bdec"]
    return (dec.reshape(inp.shape[0], inp.shape[1], -1),
            (jnp.stack(h_ns), jnp.stack(c_ns)))


# --------------------------------- params ------------------------------------
def make_params(key):
    ks = jax.random.split(key, 3 + 4 * NUM_LAYERS)
    params = {}
    params["embedding"] = jax.random.normal(ks[0], (VOCAB, EMBED), jnp.float32)
    scale = 1.0 / np.sqrt(HIDDEN)
    ki = 1
    for l in range(NUM_LAYERS):
        e_in = EMBED if l == 0 else HIDDEN
        params[f"wih_{l}"] = jax.random.uniform(
            ks[ki + 0], (4 * HIDDEN, e_in), jnp.float32, -scale, scale)
        params[f"whh_{l}"] = jax.random.uniform(
            ks[ki + 1], (4 * HIDDEN, HIDDEN), jnp.float32, -scale, scale)
        params[f"bih_{l}"] = jax.random.uniform(
            ks[ki + 2], (4 * HIDDEN,), jnp.float32, -scale, scale)
        params[f"bhh_{l}"] = jax.random.uniform(
            ks[ki + 3], (4 * HIDDEN,), jnp.float32, -scale, scale)
        ki += 4
    dscale = 1.0 / np.sqrt(HIDDEN)
    params["wdec"] = jax.random.uniform(
        ks[ki], (VOCAB, HIDDEN), jnp.float32, -dscale, dscale)
    params["bdec"] = jax.random.uniform(
        ks[ki + 1], (VOCAB,), jnp.float32, -dscale, dscale)
    return params


# ---------------------------------- main --------------------------------------
if __name__ == "__main__":
    key = jax.random.PRNGKey(0)
    pkey, xkey = jax.random.split(key)
    params = make_params(pkey)
    slab = prepare_params(params)     # one-time weight packing (outside jit)

    x_idx = jax.random.randint(xkey, (SEQ_LEN, BATCH), 0, VOCAB, jnp.int32)
    # init_hidden(batch_size): zeros
    h0 = jnp.zeros((NUM_LAYERS, BATCH, HIDDEN), jnp.float32)
    c0 = jnp.zeros((NUM_LAYERS, BATCH, HIDDEN), jnp.float32)

    logits, (h_n, c_n) = lstm_lm_forward(x_idx, h0, c0, slab)
    jax.block_until_ready((logits, h_n, c_n))

    # Cross-check against a pure-JAX reference.
    ref_logits, (ref_h, ref_c) = ref_forward(x_idx, h0, c0, params)
    assert logits.shape == (SEQ_LEN, BATCH, VOCAB)
    assert h_n.shape == (NUM_LAYERS, BATCH, HIDDEN)
    np.testing.assert_allclose(np.asarray(logits), np.asarray(ref_logits),
                               rtol=1e-3, atol=1e-3)
    np.testing.assert_allclose(np.asarray(h_n), np.asarray(ref_h),
                               rtol=1e-3, atol=1e-3)
    np.testing.assert_allclose(np.asarray(c_n), np.asarray(ref_c),
                               rtol=1e-3, atol=1e-3)

    print("KERNEL_OK")
</pallas_src>

<mosaic_0001>
module attributes {stable_mosaic.version = 11 : i64} {
  func.func @_fused_lstm_lm_kernel(%arg0: i32, %arg1: memref<8x2xi32, #tpu.memory_space<smem>>, %arg2: memref<208x128xf32, #tpu.memory_space<vmem>>, %arg3: memref<2x2x32xf32, #tpu.memory_space<vmem>>, %arg4: memref<2x2x32xf32, #tpu.memory_space<vmem>>, %arg5: memref<64x128xf32, #tpu.memory_space<vmem>>, %arg6: memref<2x2x32xf32, #tpu.memory_space<vmem>>, %arg7: memref<2x2x32xf32, #tpu.memory_space<vmem>>, %arg8: memref<64x128xf32, #tpu.memory_space<vmem>>, %arg9: memref<64x32xf32, #tpu.memory_space<vmem>>, %arg10: memref<16x32xf32, #tpu.memory_space<vmem>>, %arg11: memref<16x32xf32, #tpu.memory_space<vmem>>) attributes {dimension_semantics = [#tpu.dimension_semantics<arbitrary>], iteration_bounds = array<i64: 1>, scalar_prefetch = 1 : i64, scratch_operands = 4 : i64, tpu.core_type = #tpu.core_type<tc>, window_params = [{pipeline_mode = #tpu.pipeline_mode<synchronous>, transform_indices = @transform_0, window_bounds = array<i64: 208, 128>}, {pipeline_mode = #tpu.pipeline_mode<synchronous>, transform_indices = @transform_1, window_bounds = array<i64: 2, 2, 32>}, {pipeline_mode = #tpu.pipeline_mode<synchronous>, transform_indices = @transform_2, window_bounds = array<i64: 2, 2, 32>}, {pipeline_mode = #tpu.pipeline_mode<synchronous>, transform_indices = @transform_3, window_bounds = array<i64: 64, 128>}, {pipeline_mode = #tpu.pipeline_mode<synchronous>, transform_indices = @transform_4, window_bounds = array<i64: 2, 2, 32>}, {pipeline_mode = #tpu.pipeline_mode<synchronous>, transform_indices = @transform_5, window_bounds = array<i64: 2, 2, 32>}]} {
    %c64 = arith.constant 64 : index
    %c0 = arith.constant 0 : index
    %0 = vector.load %arg2[%c64, %c0] : memref<208x128xf32, #tpu.memory_space<vmem>>, vector<32x128xf32>
    %c96 = arith.constant 96 : index
    %c0_0 = arith.constant 0 : index
    %1 = vector.load %arg2[%c96, %c0_0] : memref<208x128xf32, #tpu.memory_space<vmem>>, vector<32x128xf32>
    %c128 = arith.constant 128 : index
    %c0_1 = arith.constant 0 : index
    %2 = vector.load %arg2[%c128, %c0_1] : memref<208x128xf32, #tpu.memory_space<vmem>>, vector<32x128xf32>
    %c160 = arith.constant 160 : index
    %c0_2 = arith.constant 0 : index
    %3 = vector.load %arg2[%c160, %c0_2] : memref<208x128xf32, #tpu.memory_space<vmem>>, vector<1x128xf32>
    %cst = arith.constant 0.000000e+00 : f32
    %4 = vector.broadcast %cst : f32 to vector<64x128xf32>
    %c0_3 = arith.constant 0 : index
    %c0_4 = arith.constant 0 : index
    %5 = vector.load %arg8[%c0_3, %c0_4] : memref<64x128xf32, #tpu.memory_space<vmem>>, vector<64x128xf32>
    tpu.vector_store %arg8[%c0_3, %c0_4], %4 {strides = array<i32>} : memref<64x128xf32, #tpu.memory_space<vmem>>, vector<64x128xf32>,
    %c0_5 = arith.constant 0 : index
    %c0_6 = arith.constant 0 : index
    %6 = memref.load %arg1[%c0_5, %c0_6] : memref<8x2xi32, #tpu.memory_space<smem>>
    %c0_i32 = arith.constant 0 : i32
    %7 = arith.addi %c0_i32, %6 : i32
    %8 = arith.index_cast %7 : i32 to index
    %c0_7 = arith.constant 0 : index
    %9 = vector.load %arg2[%8, %c0_7] : memref<208x128xf32, #tpu.memory_space<vmem>>, vector<1x128xf32>
    %c0_8 = arith.constant 0 : index
    %c0_9 = arith.constant 0 : index
    %10 = vector.load %arg8[%c0_8, %c0_9] : memref<64x128xf32, #tpu.memory_space<vmem>>, vector<1x128xf32>
    tpu.vector_store %arg8[%c0_8, %c0_9], %9 {strides = array<i32>} : memref<64x128xf32, #tpu.memory_space<vmem>>, vector<1x128xf32>,
    %c0_10 = arith.constant 0 : index
    %c1 = arith.constant 1 : index
    %11 = memref.load %arg1[%c0_10, %c1] : memref<8x2xi32, #tpu.memory_space<smem>>
    %c0_i32_11 = arith.constant 0 : i32
    %12 = arith.addi %c0_i32_11, %11 : i32
    %13 = arith.index_cast %12 : i32 to index
    %c0_12 = arith.constant 0 : index
    %14 = vector.load %arg2[%13, %c0_12] : memref<208x128xf32, #tpu.memory_space<vmem>>, vector<1x128xf32>
    %c1_13 = arith.constant 1 : index
    %c0_14 = arith.constant 0 : index
    %15 = vector.load %arg8[%c1_13, %c0_14] : memref<64x128xf32, #tpu.memory_space<vmem>>, vector<1x128xf32>
    tpu.vector_store %arg8[%c1_13, %c0_14], %14 {strides = array<i32>} : memref<64x128xf32, #tpu.memory_space<vmem>>, vector<1x128xf32>,
    %c1_15 = arith.constant 1 : index
    %c0_16 = arith.constant 0 : index
    %16 = memref.load %arg1[%c1_15, %c0_16] : memref<8x2xi32, #tpu.memory_space<smem>>
    %c0_i32_17 = arith.constant 0 : i32
    %17 = arith.addi %c0_i32_17, %16 : i32
    %18 = arith.index_cast %17 : i32 to index
    %c0_18 = arith.constant 0 : index
    %19 = vector.load %arg2[%18, %c0_18] : memref<208x128xf32, #tpu.memory_space<vmem>>, vector<1x128xf32>
    %c8 = arith.constant 8 : index
    %c0_19 = arith.constant 0 : index
    %20 = vector.load %arg8[%c8, %c0_19] : memref<64x128xf32, #tpu.memory_space<vmem>>, vector<1x128xf32>
    tpu.vector_store %arg8[%c8, %c0_19], %19 {strides = array<i32>} : memref<64x128xf32, #tpu.memory_space<vmem>>, vector<1x128xf32>,
    %c1_20 = arith.constant 1 : index
    %c1_21 = arith.constant 1 : index
    %21 = memref.load %arg1[%c1_20, %c1_21] : memref<8x2xi32, #tpu.memory_space<smem>>
    %c0_i32_22 = arith.constant 0 : i32
    %22 = arith.addi %c0_i32_22, %21 : i32
    %23 = arith.index_cast %22 : i32 to index
    %c0_23 = arith.constant 0 : index
    %24 = vector.load %arg2[%23, %c0_23] : memref<208x128xf32, #tpu.memory_space<vmem>>, vector<1x128xf32>
    %c9 = arith.constant 9 : index
    %c0_24 = arith.constant 0 : index
    %25 = vector.load %arg8[%c9, %c0_24] : memref<64x128xf32, #tpu.memory_space<vmem>>, vector<1x128xf32>
    tpu.vector_store %arg8[%c9, %c0_24], %24 {strides = array<i32>} : memref<64x128xf32, #tpu.memory_space<vmem>>, vector<1x128xf32>,
    %c2 = arith.constant 2 : index
    %c0_25 = arith.constant 0 : index
    %26 = memref.load %arg1[%c2, %c0_25] : memref<8x2xi32, #tpu.memory_space<smem>>
    %c0_i32_26 = arith.constant 0 : i32
    %27 = arith.addi %c0_i32_26, %26 : i32
    %28 = arith.index_cast %27 : i32 to index
    %c0_27 = arith.constant 0 : index
    %29 = vector.load %arg2[%28, %c0_27] : memref<208x128xf32, #tpu.memory_space<vmem>>, vector<1x128xf32>
    %c16 = arith.constant 16 : index
    %c0_28 = arith.constant 0 : index
    %30 = vector.load %arg8[%c16, %c0_28] : memref<64x128xf32, #tpu.memory_space<vmem>>, vector<1x128xf32>
    tpu.vector_store %arg8[%c16, %c0_28], %29 {strides = array<i32>} : memref<64x128xf32, #tpu.memory_space<vmem>>, vector<1x128xf32>,
    %c2_29 = arith.constant 2 : index
    %c1_30 = arith.constant 1 : index
    %31 = memref.load %arg1[%c2_29, %c1_30] : memref<8x2xi32, #tpu.memory_space<smem>>
    %c0_i32_31 = arith.constant 0 : i32
    %32 = arith.addi %c0_i32_31, %31 : i32
    %33 = arith.index_cast %32 : i32 to index
    %c0_32 = arith.constant 0 : index
    %34 = vector.load %arg2[%33, %c0_32] : memref<208x128xf32, #tpu.memory_space<vmem>>, vector<1x128xf32>
    %c17 = arith.constant 17 : index
    %c0_33 = arith.constant 0 : index
    %35 = vector.load %arg8[%c17, %c0_33] : memref<64x128xf32, #tpu.memory_space<vmem>>, vector<1x128xf32>
    tpu.vector_store %arg8[%c17, %c0_33], %34 {strides = array<i32>} : memref<64x128xf32, #tpu.memory_space<vmem>>, vector<1x128xf32>,
    %c3 = arith.constant 3 : index
    %c0_34 = arith.constant 0 : index
    %36 = memref.load %arg1[%c3, %c0_34] : memref<8x2xi32, #tpu.memory_space<smem>>
    %c0_i32_35 = arith.constant 0 : i32
    %37 = arith.addi %c0_i32_35, %36 : i32
    %38 = arith.index_cast %37 : i32 to index
    %c0_36 = arith.constant 0 : index
    %39 = vector.load %arg2[%38, %c0_36] : memref<208x128xf32, #tpu.memory_space<vmem>>, vector<1x128xf32>
    %c24 = arith.constant 24 : index
    %c0_37 = arith.constant 0 : index
    %40 = vector.load %arg8[%c24, %c0_37] : memref<64x128xf32, #tpu.memory_space<vmem>>, vector<1x128xf32>
    tpu.vector_store %arg8[%c24, %c0_37], %39 {strides = array<i32>} : memref<64x128xf32, #tpu.memory_space<vmem>>, vector<1x128xf32>,
    %c3_38 = arith.constant 3 : index
    %c1_39 = arith.constant 1 : index
    %41 = memref.load %arg1[%c3_38, %c1_39] : memref<8x2xi32, #tpu.memory_space<smem>>
    %c0_i32_40 = arith.constant 0 : i32
    %42 = arith.addi %c0_i32_40, %41 : i32
    %43 = arith.index_cast %42 : i32 to index
    %c0_41 = arith.constant 0 : index
    %44 = vector.load %arg2[%43, %c0_41] : memref<208x128xf32, #tpu.memory_space<vmem>>, vector<1x128xf32>
    %c25 = arith.constant 25 : index
    %c0_42 = arith.constant 0 : index
    %45 = vector.load %arg8[%c25, %c0_42] : memref<64x128xf32, #tpu.memory_space<vmem>>, vector<1x128xf32>
    tpu.vector_store %arg8[%c25, %c0_42], %44 {strides = array<i32>} : memref<64x128xf32, #tpu.memory_space<vmem>>, vector<1x128xf32>,
    %c4 = arith.constant 4 : index
    %c0_43 = arith.constant 0 : index
    %46 = memref.load %arg1[%c4, %c0_43] : memref<8x2xi32, #tpu.memory_space<smem>>
    %c0_i32_44 = arith.constant 0 : i32
    %47 = arith.addi %c0_i32_44, %46 : i32
    %48 = arith.index_cast %47 : i32 to index
    %c0_45 = arith.constant 0 : index
    %49 = vector.load %arg2[%48, %c0_45] : memref<208x128xf32, #tpu.memory_space<vmem>>, vector<1x128xf32>
    %c32 = arith.constant 32 : index
    %c0_46 = arith.constant 0 : index
    %50 = vector.load %arg8[%c32, %c0_46] : memref<64x128xf32, #tpu.memory_space<vmem>>, vector<1x128xf32>
    tpu.vector_store %arg8[%c32, %c0_46], %49 {strides = array<i32>} : memref<64x128xf32, #tpu.memory_space<vmem>>, vector<1x128xf32>,
    %c4_47 = arith.constant 4 : index
    %c1_48 = arith.constant 1 : index
    %51 = memref.load %arg1[%c4_47, %c1_48] : memref<8x2xi32, #tpu.memory_space<smem>>
    %c0_i32_49 = arith.constant 0 : i32
    %52 = arith.addi %c0_i32_49, %51 : i32
    %53 = arith.index_cast %52 : i32 to index
    %c0_50 = arith.constant 0 : index
    %54 = vector.load %arg2[%53, %c0_50] : memref<208x128xf32, #tpu.memory_space<vmem>>, vector<1x128xf32>
    %c33 = arith.constant 33 : index
    %c0_51 = arith.constant 0 : index
    %55 = vector.load %arg8[%c33, %c0_51] : memref<64x128xf32, #tpu.memory_space<vmem>>, vector<1x128xf32>
    tpu.vector_store %arg8[%c33, %c0_51], %54 {strides = array<i32>} : memref<64x128xf32, #tpu.memory_space<vmem>>, vector<1x128xf32>,
    %c5 = arith.constant 5 : index
    %c0_52 = arith.constant 0 : index
    %56 = memref.load %arg1[%c5, %c0_52] : memref<8x2xi32, #tpu.memory_space<smem>>
    %c0_i32_53 = arith.constant 0 : i32
    %57 = arith.addi %c0_i32_53, %56 : i32
    %58 = arith.index_cast %57 : i32 to index
    %c0_54 = arith.constant 0 : index
    %59 = vector.load %arg2[%58, %c0_54] : memref<208x128xf32, #tpu.memory_space<vmem>>, vector<1x128xf32>
    %c40 = arith.constant 40 : index
    %c0_55 = arith.constant 0 : index
    %60 = vector.load %arg8[%c40, %c0_55] : memref<64x128xf32, #tpu.memory_space<vmem>>, vector<1x128xf32>
    tpu.vector_store %arg8[%c40, %c0_55], %59 {strides = array<i32>} : memref<64x128xf32, #tpu.memory_space<vmem>>, vector<1x128xf32>,
    %c5_56 = arith.constant 5 : index
    %c1_57 = arith.constant 1 : index
    %61 = memref.load %arg1[%c5_56, %c1_57] : memref<8x2xi32, #tpu.memory_space<smem>>
    %c0_i32_58 = arith.constant 0 : i32
    %62 = arith.addi %c0_i32_58, %61 : i32
    %63 = arith.index_cast %62 : i32 to index
    %c0_59 = arith.constant 0 : index
    %64 = vector.load %arg2[%63, %c0_59] : memref<208x128xf32, #tpu.memory_space<vmem>>, vector<1x128xf32>
    %c41 = arith.constant 41 : index
    %c0_60 = arith.constant 0 : index
    %65 = vector.load %arg8[%c41, %c0_60] : memref<64x128xf32, #tpu.memory_space<vmem>>, vector<1x128xf32>
    tpu.vector_store %arg8[%c41, %c0_60], %64 {strides = array<i32>} : memref<64x128xf32, #tpu.memory_space<vmem>>, vector<1x128xf32>,
    %c6 = arith.constant 6 : index
    %c0_61 = arith.constant 0 : index
    %66 = memref.load %arg1[%c6, %c0_61] : memref<8x2xi32, #tpu.memory_space<smem>>
    %c0_i32_62 = arith.constant 0 : i32
    %67 = arith.addi %c0_i32_62, %66 : i32
    %68 = arith.index_cast %67 : i32 to index
    %c0_63 = arith.constant 0 : index
    %69 = vector.load %arg2[%68, %c0_63] : memref<208x128xf32, #tpu.memory_space<vmem>>, vector<1x128xf32>
    %c48 = arith.constant 48 : index
    %c0_64 = arith.constant 0 : index
    %70 = vector.load %arg8[%c48, %c0_64] : memref<64x128xf32, #tpu.memory_space<vmem>>, vector<1x128xf32>
    tpu.vector_store %arg8[%c48, %c0_64], %69 {strides = array<i32>} : memref<64x128xf32, #tpu.memory_space<vmem>>, vector<1x128xf32>,
    %c6_65 = arith.constant 6 : index
    %c1_66 = arith.constant 1 : index
    %71 = memref.load %arg1[%c6_65, %c1_66] : memref<8x2xi32, #tpu.memory_space<smem>>
    %c0_i32_67 = arith.constant 0 : i32
    %72 = arith.addi %c0_i32_67, %71 : i32
    %73 = arith.index_cast %72 : i32 to index
    %c0_68 = arith.constant 0 : index
    %74 = vector.load %arg2[%73, %c0_68] : memref<208x128xf32, #tpu.memory_space<vmem>>, vector<1x128xf32>
    %c49 = arith.constant 49 : index
    %c0_69 = arith.constant 0 : index
    %75 = vector.load %arg8[%c49, %c0_69] : memref<64x128xf32, #tpu.memory_space<vmem>>, vector<1x128xf32>
    tpu.vector_store %arg8[%c49, %c0_69], %74 {strides = array<i32>} : memref<64x128xf32, #tpu.memory_space<vmem>>, vector<1x128xf32>,
    %c7 = arith.constant 7 : index
    %c0_70 = arith.constant 0 : index
    %76 = memref.load %arg1[%c7, %c0_70] : memref<8x2xi32, #tpu.memory_space<smem>>
    %c0_i32_71 = arith.constant 0 : i32
    %77 = arith.addi %c0_i32_71, %76 : i32
    %78 = arith.index_cast %77 : i32 to index
    %c0_72 = arith.constant 0 : index
    %79 = vector.load %arg2[%78, %c0_72] : memref<208x128xf32, #tpu.memory_space<vmem>>, vector<1x128xf32>
    %c56 = arith.constant 56 : index
    %c0_73 = arith.constant 0 : index
    %80 = vector.load %arg8[%c56, %c0_73] : memref<64x128xf32, #tpu.memory_space<vmem>>, vector<1x128xf32>
    tpu.vector_store %arg8[%c56, %c0_73], %79 {strides = array<i32>} : memref<64x128xf32, #tpu.memory_space<vmem>>, vector<1x128xf32>,
    %c7_74 = arith.constant 7 : index
    %c1_75 = arith.constant 1 : index
    %81 = memref.load %arg1[%c7_74, %c1_75] : memref<8x2xi32, #tpu.memory_space<smem>>
    %c0_i32_76 = arith.constant 0 : i32
    %82 = arith.addi %c0_i32_76, %81 : i32
    %83 = arith.index_cast %82 : i32 to index
    %c0_77 = arith.constant 0 : index
    %84 = vector.load %arg2[%83, %c0_77] : memref<208x128xf32, #tpu.memory_space<vmem>>, vector<1x128xf32>
    %c57 = arith.constant 57 : index
    %c0_78 = arith.constant 0 : index
    %85 = vector.load %arg8[%c57, %c0_78] : memref<64x128xf32, #tpu.memory_space<vmem>>, vector<1x128xf32>
    tpu.vector_store %arg8[%c57, %c0_78], %84 {strides = array<i32>} : memref<64x128xf32, #tpu.memory_space<vmem>>, vector<1x128xf32>,
    %cst_79 = arith.constant 0.000000e+00 : f32
    %86 = vector.broadcast %cst_79 : f32 to vector<16x32xf32>
    %c0_80 = arith.constant 0 : index
    %c0_81 = arith.constant 0 : index
    %87 = vector.load %arg10[%c0_80, %c0_81] : memref<16x32xf32, #tpu.memory_space<vmem>>, vector<16x32xf32>
    tpu.vector_store %arg10[%c0_80, %c0_81], %86 {strides = array<i32>} : memref<16x32xf32, #tpu.memory_space<vmem>>, vector<16x32xf32>,
    %cst_82 = arith.constant 0.000000e+00 : f32
    %88 = vector.broadcast %cst_82 : f32 to vector<16x32xf32>
    %c0_83 = arith.constant 0 : index
    %c0_84 = arith.constant 0 : index
    %89 = vector.load %arg11[%c0_83, %c0_84] : memref<16x32xf32, #tpu.memory_space<vmem>>, vector<16x32xf32>
    tpu.vector_store %arg11[%c0_83, %c0_84], %88 {strides = array<i32>} : memref<16x32xf32, #tpu.memory_space<vmem>>, vector<16x32xf32>,
    %c0_85 = arith.constant 0 : index
    %c0_86 = arith.constant 0 : index
    %c0_87 = arith.constant 0 : index
    %90 = vector.load %arg3[%c0_85, %c0_86, %c0_87] : memref<2x2x32xf32, #tpu.memory_space<vmem>>, vector<1x2x32xf32>
    %91 = vector.shape_cast %90 : vector<1x2x32xf32> to vector<2x32xf32>
    %c0_88 = arith.constant 0 : index
    %c0_89 = arith.constant 0 : index
    %92 = vector.load %arg10[%c0_88, %c0_89] : memref<16x32xf32, #tpu.memory_space<vmem>>, vector<2x32xf32>
    tpu.vector_store %arg10[%c0_88, %c0_89], %91 {strides = array<i32>} : memref<16x32xf32, #tpu.memory_space<vmem>>, vector<2x32xf32>,
    %c0_90 = arith.constant 0 : index
    %c0_91 = arith.constant 0 : index
    %c0_92 = arith.constant 0 : index
    %93 = vector.load %arg4[%c0_90, %c0_91, %c0_92] : memref<2x2x32xf32, #tpu.memory_space<vmem>>, vector<1x2x32xf32>
    %94 = vector.shape_cast %93 : vector<1x2x32xf32> to vector<2x32xf32>
    %c0_93 = arith.constant 0 : index
    %c0_94 = arith.constant 0 : index
    %95 = vector.load %arg11[%c0_93, %c0_94] : memref<16x32xf32, #tpu.memory_space<vmem>>, vector<2x32xf32>
    tpu.vector_store %arg11[%c0_93, %c0_94], %94 {strides = array<i32>} : memref<16x32xf32, #tpu.memory_space<vmem>>, vector<2x32xf32>,
    %c1_95 = arith.constant 1 : index
    %c0_96 = arith.constant 0 : index
    %c0_97 = arith.constant 0 : index
    %96 = vector.load %arg3[%c1_95, %c0_96, %c0_97] : memref<2x2x32xf32, #tpu.memory_space<vmem>>, vector<1x2x32xf32>
    %97 = vector.shape_cast %96 : vector<1x2x32xf32> to vector<2x32xf32>
    %c8_98 = arith.constant 8 : index
    %c0_99 = arith.constant 0 : index
    %98 = vector.load %arg10[%c8_98, %c0_99] : memref<16x32xf32, #tpu.memory_space<vmem>>, vector<2x32xf32>
    tpu.vector_store %arg10[%c8_98, %c0_99], %97 {strides = array<i32>} : memref<16x32xf32, #tpu.memory_space<vmem>>, vector<2x32xf32>,
    %c1_100 = arith.constant 1 : index
    %c0_101 = arith.constant 0 : index
    %c0_102 = arith.constant 0 : index
    %99 = vector.load %arg4[%c1_100, %c0_101, %c0_102] : memref<2x2x32xf32, #tpu.memory_space<vmem>>, vector<1x2x32xf32>
    %100 = vector.shape_cast %99 : vector<1x2x32xf32> to vector<2x32xf32>
    %c8_103 = arith.constant 8 : index
    %c0_104 = arith.constant 0 : index
    %101 = vector.load %arg11[%c8_103, %c0_104] : memref<16x32xf32, #tpu.memory_space<vmem>>, vector<2x32xf32>
    tpu.vector_store %arg11[%c8_103, %c0_104], %100 {strides = array<i32>} : memref<16x32xf32, #tpu.memory_space<vmem>>, vector<2x32xf32>,
    %c0_105 = arith.constant 0 : index
    %c0_106 = arith.constant 0 : index
    %102 = vector.load %arg10[%c0_105, %c0_106] : memref<16x32xf32, #tpu.memory_space<vmem>>, vector<8x32xf32>
    %c8_107 = arith.constant 8 : index
    %c0_108 = arith.constant 0 : index
    %103 = vector.load %arg10[%c8_107, %c0_108] : memref<16x32xf32, #tpu.memory_space<vmem>>, vector<8x32xf32>
    %c0_109 = arith.constant 0 : index
    %c0_110 = arith.constant 0 : index
    %104 = vector.load %arg11[%c0_109, %c0_110] : memref<16x32xf32, #tpu.memory_space<vmem>>, vector<8x32xf32>
    %c8_111 = arith.constant 8 : index
    %c0_112 = arith.constant 0 : index
    %105 = vector.load %arg11[%c8_111, %c0_112] : memref<16x32xf32, #tpu.memory_space<vmem>>, vector<8x32xf32>
    %c0_113 = arith.constant 0 : index
    %c0_114 = arith.constant 0 : index
    %106 = vector.load %arg8[%c0_113, %c0_114] : memref<64x128xf32, #tpu.memory_space<vmem>>, vector<8x128xf32>
    %cst_115 = arith.constant dense<0.000000e+00> : vector<8x128xf32>
    %107 = tpu.matmul %102, %0, %cst_115 {dimension_numbers = #tpu.dot_dimension_numbers<[1], [0], [0], [1], [0, 0, 1, 1], [], []>} : vector<8x32xf32>, vector<32x128xf32>, vector<8x128xf32> -> vector<8x128xf32>
    %108 = arith.addf %106, %107 : vector<8x128xf32>
    %109 = arith.negf %108 : vector<8x128xf32>
    %110 = math.exp %109 : vector<8x128xf32>
    %cst_116 = arith.constant 1.000000e+00 : f32
    %111 = vector.broadcast %cst_116 : f32 to vector<8x128xf32>
    %112 = arith.addf %111, %110 : vector<8x128xf32>
    %113 = arith.divf %111, %112 : vector<8x128xf32>
    %114 = math.tanh %108 : vector<8x128xf32>
    %115 = vector.extract_strided_slice %113 {offsets = [0, 0], sizes = [8, 32], strides = [1, 1]} : vector<8x128xf32> to vector<8x32xf32>
    %116 = vector.extract_strided_slice %113 {offsets = [0, 32], sizes = [8, 32], strides = [1, 1]} : vector<8x128xf32> to vector<8x32xf32>
    %117 = vector.extract_strided_slice %114 {offsets = [0, 64], sizes = [8, 32], strides = [1, 1]} : vector<8x128xf32> to vector<8x32xf32>
    %118 = vector.extract_strided_slice %113 {offsets = [0, 96], sizes = [8, 32], strides = [1, 1]} : vector<8x128xf32> to vector<8x32xf32>
    %119 = arith.mulf %116, %104 : vector<8x32xf32>
    %120 = arith.mulf %115, %117 : vector<8x32xf32>
    %121 = arith.addf %119, %120 : vector<8x32xf32>
    %122 = math.tanh %121 : vector<8x32xf32>
    %123 = arith.mulf %118, %122 : vector<8x32xf32>
    %c8_117 = arith.constant 8 : index
    %c0_118 = arith.constant 0 : index
    %124 = vector.load %arg8[%c8_117, %c0_118] : memref<64x128xf32, #tpu.memory_space<vmem>>, vector<8x128xf32>
    %cst_119 = arith.constant dense<0.000000e+00> : vector<8x128xf32>
    %125 = tpu.matmul %123, %0, %cst_119 {dimension_numbers = #tpu.dot_dimension_numbers<[1], [0], [0], [1], [0, 0, 1, 1], [], []>} : vector<8x32xf32>, vector<32x128xf32>, vector<8x128xf32> -> vector<8x128xf32>
    %126 = arith.addf %124, %125 : vector<8x128xf32>
    %127 = arith.negf %126 : vector<8x128xf32>
    %128 = math.exp %127 : vector<8x128xf32>
    %cst_120 = arith.constant 1.000000e+00 : f32
    %129 = vector.broadcast %cst_120 : f32 to vector<8x128xf32>
    %130 = arith.addf %129, %128 : vector<8x128xf32>
    %131 = arith.divf %129, %130 : vector<8x128xf32>
    %132 = math.tanh %126 : vector<8x128xf32>
    %133 = vector.extract_strided_slice %131 {offsets = [0, 0], sizes = [8, 32], strides = [1, 1]} : vector<8x128xf32> to vector<8x32xf32>
    %134 = vector.extract_strided_slice %131 {offsets = [0, 32], sizes = [8, 32], strides = [1, 1]} : vector<8x128xf32> to vector<8x32xf32>
    %135 = vector.extract_strided_slice %132 {offsets = [0, 64], sizes = [8, 32], strides = [1, 1]} : vector<8x128xf32> to vector<8x32xf32>
    %136 = vector.extract_strided_slice %131 {offsets = [0, 96], sizes = [8, 32], strides = [1, 1]} : vector<8x128xf32> to vector<8x32xf32>
    %137 = arith.mulf %134, %121 : vector<8x32xf32>
    %138 = arith.mulf %133, %135 : vector<8x32xf32>
    %139 = arith.addf %137, %138 : vector<8x32xf32>
    %140 = math.tanh %139 : vector<8x32xf32>
    %141 = arith.mulf %136, %140 : vector<8x32xf32>
    %cst_121 = arith.constant dense<0.000000e+00> : vector<8x128xf32>
    %142 = tpu.matmul %123, %1, %cst_121 {dimension_numbers = #tpu.dot_dimension_numbers<[1], [0], [0], [1], [0, 0, 1, 1], [], []>} : vector<8x32xf32>, vector<32x128xf32>, vector<8x128xf32> -> vector<8x128xf32>
    %143 = vector.broadcast %3 : vector<1x128xf32> to vector<8x128xf32>
    %144 = arith.addf %142, %143 : vector<8x128xf32>
    %cst_122 = arith.constant dense<0.000000e+00> : vector<8x128xf32>
    %145 = tpu.matmul %103, %2, %cst_122 {dimension_numbers = #tpu.dot_dimension_numbers<[1], [0], [0], [1], [0, 0, 1, 1], [], []>} : vector<8x32xf32>, vector<32x128xf32>, vector<8x128xf32> -> vector<8x128xf32>
    %146 = arith.addf %144, %145 : vector<8x128xf32>
    %147 = arith.negf %146 : vector<8x128xf32>
    %148 = math.exp %147 : vector<8x128xf32>
    %cst_123 = arith.constant 1.000000e+00 : f32
    %149 = vector.broadcast %cst_123 : f32 to vector<8x128xf32>
    %150 = arith.addf %149, %148 : vector<8x128xf32>
    %151 = arith.divf %149, %150 : vector<8x128xf32>
    %152 = math.tanh %146 : vector<8x128xf32>
    %153 = vector.extract_strided_slice %151 {offsets = [0, 0], sizes = [8, 32], strides = [1, 1]} : vector<8x128xf32> to vector<8x32xf32>
    %154 = vector.extract_strided_slice %151 {offsets = [0, 32], sizes = [8, 32], strides = [1, 1]} : vector<8x128xf32> to vector<8x32xf32>
    %155 = vector.extract_strided_slice %152 {offsets = [0, 64], sizes = [8, 32], strides = [1, 1]} : vector<8x128xf32> to vector<8x32xf32>
    %156 = vector.extract_strided_slice %151 {offsets = [0, 96], sizes = [8, 32], strides = [1, 1]} : vector<8x128xf32> to vector<8x32xf32>
    %157 = arith.mulf %154, %105 : vector<8x32xf32>
    %158 = arith.mulf %153, %155 : vector<8x32xf32>
    %159 = arith.addf %157, %158 : vector<8x32xf32>
    %160 = math.tanh %159 : vector<8x32xf32>
    %161 = arith.mulf %156, %160 : vector<8x32xf32>
    %c0_124 = arith.constant 0 : index
    %c0_125 = arith.constant 0 : index
    %162 = vector.load %arg9[%c0_124, %c0_125] : memref<64x32xf32, #tpu.memory_space<vmem>>, vector<8x32xf32>
    tpu.vector_store %arg9[%c0_124, %c0_125], %161 {strides = array<i32>} : memref<64x32xf32, #tpu.memory_space<vmem>>, vector<8x32xf32>,
    %c16_126 = arith.constant 16 : index
    %c0_127 = arith.constant 0 : index
    %163 = vector.load %arg8[%c16_126, %c0_127] : memref<64x128xf32, #tpu.memory_space<vmem>>, vector<8x128xf32>
    %cst_128 = arith.constant dense<0.000000e+00> : vector<8x128xf32>
    %164 = tpu.matmul %141, %0, %cst_128 {dimension_numbers = #tpu.dot_dimension_numbers<[1], [0], [0], [1], [0, 0, 1, 1], [], []>} : vector<8x32xf32>, vector<32x128xf32>, vector<8x128xf32> -> vector<8x128xf32>
    %165 = arith.addf %163, %164 : vector<8x128xf32>
    %166 = arith.negf %165 : vector<8x128xf32>
    %167 = math.exp %166 : vector<8x128xf32>
    %cst_129 = arith.constant 1.000000e+00 : f32
    %168 = vector.broadcast %cst_129 : f32 to vector<8x128xf32>
    %169 = arith.addf %168, %167 : vector<8x128xf32>
    %170 = arith.divf %168, %169 : vector<8x128xf32>
    %171 = math.tanh %165 : vector<8x128xf32>
    %172 = vector.extract_strided_slice %170 {offsets = [0, 0], sizes = [8, 32], strides = [1, 1]} : vector<8x128xf32> to vector<8x32xf32>
    %173 = vector.extract_strided_slice %170 {offsets = [0, 32], sizes = [8, 32], strides = [1, 1]} : vector<8x128xf32> to vector<8x32xf32>
    %174 = vector.extract_strided_slice %171 {offsets = [0, 64], sizes = [8, 32], strides = [1, 1]} : vector<8x128xf32> to vector<8x32xf32>
    %175 = vector.extract_strided_slice %170 {offsets = [0, 96], sizes = [8, 32], strides = [1, 1]} : vector<8x128xf32> to vector<8x32xf32>
    %176 = arith.mulf %173, %139 : vector<8x32xf32>
    %177 = arith.mulf %172, %174 : vector<8x32xf32>
    %178 = arith.addf %176, %177 : vector<8x32xf32>
    %179 = math.tanh %178 : vector<8x32xf32>
    %180 = arith.mulf %175, %179 : vector<8x32xf32>
    %cst_130 = arith.constant dense<0.000000e+00> : vector<8x128xf32>
    %181 = tpu.matmul %141, %1, %cst_130 {dimension_numbers = #tpu.dot_dimension_numbers<[1], [0], [0], [1], [0, 0, 1, 1], [], []>} : vector<8x32xf32>, vector<32x128xf32>, vector<8x128xf32> -> vector<8x128xf32>
    %182 = vector.broadcast %3 : vector<1x128xf32> to vector<8x128xf32>
    %183 = arith.addf %181, %182 : vector<8x128xf32>
    %cst_131 = arith.constant dense<0.000000e+00> : vector<8x128xf32>
    %184 = tpu.matmul %161, %2, %cst_131 {dimension_numbers = #tpu.dot_dimension_numbers<[1], [0], [0], [1], [0, 0, 1, 1], [], []>} : vector<8x32xf32>, vector<32x128xf32>, vector<8x128xf32> -> vector<8x128xf32>
    %185 = arith.addf %183, %184 : vector<8x128xf32>
    %186 = arith.negf %185 : vector<8x128xf32>
    %187 = math.exp %186 : vector<8x128xf32>
    %cst_132 = arith.constant 1.000000e+00 : f32
    %188 = vector.broadcast %cst_132 : f32 to vector<8x128xf32>
    %189 = arith.addf %188, %187 : vector<8x128xf32>
    %190 = arith.divf %188, %189 : vector<8x128xf32>
    %191 = math.tanh %185 : vector<8x128xf32>
    %192 = vector.extract_strided_slice %190 {offsets = [0, 0], sizes = [8, 32], strides = [1, 1]} : vector<8x128xf32> to vector<8x32xf32>
    %193 = vector.extract_strided_slice %190 {offsets = [0, 32], sizes = [8, 32], strides = [1, 1]} : vector<8x128xf32> to vector<8x32xf32>
    %194 = vector.extract_strided_slice %191 {offsets = [0, 64], sizes = [8, 32], strides = [1, 1]} : vector<8x128xf32> to vector<8x32xf32>
    %195 = vector.extract_strided_slice %190 {offsets = [0, 96], sizes = [8, 32], strides = [1, 1]} : vector<8x128xf32> to vector<8x32xf32>
    %196 = arith.mulf %193, %159 : vector<8x32xf32>
    %197 = arith.mulf %192, %194 : vector<8x32xf32>
    %198 = arith.addf %196, %197 : vector<8x32xf32>
    %199 = math.tanh %198 : vector<8x32xf32>
    %200 = arith.mulf %195, %199 : vector<8x32xf32>
    %c8_133 = arith.constant 8 : index
    %c0_134 = arith.constant 0 : index
    %201 = vector.load %arg9[%c8_133, %c0_134] : memref<64x32xf32, #tpu.memory_space<vmem>>, vector<8x32xf32>
    tpu.vector_store %arg9[%c8_133, %c0_134], %200 {strides = array<i32>} : memref<64x32xf32, #tpu.memory_space<vmem>>, vector<8x32xf32>,
    %c24_135 = arith.constant 24 : index
    %c0_136 = arith.constant 0 : index
    %202 = vector.load %arg8[%c24_135, %c0_136] : memref<64x128xf32, #tpu.memory_space<vmem>>, vector<8x128xf32>
    %cst_137 = arith.constant dense<0.000000e+00> : vector<8x128xf32>
    %203 = tpu.matmul %180, %0, %cst_137 {dimension_numbers = #tpu.dot_dimension_numbers<[1], [0], [0], [1], [0, 0, 1, 1], [], []>} : vector<8x32xf32>, vector<32x128xf32>, vector<8x128xf32> -> vector<8x128xf32>
    %204 = arith.addf %202, %203 : vector<8x128xf32>
    %205 = arith.negf %204 : vector<8x128xf32>
    %206 = math.exp %205 : vector<8x128xf32>
    %cst_138 = arith.constant 1.000000e+00 : f32
    %207 = vector.broadcast %cst_138 : f32 to vector<8x128xf32>
    %208 = arith.addf %207, %206 : vector<8x128xf32>
    %209 = arith.divf %207, %208 : vector<8x128xf32>
    %210 = math.tanh %204 : vector<8x128xf32>
    %211 = vector.extract_strided_slice %209 {offsets = [0, 0], sizes = [8, 32], strides = [1, 1]} : vector<8x128xf32> to vector<8x32xf32>
    %212 = vector.extract_strided_slice %209 {offsets = [0, 32], sizes = [8, 32], strides = [1, 1]} : vector<8x128xf32> to vector<8x32xf32>
    %213 = vector.extract_strided_slice %210 {offsets = [0, 64], sizes = [8, 32], strides = [1, 1]} : vector<8x128xf32> to vector<8x32xf32>
    %214 = vector.extract_strided_slice %209 {offsets = [0, 96], sizes = [8, 32], strides = [1, 1]} : vector<8x128xf32> to vector<8x32xf32>
    %215 = arith.mulf %212, %178 : vector<8x32xf32>
    %216 = arith.mulf %211, %213 : vector<8x32xf32>
    %217 = arith.addf %215, %216 : vector<8x32xf32>
    %218 = math.tanh %217 : vector<8x32xf32>
    %219 = arith.mulf %214, %218 : vector<8x32xf32>
    %cst_139 = arith.constant dense<0.000000e+00> : vector<8x128xf32>
    %220 = tpu.matmul %180, %1, %cst_139 {dimension_numbers = #tpu.dot_dimension_numbers<[1], [0], [0], [1], [0, 0, 1, 1], [], []>} : vector<8x32xf32>, vector<32x128xf32>, vector<8x128xf32> -> vector<8x128xf32>
    %221 = vector.broadcast %3 : vector<1x128xf32> to vector<8x128xf32>
    %222 = arith.addf %220, %221 : vector<8x128xf32>
    %cst_140 = arith.constant dense<0.000000e+00> : vector<8x128xf32>
    %223 = tpu.matmul %200, %2, %cst_140 {dimension_numbers = #tpu.dot_dimension_numbers<[1], [0], [0], [1], [0, 0, 1, 1], [], []>} : vector<8x32xf32>, vector<32x128xf32>, vector<8x128xf32> -> vector<8x128xf32>
    %224 = arith.addf %222, %223 : vector<8x128xf32>
    %225 = arith.negf %224 : vector<8x128xf32>
    %226 = math.exp %225 : vector<8x128xf32>
    %cst_141 = arith.constant 1.000000e+00 : f32
    %227 = vector.broadcast %cst_141 : f32 to vector<8x128xf32>
    %228 = arith.addf %227, %226 : vector<8x128xf32>
    %229 = arith.divf %227, %228 : vector<8x128xf32>
    %230 = math.tanh %224 : vector<8x128xf32>
    %231 = vector.extract_strided_slice %229 {offsets = [0, 0], sizes = [8, 32], strides = [1, 1]} : vector<8x128xf32> to vector<8x32xf32>
    %232 = vector.extract_strided_slice %229 {offsets = [0, 32], sizes = [8, 32], strides = [1, 1]} : vector<8x128xf32> to vector<8x32xf32>
    %233 = vector.extract_strided_slice %230 {offsets = [0, 64], sizes = [8, 32], strides = [1, 1]} : vector<8x128xf32> to vector<8x32xf32>
    %234 = vector.extract_strided_slice %229 {offsets = [0, 96], sizes = [8, 32], strides = [1, 1]} : vector<8x128xf32> to vector<8x32xf32>
    %235 = arith.mulf %232, %198 : vector<8x32xf32>
    %236 = arith.mulf %231, %233 : vector<8x32xf32>
    %237 = arith.addf %235, %236 : vector<8x32xf32>
    %238 = math.tanh %237 : vector<8x32xf32>
    %239 = arith.mulf %234, %238 : vector<8x32xf32>
    %c16_142 = arith.constant 16 : index
    %c0_143 = arith.constant 0 : index
    %240 = vector.load %arg9[%c16_142, %c0_143] : memref<64x32xf32, #tpu.memory_space<vmem>>, vector<8x32xf32>
    tpu.vector_store %arg9[%c16_142, %c0_143], %239 {strides = array<i32>} : memref<64x32xf32, #tpu.memory_space<vmem>>, vector<8x32xf32>,
    %c32_144 = arith.constant 32 : index
    %c0_145 = arith.constant 0 : index
    %241 = vector.load %arg8[%c32_144, %c0_145] : memref<64x128xf32, #tpu.memory_space<vmem>>, vector<8x128xf32>
    %cst_146 = arith.constant dense<0.000000e+00> : vector<8x128xf32>
    %242 = tpu.matmul %219, %0, %cst_146 {dimension_numbers = #tpu.dot_dimension_numbers<[1], [0], [0], [1], [0, 0, 1, 1], [], []>} : vector<8x32xf32>, vector<32x128xf32>, vector<8x128xf32> -> vector<8x128xf32>
    %243 = arith.addf %241, %242 : vector<8x128xf32>
    %244 = arith.negf %243 : vector<8x128xf32>
    %245 = math.exp %244 : vector<8x128xf32>
    %cst_147 = arith.constant 1.000000e+00 : f32
    %246 = vector.broadcast %cst_147 : f32 to vector<8x128xf32>
    %247 = arith.addf %246, %245 : vector<8x128xf32>
    %248 = arith.divf %246, %247 : vector<8x128xf32>
    %249 = math.tanh %243 : vector<8x128xf32>
    %250 = vector.extract_strided_slice %248 {offsets = [0, 0], sizes = [8, 32], strides = [1, 1]} : vector<8x128xf32> to vector<8x32xf32>
    %251 = vector.extract_strided_slice %248 {offsets = [0, 32], sizes = [8, 32], strides = [1, 1]} : vector<8x128xf32> to vector<8x32xf32>
    %252 = vector.extract_strided_slice %249 {offsets = [0, 64], sizes = [8, 32], strides = [1, 1]} : vector<8x128xf32> to vector<8x32xf32>
    %253 = vector.extract_strided_slice %248 {offsets = [0, 96], sizes = [8, 32], strides = [1, 1]} : vector<8x128xf32> to vector<8x32xf32>
    %254 = arith.mulf %251, %217 : vector<8x32xf32>
    %255 = arith.mulf %250, %252 : vector<8x32xf32>
    %256 = arith.addf %254, %255 : vector<8x32xf32>
    %257 = math.tanh %256 : vector<8x32xf32>
    %258 = arith.mulf %253, %257 : vector<8x32xf32>
    %cst_148 = arith.constant dense<0.000000e+00> : vector<8x128xf32>
    %259 = tpu.matmul %219, %1, %cst_148 {dimension_numbers = #tpu.dot_dimension_numbers<[1], [0], [0], [1], [0, 0, 1, 1], [], []>} : vector<8x32xf32>, vector<32x128xf32>, vector<8x128xf32> -> vector<8x128xf32>
    %260 = vector.broadcast %3 : vector<1x128xf32> to vector<8x128xf32>
    %261 = arith.addf %259, %260 : vector<8x128xf32>
    %cst_149 = arith.constant dense<0.000000e+00> : vector<8x128xf32>
    %262 = tpu.matmul %239, %2, %cst_149 {dimension_numbers = #tpu.dot_dimension_numbers<[1], [0], [0], [1], [0, 0, 1, 1], [], []>} : vector<8x32xf32>, vector<32x128xf32>, vector<8x128xf32> -> vector<8x128xf32>
    %263 = arith.addf %261, %262 : vector<8x128xf32>
    %264 = arith.negf %263 : vector<8x128xf32>
    %265 = math.exp %264 : vector<8x128xf32>
    %cst_150 = arith.constant 1.000000e+00 : f32
    %266 = vector.broadcast %cst_150 : f32 to vector<8x128xf32>
    %267 = arith.addf %266, %265 : vector<8x128xf32>
    %268 = arith.divf %266, %267 : vector<8x128xf32>
    %269 = math.tanh %263 : vector<8x128xf32>
    %270 = vector.extract_strided_slice %268 {offsets = [0, 0], sizes = [8, 32], strides = [1, 1]} : vector<8x128xf32> to vector<8x32xf32>
    %271 = vector.extract_strided_slice %268 {offsets = [0, 32], sizes = [8, 32], strides = [1, 1]} : vector<8x128xf32> to vector<8x32xf32>
    %272 = vector.extract_strided_slice %269 {offsets = [0, 64], sizes = [8, 32], strides = [1, 1]} : vector<8x128xf32> to vector<8x32xf32>
    %273 = vector.extract_strided_slice %268 {offsets = [0, 96], sizes = [8, 32], strides = [1, 1]} : vector<8x128xf32> to vector<8x32xf32>
    %274 = arith.mulf %271, %237 : vector<8x32xf32>
    %275 = arith.mulf %270, %272 : vector<8x32xf32>
    %276 = arith.addf %274, %275 : vector<8x32xf32>
    %277 = math.tanh %276 : vector<8x32xf32>
    %278 = arith.mulf %273, %277 : vector<8x32xf32>
    %c24_151 = arith.constant 24 : index
    %c0_152 = arith.constant 0 : index
    %279 = vector.load %arg9[%c24_151, %c0_152] : memref<64x32xf32, #tpu.memory_space<vmem>>, vector<8x32xf32>
    tpu.vector_store %arg9[%c24_151, %c0_152], %278 {strides = array<i32>} : memref<64x32xf32, #tpu.memory_space<vmem>>, vector<8x32xf32>,
    %c40_153 = arith.constant 40 : index
    %c0_154 = arith.constant 0 : index
    %280 = vector.load %arg8[%c40_153, %c0_154] : memref<64x128xf32, #tpu.memory_space<vmem>>, vector<8x128xf32>
    %cst_155 = arith.constant dense<0.000000e+00> : vector<8x128xf32>
    %281 = tpu.matmul %258, %0, %cst_155 {dimension_numbers = #tpu.dot_dimension_numbers<[1], [0], [0], [1], [0, 0, 1, 1], [], []>} : vector<8x32xf32>, vector<32x128xf32>, vector<8x128xf32> -> vector<8x128xf32>
    %282 = arith.addf %280, %281 : vector<8x128xf32>
    %283 = arith.negf %282 : vector<8x128xf32>
    %284 = math.exp %283 : vector<8x128xf32>
    %cst_156 = arith.constant 1.000000e+00 : f32
    %285 = vector.broadcast %cst_156 : f32 to vector<8x128xf32>
    %286 = arith.addf %285, %284 : vector<8x128xf32>
    %287 = arith.divf %285, %286 : vector<8x128xf32>
    %288 = math.tanh %282 : vector<8x128xf32>
    %289 = vector.extract_strided_slice %287 {offsets = [0, 0], sizes = [8, 32], strides = [1, 1]} : vector<8x128xf32> to vector<8x32xf32>
    %290 = vector.extract_strided_slice %287 {offsets = [0, 32], sizes = [8, 32], strides = [1, 1]} : vector<8x128xf32> to vector<8x32xf32>
    %291 = vector.extract_strided_slice %288 {offsets = [0, 64], sizes = [8, 32], strides = [1, 1]} : vector<8x128xf32> to vector<8x32xf32>
    %292 = vector.extract_strided_slice %287 {offsets = [0, 96], sizes = [8, 32], strides = [1, 1]} : vector<8x128xf32> to vector<8x32xf32>
    %293 = arith.mulf %290, %256 : vector<8x32xf32>
    %294 = arith.mulf %289, %291 : vector<8x32xf32>
    %295 = arith.addf %293, %294 : vector<8x32xf32>
    %296 = math.tanh %295 : vector<8x32xf32>
    %297 = arith.mulf %292, %296 : vector<8x32xf32>
    %cst_157 = arith.constant dense<0.000000e+00> : vector<8x128xf32>
    %298 = tpu.matmul %258, %1, %cst_157 {dimension_numbers = #tpu.dot_dimension_numbers<[1], [0], [0], [1], [0, 0, 1, 1], [], []>} : vector<8x32xf32>, vector<32x128xf32>, vector<8x128xf32> -> vector<8x128xf32>
    %299 = vector.broadcast %3 : vector<1x128xf32> to vector<8x128xf32>
    %300 = arith.addf %298, %299 : vector<8x128xf32>
    %cst_158 = arith.constant dense<0.000000e+00> : vector<8x128xf32>
    %301 = tpu.matmul %278, %2, %cst_158 {dimension_numbers = #tpu.dot_dimension_numbers<[1], [0], [0], [1], [0, 0, 1, 1], [], []>} : vector<8x32xf32>, vector<32x128xf32>, vector<8x128xf32> -> vector<8x128xf32>
    %302 = arith.addf %300, %301 : vector<8x128xf32>
    %303 = arith.negf %302 : vector<8x128xf32>
    %304 = math.exp %303 : vector<8x128xf32>
    %cst_159 = arith.constant 1.000000e+00 : f32
    %305 = vector.broadcast %cst_159 : f32 to vector<8x128xf32>
    %306 = arith.addf %305, %304 : vector<8x128xf32>
    %307 = arith.divf %305, %306 : vector<8x128xf32>
    %308 = math.tanh %302 : vector<8x128xf32>
    %309 = vector.extract_strided_slice %307 {offsets = [0, 0], sizes = [8, 32], strides = [1, 1]} : vector<8x128xf32> to vector<8x32xf32>
    %310 = vector.extract_strided_slice %307 {offsets = [0, 32], sizes = [8, 32], strides = [1, 1]} : vector<8x128xf32> to vector<8x32xf32>
    %311 = vector.extract_strided_slice %308 {offsets = [0, 64], sizes = [8, 32], strides = [1, 1]} : vector<8x128xf32> to vector<8x32xf32>
    %312 = vector.extract_strided_slice %307 {offsets = [0, 96], sizes = [8, 32], strides = [1, 1]} : vector<8x128xf32> to vector<8x32xf32>
    %313 = arith.mulf %310, %276 : vector<8x32xf32>
    %314 = arith.mulf %309, %311 : vector<8x32xf32>
    %315 = arith.addf %313, %314 : vector<8x32xf32>
    %316 = math.tanh %315 : vector<8x32xf32>
    %317 = arith.mulf %312, %316 : vector<8x32xf32>
    %c32_160 = arith.constant 32 : index
    %c0_161 = arith.constant 0 : index
    %318 = vector.load %arg9[%c32_160, %c0_161] : memref<64x32xf32, #tpu.memory_space<vmem>>, vector<8x32xf32>
    tpu.vector_store %arg9[%c32_160, %c0_161], %317 {strides = array<i32>} : memref<64x32xf32, #tpu.memory_space<vmem>>, vector<8x32xf32>,
    %c48_162 = arith.constant 48 : index
    %c0_163 = arith.constant 0 : index
    %319 = vector.load %arg8[%c48_162, %c0_163] : memref<64x128xf32, #tpu.memory_space<vmem>>, vector<8x128xf32>
    %cst_164 = arith.constant dense<0.000000e+00> : vector<8x128xf32>
    %320 = tpu.matmul %297, %0, %cst_164 {dimension_numbers = #tpu.dot_dimension_numbers<[1], [0], [0], [1], [0, 0, 1, 1], [], []>} : vector<8x32xf32>, vector<32x128xf32>, vector<8x128xf32> -> vector<8x128xf32>
    %321 = arith.addf %319, %320 : vector<8x128xf32>
    %322 = arith.negf %321 : vector<8x128xf32>
    %323 = math.exp %322 : vector<8x128xf32>
    %cst_165 = arith.constant 1.000000e+00 : f32
    %324 = vector.broadcast %cst_165 : f32 to vector<8x128xf32>
    %325 = arith.addf %324, %323 : vector<8x128xf32>
    %326 = arith.divf %324, %325 : vector<8x128xf32>
    %327 = math.tanh %321 : vector<8x128xf32>
    %328 = vector.extract_strided_slice %326 {offsets = [0, 0], sizes = [8, 32], strides = [1, 1]} : vector<8x128xf32> to vector<8x32xf32>
    %329 = vector.extract_strided_slice %326 {offsets = [0, 32], sizes = [8, 32], strides = [1, 1]} : vector<8x128xf32> to vector<8x32xf32>
    %330 = vector.extract_strided_slice %327 {offsets = [0, 64], sizes = [8, 32], strides = [1, 1]} : vector<8x128xf32> to vector<8x32xf32>
    %331 = vector.extract_strided_slice %326 {offsets = [0, 96], sizes = [8, 32], strides = [1, 1]} : vector<8x128xf32> to vector<8x32xf32>
    %332 = arith.mulf %329, %295 : vector<8x32xf32>
    %333 = arith.mulf %328, %330 : vector<8x32xf32>
    %334 = arith.addf %332, %333 : vector<8x32xf32>
    %335 = math.tanh %334 : vector<8x32xf32>
    %336 = arith.mulf %331, %335 : vector<8x32xf32>
    %cst_166 = arith.constant dense<0.000000e+00> : vector<8x128xf32>
    %337 = tpu.matmul %297, %1, %cst_166 {dimension_numbers = #tpu.dot_dimension_numbers<[1], [0], [0], [1], [0, 0, 1, 1], [], []>} : vector<8x32xf32>, vector<32x128xf32>, vector<8x128xf32> -> vector<8x128xf32>
    %338 = vector.broadcast %3 : vector<1x128xf32> to vector<8x128xf32>
    %339 = arith.addf %337, %338 : vector<8x128xf32>
    %cst_167 = arith.constant dense<0.000000e+00> : vector<8x128xf32>
    %340 = tpu.matmul %317, %2, %cst_167 {dimension_numbers = #tpu.dot_dimension_numbers<[1], [0], [0], [1], [0, 0, 1, 1], [], []>} : vector<8x32xf32>, vector<32x128xf32>, vector<8x128xf32> -> vector<8x128xf32>
    %341 = arith.addf %339, %340 : vector<8x128xf32>
    %342 = arith.negf %341 : vector<8x128xf32>
    %343 = math.exp %342 : vector<8x128xf32>
    %cst_168 = arith.constant 1.000000e+00 : f32
    %344 = vector.broadcast %cst_168 : f32 to vector<8x128xf32>
    %345 = arith.addf %344, %343 : vector<8x128xf32>
    %346 = arith.divf %344, %345 : vector<8x128xf32>
    %347 = math.tanh %341 : vector<8x128xf32>
    %348 = vector.extract_strided_slice %346 {offsets = [0, 0], sizes = [8, 32], strides = [1, 1]} : vector<8x128xf32> to vector<8x32xf32>
    %349 = vector.extract_strided_slice %346 {offsets = [0, 32], sizes = [8, 32], strides = [1, 1]} : vector<8x128xf32> to vector<8x32xf32>
    %350 = vector.extract_strided_slice %347 {offsets = [0, 64], sizes = [8, 32], strides = [1, 1]} : vector<8x128xf32> to vector<8x32xf32>
    %351 = vector.extract_strided_slice %346 {offsets = [0, 96], sizes = [8, 32], strides = [1, 1]} : vector<8x128xf32> to vector<8x32xf32>
    %352 = arith.mulf %349, %315 : vector<8x32xf32>
    %353 = arith.mulf %348, %350 : vector<8x32xf32>
    %354 = arith.addf %352, %353 : vector<8x32xf32>
    %355 = math.tanh %354 : vector<8x32xf32>
    %356 = arith.mulf %351, %355 : vector<8x32xf32>
    %c40_169 = arith.constant 40 : index
    %c0_170 = arith.constant 0 : index
    %357 = vector.load %arg9[%c40_169, %c0_170] : memref<64x32xf32, #tpu.memory_space<vmem>>, vector<8x32xf32>
    tpu.vector_store %arg9[%c40_169, %c0_170], %356 {strides = array<i32>} : memref<64x32xf32, #tpu.memory_space<vmem>>, vector<8x32xf32>,
    %c56_171 = arith.constant 56 : index
    %c0_172 = arith.constant 0 : index
    %358 = vector.load %arg8[%c56_171, %c0_172] : memref<64x128xf32, #tpu.memory_space<vmem>>, vector<8x128xf32>
    %cst_173 = arith.constant dense<0.000000e+00> : vector<8x128xf32>
    %359 = tpu.matmul %336, %0, %cst_173 {dimension_numbers = #tpu.dot_dimension_numbers<[1], [0], [0], [1], [0, 0, 1, 1], [], []>} : vector<8x32xf32>, vector<32x128xf32>, vector<8x128xf32> -> vector<8x128xf32>
    %360 = arith.addf %358, %359 : vector<8x128xf32>
    %361 = arith.negf %360 : vector<8x128xf32>
    %362 = math.exp %361 : vector<8x128xf32>
    %cst_174 = arith.constant 1.000000e+00 : f32
    %363 = vector.broadcast %cst_174 : f32 to vector<8x128xf32>
    %364 = arith.addf %363, %362 : vector<8x128xf32>
    %365 = arith.divf %363, %364 : vector<8x128xf32>
    %366 = math.tanh %360 : vector<8x128xf32>
    %367 = vector.extract_strided_slice %365 {offsets = [0, 0], sizes = [8, 32], strides = [1, 1]} : vector<8x128xf32> to vector<8x32xf32>
    %368 = vector.extract_strided_slice %365 {offsets = [0, 32], sizes = [8, 32], strides = [1, 1]} : vector<8x128xf32> to vector<8x32xf32>
    %369 = vector.extract_strided_slice %366 {offsets = [0, 64], sizes = [8, 32], strides = [1, 1]} : vector<8x128xf32> to vector<8x32xf32>
    %370 = vector.extract_strided_slice %365 {offsets = [0, 96], sizes = [8, 32], strides = [1, 1]} : vector<8x128xf32> to vector<8x32xf32>
    %371 = arith.mulf %368, %334 : vector<8x32xf32>
    %372 = arith.mulf %367, %369 : vector<8x32xf32>
    %373 = arith.addf %371, %372 : vector<8x32xf32>
    %374 = math.tanh %373 : vector<8x32xf32>
    %375 = arith.mulf %370, %374 : vector<8x32xf32>
    %cst_175 = arith.constant dense<0.000000e+00> : vector<8x128xf32>
    %376 = tpu.matmul %336, %1, %cst_175 {dimension_numbers = #tpu.dot_dimension_numbers<[1], [0], [0], [1], [0, 0, 1, 1], [], []>} : vector<8x32xf32>, vector<32x128xf32>, vector<8x128xf32> -> vector<8x128xf32>
    %377 = vector.broadcast %3 : vector<1x128xf32> to vector<8x128xf32>
    %378 = arith.addf %376, %377 : vector<8x128xf32>
    %cst_176 = arith.constant dense<0.000000e+00> : vector<8x128xf32>
    %379 = tpu.matmul %356, %2, %cst_176 {dimension_numbers = #tpu.dot_dimension_numbers<[1], [0], [0], [1], [0, 0, 1, 1], [], []>} : vector<8x32xf32>, vector<32x128xf32>, vector<8x128xf32> -> vector<8x128xf32>
    %380 = arith.addf %378, %379 : vector<8x128xf32>
    %381 = arith.negf %380 : vector<8x128xf32>
    %382 = math.exp %381 : vector<8x128xf32>
    %cst_177 = arith.constant 1.000000e+00 : f32
    %383 = vector.broadcast %cst_177 : f32 to vector<8x128xf32>
    %384 = arith.addf %383, %382 : vector<8x128xf32>
    %385 = arith.divf %383, %384 : vector<8x128xf32>
    %386 = math.tanh %380 : vector<8x128xf32>
    %387 = vector.extract_strided_slice %385 {offsets = [0, 0], sizes = [8, 32], strides = [1, 1]} : vector<8x128xf32> to vector<8x32xf32>
    %388 = vector.extract_strided_slice %385 {offsets = [0, 32], sizes = [8, 32], strides = [1, 1]} : vector<8x128xf32> to vector<8x32xf32>
    %389 = vector.extract_strided_slice %386 {offsets = [0, 64], sizes = [8, 32], strides = [1, 1]} : vector<8x128xf32> to vector<8x32xf32>
    %390 = vector.extract_strided_slice %385 {offsets = [0, 96], sizes = [8, 32], strides = [1, 1]} : vector<8x128xf32> to vector<8x32xf32>
    %391 = arith.mulf %388, %354 : vector<8x32xf32>
    %392 = arith.mulf %387, %389 : vector<8x32xf32>
    %393 = arith.addf %391, %392 : vector<8x32xf32>
    %394 = math.tanh %393 : vector<8x32xf32>
    %395 = arith.mulf %390, %394 : vector<8x32xf32>
    %c48_178 = arith.constant 48 : index
    %c0_179 = arith.constant 0 : index
    %396 = vector.load %arg9[%c48_178, %c0_179] : memref<64x32xf32, #tpu.memory_space<vmem>>, vector<8x32xf32>
    tpu.vector_store %arg9[%c48_178, %c0_179], %395 {strides = array<i32>} : memref<64x32xf32, #tpu.memory_space<vmem>>, vector<8x32xf32>,
    %cst_180 = arith.constant dense<0.000000e+00> : vector<8x128xf32>
    %397 = tpu.matmul %375, %1, %cst_180 {dimension_numbers = #tpu.dot_dimension_numbers<[1], [0], [0], [1], [0, 0, 1, 1], [], []>} : vector<8x32xf32>, vector<32x128xf32>, vector<8x128xf32> -> vector<8x128xf32>
    %398 = vector.broadcast %3 : vector<1x128xf32> to vector<8x128xf32>
    %399 = arith.addf %397, %398 : vector<8x128xf32>
    %cst_181 = arith.constant dense<0.000000e+00> : vector<8x128xf32>
    %400 = tpu.matmul %395, %2, %cst_181 {dimension_numbers = #tpu.dot_dimension_numbers<[1], [0], [0], [1], [0, 0, 1, 1], [], []>} : vector<8x32xf32>, vector<32x128xf32>, vector<8x128xf32> -> vector<8x128xf32>
    %401 = arith.addf %399, %400 : vector<8x128xf32>
    %402 = arith.negf %401 : vector<8x128xf32>
    %403 = math.exp %402 : vector<8x128xf32>
    %cst_182 = arith.constant 1.000000e+00 : f32
    %404 = vector.broadcast %cst_182 : f32 to vector<8x128xf32>
    %405 = arith.addf %404, %403 : vector<8x128xf32>
    %406 = arith.divf %404, %405 : vector<8x128xf32>
    %407 = math.tanh %401 : vector<8x128xf32>
    %408 = vector.extract_strided_slice %406 {offsets = [0, 0], sizes = [8, 32], strides = [1, 1]} : vector<8x128xf32> to vector<8x32xf32>
    %409 = vector.extract_strided_slice %406 {offsets = [0, 32], sizes = [8, 32], strides = [1, 1]} : vector<8x128xf32> to vector<8x32xf32>
    %410 = vector.extract_strided_slice %407 {offsets = [0, 64], sizes = [8, 32], strides = [1, 1]} : vector<8x128xf32> to vector<8x32xf32>
    %411 = vector.extract_strided_slice %406 {offsets = [0, 96], sizes = [8, 32], strides = [1, 1]} : vector<8x128xf32> to vector<8x32xf32>
    %412 = arith.mulf %409, %393 : vector<8x32xf32>
    %413 = arith.mulf %408, %410 : vector<8x32xf32>
    %414 = arith.addf %412, %413 : vector<8x32xf32>
    %415 = math.tanh %414 : vector<8x32xf32>
    %416 = arith.mulf %411, %415 : vector<8x32xf32>
    %c56_183 = arith.constant 56 : index
    %c0_184 = arith.constant 0 : index
    %417 = vector.load %arg9[%c56_183, %c0_184] : memref<64x32xf32, #tpu.memory_space<vmem>>, vector<8x32xf32>
    tpu.vector_store %arg9[%c56_183, %c0_184], %416 {strides = array<i32>} : memref<64x32xf32, #tpu.memory_space<vmem>>, vector<8x32xf32>,
    %418 = vector.extract_strided_slice %375 {offsets = [0, 0], sizes = [2, 32], strides = [1, 1]} : vector<8x32xf32> to vector<2x32xf32>
    %c0_185 = arith.constant 0 : index
    %c0_186 = arith.constant 0 : index
    %c0_187 = arith.constant 0 : index
    %419 = vector.load %arg6[%c0_185, %c0_186, %c0_187] : memref<2x2x32xf32, #tpu.memory_space<vmem>>, vector<1x2x32xf32>
    %420 = vector.shape_cast %419 : vector<1x2x32xf32> to vector<2x32xf32>
    %421 = vector.shape_cast %418 : vector<2x32xf32> to vector<1x2x32xf32>
    tpu.vector_store %arg6[%c0_185, %c0_186, %c0_187], %421 {strides = array<i32>} : memref<2x2x32xf32, #tpu.memory_space<vmem>>, vector<1x2x32xf32>,
    %422 = vector.extract_strided_slice %373 {offsets = [0, 0], sizes = [2, 32], strides = [1, 1]} : vector<8x32xf32> to vector<2x32xf32>
    %c0_188 = arith.constant 0 : index
    %c0_189 = arith.constant 0 : index
    %c0_190 = arith.constant 0 : index
    %423 = vector.load %arg7[%c0_188, %c0_189, %c0_190] : memref<2x2x32xf32, #tpu.memory_space<vmem>>, vector<1x2x32xf32>
    %424 = vector.shape_cast %423 : vector<1x2x32xf32> to vector<2x32xf32>
    %425 = vector.shape_cast %422 : vector<2x32xf32> to vector<1x2x32xf32>
    tpu.vector_store %arg7[%c0_188, %c0_189, %c0_190], %425 {strides = array<i32>} : memref<2x2x32xf32, #tpu.memory_space<vmem>>, vector<1x2x32xf32>,
    %426 = vector.extract_strided_slice %416 {offsets = [0, 0], sizes = [2, 32], strides = [1, 1]} : vector<8x32xf32> to vector<2x32xf32>
    %c1_191 = arith.constant 1 : index
    %c0_192 = arith.constant 0 : index
    %c0_193 = arith.constant 0 : index
    %427 = vector.load %arg6[%c1_191, %c0_192, %c0_193] : memref<2x2x32xf32, #tpu.memory_space<vmem>>, vector<1x2x32xf32>
    %428 = vector.shape_cast %427 : vector<1x2x32xf32> to vector<2x32xf32>
    %429 = vector.shape_cast %426 : vector<2x32xf32> to vector<1x2x32xf32>
    tpu.vector_store %arg6[%c1_191, %c0_192, %c0_193], %429 {strides = array<i32>} : memref<2x2x32xf32, #tpu.memory_space<vmem>>, vector<1x2x32xf32>,
    %430 = vector.extract_strided_slice %414 {offsets = [0, 0], sizes = [2, 32], strides = [1, 1]} : vector<8x32xf32> to vector<2x32xf32>
    %c1_194 = arith.constant 1 : index
    %c0_195 = arith.constant 0 : index
    %c0_196 = arith.constant 0 : index
    %431 = vector.load %arg7[%c1_194, %c0_195, %c0_196] : memref<2x2x32xf32, #tpu.memory_space<vmem>>, vector<1x2x32xf32>
    %432 = vector.shape_cast %431 : vector<1x2x32xf32> to vector<2x32xf32>
    %433 = vector.shape_cast %430 : vector<2x32xf32> to vector<1x2x32xf32>
    tpu.vector_store %arg7[%c1_194, %c0_195, %c0_196], %433 {strides = array<i32>} : memref<2x2x32xf32, #tpu.memory_space<vmem>>, vector<1x2x32xf32>,
    %c168 = arith.constant 168 : index
    %c0_197 = arith.constant 0 : index
    %434 = vector.load %arg2[%c168, %c0_197] : memref<208x128xf32, #tpu.memory_space<vmem>>, vector<32x128xf32>
    %c200 = arith.constant 200 : index
    %c0_198 = arith.constant 0 : index
    %435 = vector.load %arg2[%c200, %c0_198] : memref<208x128xf32, #tpu.memory_space<vmem>>, vector<1x128xf32>
    %c0_199 = arith.constant 0 : index
    %c0_200 = arith.constant 0 : index
    %436 = vector.load %arg9[%c0_199, %c0_200] : memref<64x32xf32, #tpu.memory_space<vmem>>, vector<64x32xf32>
    %cst_201 = arith.constant dense<0.000000e+00> : vector<64x128xf32>
    %437 = tpu.matmul %436, %434, %cst_201 {dimension_numbers = #tpu.dot_dimension_numbers<[1], [0], [0], [1], [0, 0, 1, 1], [], []>} : vector<64x32xf32>, vector<32x128xf32>, vector<64x128xf32> -> vector<64x128xf32>
    %438 = vector.broadcast %435 : vector<1x128xf32> to vector<64x128xf32>
    %439 = arith.addf %437, %438 : vector<64x128xf32>
    %c0_202 = arith.constant 0 : index
    %c0_203 = arith.constant 0 : index
    %440 = vector.load %arg5[%c0_202, %c0_203] : memref<64x128xf32, #tpu.memory_space<vmem>>, vector<64x128xf32>
    tpu.vector_store %arg5[%c0_202, %c0_203], %439 {strides = array<i32>} : memref<64x128xf32, #tpu.memory_space<vmem>>, vector<64x128xf32>,
    return
  }
  func.func @transform_0(%arg0: i32, %arg1: memref<8x2xi32, #tpu.memory_space<smem>>) -> (i32, i32) {
    %c0_i32 = arith.constant 0 : i32
    %c0_i32_0 = arith.constant 0 : i32
    %c0_i32_1 = arith.constant 0 : i32
    return %c0_i32, %c0_i32_0 : i32, i32
  }
  func.func @transform_1(%arg0: i32, %arg1: memref<8x2xi32, #tpu.memory_space<smem>>) -> (i32, i32, i32) {
    %c0_i32 = arith.constant 0 : i32
    %c0_i32_0 = arith.constant 0 : i32
    %c0_i32_1 = arith.constant 0 : i32
    %c0_i32_2 = arith.constant 0 : i32
    return %c0_i32, %c0_i32_0, %c0_i32_1 : i32, i32, i32
  }
  func.func @transform_2(%arg0: i32, %arg1: memref<8x2xi32, #tpu.memory_space<smem>>) -> (i32, i32, i32) {
    %c0_i32 = arith.constant 0 : i32
    %c0_i32_0 = arith.constant 0 : i32
    %c0_i32_1 = arith.constant 0 : i32
    %c0_i32_2 = arith.constant 0 : i32
    return %c0_i32, %c0_i32_0, %c0_i32_1 : i32, i32, i32
  }
  func.func @transform_3(%arg0: i32, %arg1: memref<8x2xi32, #tpu.memory_space<smem>>) -> (i32, i32) {
    %c0_i32 = arith.constant 0 : i32
    %c0_i32_0 = arith.constant 0 : i32
    %c0_i32_1 = arith.constant 0 : i32
    return %c0_i32, %c0_i32_0 : i32, i32
  }
  func.func @transform_4(%arg0: i32, %arg1: memref<8x2xi32, #tpu.memory_space<smem>>) -> (i32, i32, i32) {
    %c0_i32 = arith.constant 0 : i32
    %c0_i32_0 = arith.constant 0 : i32
    %c0_i32_1 = arith.constant 0 : i32
    %c0_i32_2 = arith.constant 0 : i32
    return %c0_i32, %c0_i32_0, %c0_i32_1 : i32, i32, i32
  }
  func.func @transform_5(%arg0: i32, %arg1: memref<8x2xi32, #tpu.memory_space<smem>>) -> (i32, i32, i32) {
    %c0_i32 = arith.constant 0 : i32
    %c0_i32_0 = arith.constant 0 : i32
    %c0_i32_1 = arith.constant 0 : i32
    %c0_i32_2 = arith.constant 0 : i32
    return %c0_i32, %c0_i32_0, %c0_i32_1 : i32, i32, i32
  }
}

</mosaic_0001>

<llo_original>
// kernel: lstm_lm_forward.1
$region0: #{lstm_lm_forward.1}
  #allocation0 [shape = 'u32[]', space=smem, size = 0x4, offset = 0x4, fixed_abs, tag = 'smem constant byte address 0x4 - core index']
  #allocation1 [shape = 'u32[144,128]{1,0:T(1,128)}', space=vmem, size = 0x12000, scoped, tag = 'internal scratch']
  #allocation2 [shape = 'f32[64,128]{1,0:T(8,128)}', space=vmem, size = 0x8000, scoped, tag = 'scratch operand']
  #allocation3 [shape = 'f32[64,32]{1,0:T(8,128)}', space=vmem, size = 0x8000, scoped, tag = 'scratch operand']
  #allocation4 [shape = 'f32[16,32]{1,0:T(8,128)}', space=vmem, size = 0x2000, scoped, tag = 'scratch operand']
  #allocation5 [shape = 'f32[16,32]{1,0:T(8,128)}', space=vmem, size = 0x2000, scoped, tag = 'scratch operand']
  #allocation6 [shape = 's32[1]{0}', space=sflag, size = 0x4, scoped, tag = 'scoped memory for lstm_lm_forward.1']
  #allocation7 [shape = 'u8[4096]{0}', space=smem, size = 0x1000, scoped, tag = 'prefetched SMEM operand 0']
  %s0 = inlined_call_operand.vmem [shape: s32[8,2], index: 0, kind: input, shape index: {}]
  %s1 = inlined_call_operand.hbm [shape: f32[208,128], index: 1, kind: input, shape index: {}]
  %s2 = inlined_call_operand.vmem [shape: f32[2,2,32], index: 2, kind: input, shape index: {}]
  %s3 = inlined_call_operand.vmem [shape: f32[2,2,32], index: 3, kind: input, shape index: {}]
  %s4 = inlined_call_operand.vmem [shape: f32[64,128], index: 4, kind: output, shape index: {0}]
  %s5 = inlined_call_operand.hbm [shape: f32[2,2,32], index: 5, kind: output, shape index: {1}]
  %s6 = inlined_call_operand.hbm [shape: f32[2,2,32], index: 6, kind: output, shape index: {2}]
  %7 = xla_tuple %s4, %s5, %s6
  %s8 = sld [smem:[#allocation0]]
  $region42: #{lstm_lm_forward.1} parent=0
    _
  %s10 = ssub.s32 1, %s8
  %s11 = scalar_select 0, %s10, %s8
  %s12 = sshll.u32 %s0, 4
  %s13 = int_to_ptr.vmem [resolvable:$true] %s12
  %15 = dma.vmem_to_smem %s13, 128, [#allocation7], [#allocation6]
  %16 = dma.done [#allocation6], 128
  %17 = sfence
  $region1: #{lstm_lm_forward.1} parent=0
    #allocation8 [shape = 'u8[106496]{0}', space=vmem, size = 0x1a000, scoped, tag = 'input window, operand 1, single buffered']
    #allocation9 [shape = 's32[1]{0}', space=sflag, size = 0x4, scoped, tag = 'scoped memory for lstm_lm_forward.1']
    #allocation10 [shape = 's32[1]{0}', space=sflag, size = 0x4, scoped, tag = 'scoped memory for lstm_lm_forward.1']
    #allocation11 [shape = 'u8[2048]{0}', space=vmem, size = 0x800, scoped, tag = 'output window, operand 1, single buffered']
    #allocation12 [shape = 'u8[2048]{0}', space=vmem, size = 0x800, scoped, tag = 'output window, operand 2, single buffered']
    #allocation13 [shape = 's32[1]{0}', space=sflag, size = 0x4, scoped, tag = 'scoped memory for lstm_lm_forward.1']
    %18 = vsyncpa [#allocation9], 0
    %19 = vsyncpa [#allocation10], 0
    %20 = vsyncpa [#allocation13], 0
    // Predicated region
    $region2: #{lstm_lm_forward.1} parent=1 // pred_check
      _
    $region3: #{lstm_lm_forward.1} parent=1 // pred_check_branch
      %22 = sbr.rel (0) target = $region5
    $region4: #{lstm_lm_forward.1} parent=1 // pred_region
      %s24 = ssub.s32 3328, 3328
      %25 = vsyncadd [#allocation9], %s24
      %s26 = sshll.u32 [#allocation8], 4
      %s27 = int_to_ptr.vmem [resolvable:$true] %s26
      %32 = dma.hbm_to_vmem [thread:$0]  %s1, 3328, %s27, [#allocation9], 128, 128, 8
    $region5: #{lstm_lm_forward.1} parent=1 // pred_fallthru
      _
    // Predicated region
    $region6: #{lstm_lm_forward.1} parent=1 // pred_check
      _
    $region7: #{lstm_lm_forward.1} parent=1 // pred_check_branch
      %34 = sbr.rel (0) target = $region9
    $region8: #{lstm_lm_forward.1} parent=1 // pred_region
      _
    $region9: #{lstm_lm_forward.1} parent=1 // pred_fallthru
      _
    // Predicated region
    $region10: #{lstm_lm_forward.1} parent=1 // pred_check
      _
    $region11: #{lstm_lm_forward.1} parent=1 // pred_check_branch
      %36 = sbr.rel (0) target = $region13
    $region12: #{lstm_lm_forward.1} parent=1 // pred_region
      _
    $region13: #{lstm_lm_forward.1} parent=1 // pred_fallthru
      _
    // Predicated region
    $region14: #{lstm_lm_forward.1} parent=1 // pred_check
      _
    $region15: #{lstm_lm_forward.1} parent=1 // pred_check_branch
      %38 = sbr.rel (0) target = $region17
    $region16: #{lstm_lm_forward.1} parent=1 // pred_region
      %39 = dma.done [#allocation9], 3328
    $region17: #{lstm_lm_forward.1} parent=1 // pred_fallthru
      _
    %v40 = vld [vmem:[#allocation8 + $0x40] sm:$0xff]
    %v41 = vld [vmem:[#allocation8 + $0x48] sm:$0xff]
    %v42 = vld [vmem:[#allocation8 + $0x50] sm:$0xff]
    %v43 = vld [vmem:[#allocation8 + $0x58] sm:$0xff]
    %v44 = vld [vmem:[#allocation8 + $0x60] sm:$0xff]
    %v45 = vld [vmem:[#allocation8 + $0x68] sm:$0xff]
    %v46 = vld [vmem:[#allocation8 + $0x70] sm:$0xff]
    %v47 = vld [vmem:[#allocation8 + $0x78] sm:$0xff]
    %v48 = vld [vmem:[#allocation8 + $0x80] sm:$0xff]
    %v49 = vld [vmem:[#allocation8 + $0x88] sm:$0xff]
    %v50 = vld [vmem:[#allocation8 + $0x90] sm:$0xff]
    %v51 = vld [vmem:[#allocation8 + $0x98] sm:$0xff]
    %v52 = vld [vmem:[#allocation8 + $0xa0] sm:$0x1]
    %53 = vst [vmem:[#allocation2] sm:$0xff] 0.0
    %54 = vst [vmem:[#allocation2 + $0x8] sm:$0xff] 0.0
    %55 = vst [vmem:[#allocation2 + $0x10] sm:$0xff] 0.0
    %56 = vst [vmem:[#allocation2 + $0x18] sm:$0xff] 0.0
    %57 = vst [vmem:[#allocation2 + $0x20] sm:$0xff] 0.0
    %58 = vst [vmem:[#allocation2 + $0x28] sm:$0xff] 0.0
    %59 = vst [vmem:[#allocation2 + $0x30] sm:$0xff] 0.0
    %60 = vst [vmem:[#allocation2 + $0x38] sm:$0xff] 0.0
    %s61 = sld [smem:[#allocation7]]
    %s62 = scalar_lea.vmem [#allocation8], %s61
    %v63 = vld [vmem:[%s62] sm:$0x1]
    %64 = vst [vmem:[#allocation2] sm:$0x1] %v63
    %s65 = sld [smem:[#allocation7 + $0x1]]
    %s66 = scalar_lea.vmem [#allocation8], %s65
    %v67 = vld [vmem:[%s66] sm:$0x1]
    %68 = vst [vmem:[#allocation2 + $0x1] sm:$0x1] %v67
    %s69 = sld [smem:[#allocation7 + $0x80]]
    %s70 = scalar_lea.vmem [#allocation8], %s69
    %v71 = vld [vmem:[%s70] sm:$0x1]
    %72 = vst [vmem:[#allocation2 + $0x8] sm:$0x1] %v71
    %s73 = sld [smem:[#allocation7 + $0x81]]
    %s74 = scalar_lea.vmem [#allocation8], %s73
    %v75 = vld [vmem:[%s74] sm:$0x1]
    %76 = vst [vmem:[#allocation2 + $0x9] sm:$0x1] %v75
    %s77 = sld [smem:[#allocation7 + $0x100]]
    %s78 = scalar_lea.vmem [#allocation8], %s77
    %v79 = vld [vmem:[%s78] sm:$0x1]
    %80 = vst [vmem:[#allocation2 + $0x10] sm:$0x1] %v79
    %s81 = sld [smem:[#allocation7 + $0x101]]
    %s82 = scalar_lea.vmem [#allocation8], %s81
    %v83 = vld [vmem:[%s82] sm:$0x1]
    %84 = vst [vmem:[#allocation2 + $0x11] sm:$0x1] %v83
    %s85 = sld [smem:[#allocation7 + $0x180]]
    %s86 = scalar_lea.vmem [#allocation8], %s85
    %v87 = vld [vmem:[%s86] sm:$0x1]
    %88 = vst [vmem:[#allocation2 + $0x18] sm:$0x1] %v87
    %s89 = sld [smem:[#allocation7 + $0x181]]
    %s90 = scalar_lea.vmem [#allocation8], %s89
    %v91 = vld [vmem:[%s90] sm:$0x1]
    %92 = vst [vmem:[#allocation2 + $0x19] sm:$0x1] %v91
    %s93 = sld [smem:[#allocation7 + $0x200]]
    %s94 = scalar_lea.vmem [#allocation8], %s93
    %v95 = vld [vmem:[%s94] sm:$0x1]
    %96 = vst [vmem:[#allocation2 + $0x20] sm:$0x1] %v95
    %s97 = sld [smem:[#allocation7 + $0x201]]
    %s98 = scalar_lea.vmem [#allocation8], %s97
    %v99 = vld [vmem:[%s98] sm:$0x1]
    %100 = vst [vmem:[#allocation2 + $0x21] sm:$0x1] %v99
    %s101 = sld [smem:[#allocation7 + $0x280]]
    %s102 = scalar_lea.vmem [#allocation8], %s101
    %v103 = vld [vmem:[%s102] sm:$0x1]
    %104 = vst [vmem:[#allocation2 + $0x28] sm:$0x1] %v103
    %s105 = sld [smem:[#allocation7 + $0x281]]
    %s106 = scalar_lea.vmem [#allocation8], %s105
    %v107 = vld [vmem:[%s106] sm:$0x1]
    %108 = vst [vmem:[#allocation2 + $0x29] sm:$0x1] %v107
    %s109 = sld [smem:[#allocation7 + $0x300]]
    %s110 = scalar_lea.vmem [#allocation8], %s109
    %v111 = vld [vmem:[%s110] sm:$0x1]
    %112 = vst [vmem:[#allocation2 + $0x30] sm:$0x1] %v111
    %s113 = sld [smem:[#allocation7 + $0x301]]
    %s114 = scalar_lea.vmem [#allocation8], %s113
    %v115 = vld [vmem:[%s114] sm:$0x1]
    %116 = vst [vmem:[#allocation2 + $0x31] sm:$0x1] %v115
    %s117 = sld [smem:[#allocation7 + $0x380]]
    %s118 = scalar_lea.vmem [#allocation8], %s117
    %v119 = vld [vmem:[%s118] sm:$0x1]
    %120 = vst [vmem:[#allocation2 + $0x38] sm:$0x1] %v119
    %s121 = sld [smem:[#allocation7 + $0x381]]
    %s122 = scalar_lea.vmem [#allocation8], %s121
    %v123 = vld [vmem:[%s122] sm:$0x1]
    %124 = vst [vmem:[#allocation2 + $0x39] sm:$0x1] %v123
    %vm125 = vcmask 261120
    %126 = vst.msk [vmem:[#allocation4] sm:$0xff] %vm125, 0.0
    %127 = vst.msk [vmem:[#allocation4 + $0x8] sm:$0xff] %vm125, 0.0
    %128 = vst.msk [vmem:[#allocation5] sm:$0xff] %vm125, 0.0
    %129 = vst.msk [vmem:[#allocation5 + $0x8] sm:$0xff] %vm125, 0.0
    %v130 = vld [vmem:[%s2] sm:$0x3]
    %vm131 = vcmask 254976
    %132 = vst.msk [vmem:[#allocation4] sm:$0x3] %vm131, %v130
    %v133 = vld [vmem:[%s3] sm:$0x3]
    %134 = vst.msk [vmem:[#allocation5] sm:$0x3] %vm131, %v133
    %s135 = scalar_lea.vmem %s2, 2
    %v136 = vld [vmem:[%s135] sm:$0x3]
    %137 = vst.msk [vmem:[#allocation4 + $0x8] sm:$0x3] %vm131, %v136
    %s138 = scalar_lea.vmem %s3, 2
    %v139 = vld [vmem:[%s138] sm:$0x3]
    %140 = vst.msk [vmem:[#allocation5 + $0x8] sm:$0x3] %vm131, %v139
    %v141 = vld [vmem:[#allocation4] sm:$0xff]
    %v142 = vld [vmem:[#allocation4 + $0x8] sm:$0xff]
    %v143 = vld [vmem:[#allocation5] sm:$0xff]
    %v144 = vld [vmem:[#allocation5 + $0x8] sm:$0xff]
    %v145 = vld [vmem:[#allocation2] sm:$0xff]
    %v147 = vsel %vm125, %v141, 0
    %149 = vmatprep.subr.mxu0 0.0
    %150 = vmatpush1.msra.mxu0 0.0
    %151 = vmatprep.subr.mxu0 0.0
    %152 = vmatpush1.msra.mxu0 0.0
    %153 = vmatprep.subr.mxu0 0.0
    %154 = vmatpush1.msra.mxu0 0.0
    %155 = vmatprep.subr.mxu0 0.0
    %156 = vmatpush1.msra.mxu0 0.0
    %157 = vmatprep.subr.mxu0 0.0
    %158 = vmatpush1.msra.mxu0 0.0
    %159 = vmatprep.subr.mxu0 0.0
    %160 = vmatpush1.msra.mxu0 0.0
    %161 = vmatprep.subr.mxu0 0.0
    %162 = vmatpush1.msra.mxu0 0.0
    %163 = vmatprep.subr.mxu0 0.0
    %164 = vmatpush1.msra.mxu0 0.0
    %165 = vmatprep.subr.mxu0 0.0
    %166 = vmatpush1.msra.mxu0 0.0
    %167 = vmatprep.subr.mxu0 0.0
    %168 = vmatpush1.msra.mxu0 0.0
    %169 = vmatprep.subr.mxu0 0.0
    %170 = vmatpush1.msra.mxu0 0.0
    %171 = vmatprep.subr.mxu0 0.0
    %172 = vmatpush1.msra.mxu0 0.0
    %173 = vmatprep.subr.mxu0 0.0
    %174 = vmatpush1.msra.mxu0 %v43
    %175 = vmatprep.subr.mxu0 0.0
    %176 = vmatpush1.msra.mxu0 %v42
    %177 = vmatprep.subr.mxu0 0.0
    %178 = vmatpush1.msra.mxu0 %v41
    %179 = vmatprep.subr.mxu0 0.0
    %180 = vmatpush1.msra.mxu0 %v40
    %181 = vmatprep.subr.mxu0 0.0
    %182 = vmatpush2.msra.mxu0 0.0
    %183 = vmatprep.subr.mxu0 0.0
    %184 = vmatpush2.msra.mxu0 0.0
    %185 = vmatprep.subr.mxu0 0.0
    %186 = vmatpush2.msra.mxu0 0.0
    %187 = vmatprep.subr.mxu0 0.0
    %188 = vmatpush2.msra.mxu0 0.0
    %189 = vmatprep.subr.mxu0 0.0
    %190 = vmatpush2.msra.mxu0 0.0
    %191 = vmatprep.subr.mxu0 0.0
    %192 = vmatpush2.msra.mxu0 0.0
    %193 = vmatprep.subr.mxu0 0.0
    %194 = vmatpush2.msra.mxu0 0.0
    %195 = vmatprep.subr.mxu0 0.0
    %196 = vmatpush2.msra.mxu0 0.0
    %197 = vmatprep.subr.mxu0 0.0
    %198 = vmatpush2.msra.mxu0 0.0
    %199 = vmatprep.subr.mxu0 0.0
    %200 = vmatpush2.msra.mxu0 0.0
    %201 = vmatprep.subr.mxu0 0.0
    %202 = vmatpush2.msra.mxu0 0.0
    %203 = vmatprep.subr.mxu0 0.0
    %204 = vmatpush2.msra.mxu0 0.0
    %205 = vmatprep.subr.mxu0 0.0
    %206 = vmatpush2.msra.mxu0 0.0
    %207 = vmatprep.subr.mxu0 0.0
    %208 = vmatpush2.msra.mxu0 0.0
    %209 = vmatprep.subr.mxu0 0.0
    %210 = vmatpush2.msra.mxu0 0.0
    %211 = vmatprep.subr.mxu0 0.0
    %212 = vmatpush2.msra.mxu0 0.0
    %213 = vmatprep.mubr.f32.mxu0 0.0
    %214 = vmatmul.mubr.f32.gmra.mxu0 %v147
    %v215 = vpop.f32.mrf.mxu0
    %v216 = vadd.f32 0.0, %v215
    %v217 = vpop.f32.mrf.mxu0
    %218 = vdwg.mxu0
    %v219 = vadd.f32 %v145, %v216
    %v220 = vxor.u32 %v219, 2147483648
    %v221 = vmul.f32 %v220, 1.442695
    %v222 = vpow.pop %v221
    %v223 = vadd.f32 %v222, 1.0
    %v224 = vrcp.pop %v223
    %v225 = vmul.f32 1.0, %v224
    %v226 = vtanh.pop %v219
    %228 = vrot.lane.b32.xlu0 %v143, 32
    %v229 = vpop.permute.xlu0 %228
    %v231 = vmul.f32 %v225, %v229
    %233 = vrot.lane.b32.xlu0 %v226, 64
    %v234 = vpop.permute.xlu0 %233
    %v236 = vmul.f32 %v225, %v234
    %238 = vrot.lane.b32.xlu0 %v236, 32
    %v239 = vpop.permute.xlu0 %238
    %v241 = vadd.f32 %v231, %v239
    %v242 = vtanh.pop %v241
    %244 = vrot.lane.b32.xlu0 %v242, 64
    %v245 = vpop.permute.xlu0 %244
    %v247 = vmul.f32 %v225, %v245
    %v248 = vld [vmem:[#allocation2 + $0x8] sm:$0xff]
    %250 = vrot.lane.b32.xlu0 %v247, 32
    %v251 = vpop.permute.xlu0 %250
    %v252 = vsel %vm125, %v251, 0
    %254 = vmatprep.subr.mxu0 0.0
    %255 = vmatpush1.msra.mxu0 0.0
    %256 = vmatprep.subr.mxu0 0.0
    %257 = vmatpush1.msra.mxu0 0.0
    %258 = vmatprep.subr.mxu0 0.0
    %259 = vmatpush1.msra.mxu0 0.0
    %260 = vmatprep.subr.mxu0 0.0
    %261 = vmatpush1.msra.mxu0 0.0
    %262 = vmatprep.subr.mxu0 0.0
    %263 = vmatpush1.msra.mxu0 0.0
    %264 = vmatprep.subr.mxu0 0.0
    %265 = vmatpush1.msra.mxu0 0.0
    %266 = vmatprep.subr.mxu0 0.0
    %267 = vmatpush1.msra.mxu0 0.0
    %268 = vmatprep.subr.mxu0 0.0
    %269 = vmatpush1.msra.mxu0 0.0
    %270 = vmatprep.subr.mxu0 0.0
    %271 = vmatpush1.msra.mxu0 0.0
    %272 = vmatprep.subr.mxu0 0.0
    %273 = vmatpush1.msra.mxu0 0.0
    %274 = vmatprep.subr.mxu0 0.0
    %275 = vmatpush1.msra.mxu0 0.0
    %276 = vmatprep.subr.mxu0 0.0
    %277 = vmatpush1.msra.mxu0 0.0
    %278 = vmatprep.subr.mxu0 0.0
    %279 = vmatpush1.msra.mxu0 %v43
    %280 = vmatprep.subr.mxu0 0.0
    %281 = vmatpush1.msra.mxu0 %v42
    %282 = vmatprep.subr.mxu0 0.0
    %283 = vmatpush1.msra.mxu0 %v41
    %284 = vmatprep.subr.mxu0 0.0
    %285 = vmatpush1.msra.mxu0 %v40
    %286 = vmatprep.subr.mxu0 0.0
    %287 = vmatpush2.msra.mxu0 0.0
    %288 = vmatprep.subr.mxu0 0.0
    %289 = vmatpush2.msra.mxu0 0.0
    %290 = vmatprep.subr.mxu0 0.0
    %291 = vmatpush2.msra.mxu0 0.0
    %292 = vmatprep.subr.mxu0 0.0
    %293 = vmatpush2.msra.mxu0 0.0
    %294 = vmatprep.subr.mxu0 0.0
    %295 = vmatpush2.msra.mxu0 0.0
    %296 = vmatprep.subr.mxu0 0.0
    %297 = vmatpush2.msra.mxu0 0.0
    %298 = vmatprep.subr.mxu0 0.0
    %299 = vmatpush2.msra.mxu0 0.0
    %300 = vmatprep.subr.mxu0 0.0
    %301 = vmatpush2.msra.mxu0 0.0
    %302 = vmatprep.subr.mxu0 0.0
    %303 = vmatpush2.msra.mxu0 0.0
    %304 = vmatprep.subr.mxu0 0.0
    %305 = vmatpush2.msra.mxu0 0.0
    %306 = vmatprep.subr.mxu0 0.0
    %307 = vmatpush2.msra.mxu0 0.0
    %308 = vmatprep.subr.mxu0 0.0
    %309 = vmatpush2.msra.mxu0 0.0
    %310 = vmatprep.subr.mxu0 0.0
    %311 = vmatpush2.msra.mxu0 0.0
    %312 = vmatprep.subr.mxu0 0.0
    %313 = vmatpush2.msra.mxu0 0.0
    %314 = vmatprep.subr.mxu0 0.0
    %315 = vmatpush2.msra.mxu0 0.0
    %316 = vmatprep.subr.mxu0 0.0
    %317 = vmatpush2.msra.mxu0 0.0
    %318 = vmatprep.mubr.f32.mxu0 0.0
    %319 = vmatmul.mubr.f32.gmra.mxu0 %v252
    %v320 = vpop.f32.mrf.mxu0
    %v321 = vadd.f32 0.0, %v320
    %v322 = vpop.f32.mrf.mxu0
    %323 = vdwg.mxu0
    %v324 = vadd.f32 %v248, %v321
    %v325 = vxor.u32 %v324, 2147483648
    %v326 = vmul.f32 %v325, 1.442695
    %v327 = vpow.pop %v326
    %v328 = vadd.f32 %v327, 1.0
    %v329 = vrcp.pop %v328
    %v330 = vmul.f32 1.0, %v329
    %v331 = vtanh.pop %v324
    %v332 = vmul.f32 %v330, %v241
    %334 = vrot.lane.b32.xlu0 %v331, 64
    %v335 = vpop.permute.xlu0 %334
    %v337 = vmul.f32 %v330, %v335
    %339 = vrot.lane.b32.xlu0 %v337, 32
    %v340 = vpop.permute.xlu0 %339
    %v342 = vadd.f32 %v332, %v340
    %v343 = vtanh.pop %v342
    %345 = vrot.lane.b32.xlu0 %v343, 64
    %v346 = vpop.permute.xlu0 %345
    %v348 = vmul.f32 %v330, %v346
    %v349 = vlaneseq
    %v350 = vshrl.u32 %v349, 7
    %v351 = vsub.s32 0, %v350
    %v352 = vrot.slane %v52, %v351
    %353 = vmatprep.subr.mxu0 0.0
    %354 = vmatpush1.msra.mxu0 0.0
    %355 = vmatprep.subr.mxu0 0.0
    %356 = vmatpush1.msra.mxu0 0.0
    %357 = vmatprep.subr.mxu0 0.0
    %358 = vmatpush1.msra.mxu0 0.0
    %359 = vmatprep.subr.mxu0 0.0
    %360 = vmatpush1.msra.mxu0 0.0
    %361 = vmatprep.subr.mxu0 0.0
    %362 = vmatpush1.msra.mxu0 0.0
    %363 = vmatprep.subr.mxu0 0.0
    %364 = vmatpush1.msra.mxu0 0.0
    %365 = vmatprep.subr.mxu0 0.0
    %366 = vmatpush1.msra.mxu0 0.0
    %367 = vmatprep.subr.mxu0 0.0
    %368 = vmatpush1.msra.mxu0 0.0
    %369 = vmatprep.subr.mxu0 0.0
    %370 = vmatpush1.msra.mxu0 0.0
    %371 = vmatprep.subr.mxu0 0.0
    %372 = vmatpush1.msra.mxu0 0.0
    %373 = vmatprep.subr.mxu0 0.0
    %374 = vmatpush1.msra.mxu0 0.0
    %375 = vmatprep.subr.mxu0 0.0
    %376 = vmatpush1.msra.mxu0 0.0
    %377 = vmatprep.subr.mxu0 0.0
    %378 = vmatpush1.msra.mxu0 %v47
    %379 = vmatprep.subr.mxu0 0.0
    %380 = vmatpush1.msra.mxu0 %v46
    %381 = vmatprep.subr.mxu0 0.0
    %382 = vmatpush1.msra.mxu0 %v45
    %383 = vmatprep.subr.mxu0 0.0
    %384 = vmatpush1.msra.mxu0 %v44
    %385 = vmatprep.subr.mxu0 0.0
    %386 = vmatpush2.msra.mxu0 0.0
    %387 = vmatprep.subr.mxu0 0.0
    %388 = vmatpush2.msra.mxu0 0.0
    %389 = vmatprep.subr.mxu0 0.0
    %390 = vmatpush2.msra.mxu0 0.0
    %391 = vmatprep.subr.mxu0 0.0
    %392 = vmatpush2.msra.mxu0 0.0
    %393 = vmatprep.subr.mxu0 0.0
    %394 = vmatpush2.msra.mxu0 0.0
    %395 = vmatprep.subr.mxu0 0.0
    %396 = vmatpush2.msra.mxu0 0.0
    %397 = vmatprep.subr.mxu0 0.0
    %398 = vmatpush2.msra.mxu0 0.0
    %399 = vmatprep.subr.mxu0 0.0
    %400 = vmatpush2.msra.mxu0 0.0
    %401 = vmatprep.subr.mxu0 0.0
    %402 = vmatpush2.msra.mxu0 0.0
    %403 = vmatprep.subr.mxu0 0.0
    %404 = vmatpush2.msra.mxu0 0.0
    %405 = vmatprep.subr.mxu0 0.0
    %406 = vmatpush2.msra.mxu0 0.0
    %407 = vmatprep.subr.mxu0 0.0
    %408 = vmatpush2.msra.mxu0 0.0
    %409 = vmatprep.subr.mxu0 0.0
    %410 = vmatpush2.msra.mxu0 0.0
    %411 = vmatprep.subr.mxu0 0.0
    %412 = vmatpush2.msra.mxu0 0.0
    %413 = vmatprep.subr.mxu0 0.0
    %414 = vmatpush2.msra.mxu0 0.0
    %415 = vmatprep.subr.mxu0 0.0
    %416 = vmatpush2.msra.mxu0 0.0
    %417 = vmatprep.mubr.f32.mxu0 0.0
    %418 = vmatmul.mubr.f32.gmra.mxu0 %v252
    %v419 = vpop.f32.mrf.mxu0
    %v420 = vadd.f32 %v352, %v419
    %v421 = vpop.f32.mrf.mxu0
    %422 = vdwg.mxu0
    %v424 = vsel %vm125, %v142, 0
    %426 = vmatprep.subr.mxu0 0.0
    %427 = vmatpush1.msra.mxu0 0.0
    %428 = vmatprep.subr.mxu0 0.0
    %429 = vmatpush1.msra.mxu0 0.0
    %430 = vmatprep.subr.mxu0 0.0
    %431 = vmatpush1.msra.mxu0 0.0
    %432 = vmatprep.subr.mxu0 0.0
    %433 = vmatpush1.msra.mxu0 0.0
    %434 = vmatprep.subr.mxu0 0.0
    %435 = vmatpush1.msra.mxu0 0.0
    %436 = vmatprep.subr.mxu0 0.0
    %437 = vmatpush1.msra.mxu0 0.0
    %438 = vmatprep.subr.mxu0 0.0
    %439 = vmatpush1.msra.mxu0 0.0
    %440 = vmatprep.subr.mxu0 0.0
    %441 = vmatpush1.msra.mxu0 0.0
    %442 = vmatprep.subr.mxu0 0.0
    %443 = vmatpush1.msra.mxu0 0.0
    %444 = vmatprep.subr.mxu0 0.0
    %445 = vmatpush1.msra.mxu0 0.0
    %446 = vmatprep.subr.mxu0 0.0
    %447 = vmatpush1.msra.mxu0 0.0
    %448 = vmatprep.subr.mxu0 0.0
    %449 = vmatpush1.msra.mxu0 0.0
    %450 = vmatprep.subr.mxu0 0.0
    %451 = vmatpush1.msra.mxu0 %v51
    %452 = vmatprep.subr.mxu0 0.0
    %453 = vmatpush1.msra.mxu0 %v50
    %454 = vmatprep.subr.mxu0 0.0
    %455 = vmatpush1.msra.mxu0 %v49
    %456 = vmatprep.subr.mxu0 0.0
    %457 = vmatpush1.msra.mxu0 %v48
    %458 = vmatprep.subr.mxu0 0.0
    %459 = vmatpush2.msra.mxu0 0.0
    %460 = vmatprep.subr.mxu0 0.0
    %461 = vmatpush2.msra.mxu0 0.0
    %462 = vmatprep.subr.mxu0 0.0
    %463 = vmatpush2.msra.mxu0 0.0
    %464 = vmatprep.subr.mxu0 0.0
    %465 = vmatpush2.msra.mxu0 0.0
    %466 = vmatprep.subr.mxu0 0.0
    %467 = vmatpush2.msra.mxu0 0.0
    %468 = vmatprep.subr.mxu0 0.0
    %469 = vmatpush2.msra.mxu0 0.0
    %470 = vmatprep.subr.mxu0 0.0
    %471 = vmatpush2.msra.mxu0 0.0
    %472 = vmatprep.subr.mxu0 0.0
    %473 = vmatpush2.msra.mxu0 0.0
    %474 = vmatprep.subr.mxu0 0.0
    %475 = vmatpush2.msra.mxu0 0.0
    %476 = vmatprep.subr.mxu0 0.0
    %477 = vmatpush2.msra.mxu0 0.0
    %478 = vmatprep.subr.mxu0 0.0
    %479 = vmatpush2.msra.mxu0 0.0
    %480 = vmatprep.subr.mxu0 0.0
    %481 = vmatpush2.msra.mxu0 0.0
    %482 = vmatprep.subr.mxu0 0.0
    %483 = vmatpush2.msra.mxu0 0.0
    %484 = vmatprep.subr.mxu0 0.0
    %485 = vmatpush2.msra.mxu0 0.0
    %486 = vmatprep.subr.mxu0 0.0
    %487 = vmatpush2.msra.mxu0 0.0
    %488 = vmatprep.subr.mxu0 0.0
    %489 = vmatpush2.msra.mxu0 0.0
    %490 = vmatprep.mubr.f32.mxu0 0.0
    %491 = vmatmul.mubr.f32.gmra.mxu0 %v424
    %v492 = vpop.f32.mrf.mxu0
    %v493 = vadd.f32 0.0, %v492
    %v494 = vpop.f32.mrf.mxu0
    %495 = vdwg.mxu0
    %v496 = vadd.f32 %v420, %v493
    %v497 = vxor.u32 %v496, 2147483648
    %v498 = vmul.f32 %v497, 1.442695
    %v499 = vpow.pop %v498
    %v500 = vadd.f32 %v499, 1.0
    %v501 = vrcp.pop %v500
    %v502 = vmul.f32 1.0, %v501
    %v503 = vtanh.pop %v496
    %505 = vrot.lane.b32.xlu0 %v144, 32
    %v506 = vpop.permute.xlu0 %505
    %v508 = vmul.f32 %v502, %v506
    %510 = vrot.lane.b32.xlu0 %v503, 64
    %v511 = vpop.permute.xlu0 %510
    %v513 = vmul.f32 %v502, %v511
    %515 = vrot.lane.b32.xlu0 %v513, 32
    %v516 = vpop.permute.xlu0 %515
    %v518 = vadd.f32 %v508, %v516
    %v519 = vtanh.pop %v518
    %521 = vrot.lane.b32.xlu0 %v519, 64
    %v522 = vpop.permute.xlu0 %521
    %v524 = vmul.f32 %v502, %v522
    %526 = vrot.lane.b32.xlu0 %v524, 32
    %v527 = vpop.permute.xlu0 %526
    %529 = vst.msk [vmem:[#allocation3] sm:$0xff] %vm125, %v527
    %v530 = vld [vmem:[#allocation2 + $0x10] sm:$0xff]
    %532 = vrot.lane.b32.xlu0 %v348, 32
    %v533 = vpop.permute.xlu0 %532
    %v534 = vsel %vm125, %v533, 0
    %536 = vmatprep.subr.mxu0 0.0
    %537 = vmatpush1.msra.mxu0 0.0
    %538 = vmatprep.subr.mxu0 0.0
    %539 = vmatpush1.msra.mxu0 0.0
    %540 = vmatprep.subr.mxu0 0.0
    %541 = vmatpush1.msra.mxu0 0.0
    %542 = vmatprep.subr.mxu0 0.0
    %543 = vmatpush1.msra.mxu0 0.0
    %544 = vmatprep.subr.mxu0 0.0
    %545 = vmatpush1.msra.mxu0 0.0
    %546 = vmatprep.subr.mxu0 0.0
    %547 = vmatpush1.msra.mxu0 0.0
    %548 = vmatprep.subr.mxu0 0.0
    %549 = vmatpush1.msra.mxu0 0.0
    %550 = vmatprep.subr.mxu0 0.0
    %551 = vmatpush1.msra.mxu0 0.0
    %552 = vmatprep.subr.mxu0 0.0
    %553 = vmatpush1.msra.mxu0 0.0
    %554 = vmatprep.subr.mxu0 0.0
    %555 = vmatpush1.msra.mxu0 0.0
    %556 = vmatprep.subr.mxu0 0.0
    %557 = vmatpush1.msra.mxu0 0.0
    %558 = vmatprep.subr.mxu0 0.0
    %559 = vmatpush1.msra.mxu0 0.0
    %560 = vmatprep.subr.mxu0 0.0
    %561 = vmatpush1.msra.mxu0 %v43
    %562 = vmatprep.subr.mxu0 0.0
    %563 = vmatpush1.msra.mxu0 %v42
    %564 = vmatprep.subr.mxu0 0.0
    %565 = vmatpush1.msra.mxu0 %v41
    %566 = vmatprep.subr.mxu0 0.0
    %567 = vmatpush1.msra.mxu0 %v40
    %568 = vmatprep.subr.mxu0 0.0
    %569 = vmatpush2.msra.mxu0 0.0
    %570 = vmatprep.subr.mxu0 0.0
    %571 = vmatpush2.msra.mxu0 0.0
    %572 = vmatprep.subr.mxu0 0.0
    %573 = vmatpush2.msra.mxu0 0.0
    %574 = vmatprep.subr.mxu0 0.0
    %575 = vmatpush2.msra.mxu0 0.0
    %576 = vmatprep.subr.mxu0 0.0
    %577 = vmatpush2.msra.mxu0 0.0
    %578 = vmatprep.subr.mxu0 0.0
    %579 = vmatpush2.msra.mxu0 0.0
    %580 = vmatprep.subr.mxu0 0.0
    %581 = vmatpush2.msra.mxu0 0.0
    %582 = vmatprep.subr.mxu0 0.0
    %583 = vmatpush2.msra.mxu0 0.0
    %584 = vmatprep.subr.mxu0 0.0
    %585 = vmatpush2.msra.mxu0 0.0
    %586 = vmatprep.subr.mxu0 0.0
    %587 = vmatpush2.msra.mxu0 0.0
    %588 = vmatprep.subr.mxu0 0.0
    %589 = vmatpush2.msra.mxu0 0.0
    %590 = vmatprep.subr.mxu0 0.0
    %591 = vmatpush2.msra.mxu0 0.0
    %592 = vmatprep.subr.mxu0 0.0
    %593 = vmatpush2.msra.mxu0 0.0
    %594 = vmatprep.subr.mxu0 0.0
    %595 = vmatpush2.msra.mxu0 0.0
    %596 = vmatprep.subr.mxu0 0.0
    %597 = vmatpush2.msra.mxu0 0.0
    %598 = vmatprep.subr.mxu0 0.0
    %599 = vmatpush2.msra.mxu0 0.0
    %600 = vmatprep.mubr.f32.mxu0 0.0
    %601 = vmatmul.mubr.f32.gmra.mxu0 %v534
    %v602 = vpop.f32.mrf.mxu0
    %v603 = vadd.f32 0.0, %v602
    %v604 = vpop.f32.mrf.mxu0
    %605 = vdwg.mxu0
    %v606 = vadd.f32 %v530, %v603
    %v607 = vxor.u32 %v606, 2147483648
    %v608 = vmul.f32 %v607, 1.442695
    %v609 = vpow.pop %v608
    %v610 = vadd.f32 %v609, 1.0
    %v611 = vrcp.pop %v610
    %v612 = vmul.f32 1.0, %v611
    %v613 = vtanh.pop %v606
    %v614 = vmul.f32 %v612, %v342
    %616 = vrot.lane.b32.xlu0 %v613, 64
    %v617 = vpop.permute.xlu0 %616
    %v619 = vmul.f32 %v612, %v617
    %621 = vrot.lane.b32.xlu0 %v619, 32
    %v622 = vpop.permute.xlu0 %621
    %v624 = vadd.f32 %v614, %v622
    %v625 = vtanh.pop %v624
    %627 = vrot.lane.b32.xlu0 %v625, 64
    %v628 = vpop.permute.xlu0 %627
    %v630 = vmul.f32 %v612, %v628
    %631 = vmatprep.subr.mxu0 0.0
    %632 = vmatpush1.msra.mxu0 0.0
    %633 = vmatprep.subr.mxu0 0.0
    %634 = vmatpush1.msra.mxu0 0.0
    %635 = vmatprep.subr.mxu0 0.0
    %636 = vmatpush1.msra.mxu0 0.0
    %637 = vmatprep.subr.mxu0 0.0
    %638 = vmatpush1.msra.mxu0 0.0
    %639 = vmatprep.subr.mxu0 0.0
    %640 = vmatpush1.msra.mxu0 0.0
    %641 = vmatprep.subr.mxu0 0.0
    %642 = vmatpush1.msra.mxu0 0.0
    %643 = vmatprep.subr.mxu0 0.0
    %644 = vmatpush1.msra.mxu0 0.0
    %645 = vmatprep.subr.mxu0 0.0
    %646 = vmatpush1.msra.mxu0 0.0
    %647 = vmatprep.subr.mxu0 0.0
    %648 = vmatpush1.msra.mxu0 0.0
    %649 = vmatprep.subr.mxu0 0.0
    %650 = vmatpush1.msra.mxu0 0.0
    %651 = vmatprep.subr.mxu0 0.0
    %652 = vmatpush1.msra.mxu0 0.0
    %653 = vmatprep.subr.mxu0 0.0
    %654 = vmatpush1.msra.mxu0 0.0
    %655 = vmatprep.subr.mxu0 0.0
    %656 = vmatpush1.msra.mxu0 %v47
    %657 = vmatprep.subr.mxu0 0.0
    %658 = vmatpush1.msra.mxu0 %v46
    %659 = vmatprep.subr.mxu0 0.0
    %660 = vmatpush1.msra.mxu0 %v45
    %661 = vmatprep.subr.mxu0 0.0
    %662 = vmatpush1.msra.mxu0 %v44
    %663 = vmatprep.subr.mxu0 0.0
    %664 = vmatpush2.msra.mxu0 0.0
    %665 = vmatprep.subr.mxu0 0.0
    %666 = vmatpush2.msra.mxu0 0.0
    %667 = vmatprep.subr.mxu0 0.0
    %668 = vmatpush2.msra.mxu0 0.0
    %669 = vmatprep.subr.mxu0 0.0
    %670 = vmatpush2.msra.mxu0 0.0
    %671 = vmatprep.subr.mxu0 0.0
    %672 = vmatpush2.msra.mxu0 0.0
    %673 = vmatprep.subr.mxu0 0.0
    %674 = vmatpush2.msra.mxu0 0.0
    %675 = vmatprep.subr.mxu0 0.0
    %676 = vmatpush2.msra.mxu0 0.0
    %677 = vmatprep.subr.mxu0 0.0
    %678 = vmatpush2.msra.mxu0 0.0
    %679 = vmatprep.subr.mxu0 0.0
    %680 = vmatpush2.msra.mxu0 0.0
    %681 = vmatprep.subr.mxu0 0.0
    %682 = vmatpush2.msra.mxu0 0.0
    %683 = vmatprep.subr.mxu0 0.0
    %684 = vmatpush2.msra.mxu0 0.0
    %685 = vmatprep.subr.mxu0 0.0
    %686 = vmatpush2.msra.mxu0 0.0
    %687 = vmatprep.subr.mxu0 0.0
    %688 = vmatpush2.msra.mxu0 0.0
    %689 = vmatprep.subr.mxu0 0.0
    %690 = vmatpush2.msra.mxu0 0.0
    %691 = vmatprep.subr.mxu0 0.0
    %692 = vmatpush2.msra.mxu0 0.0
    %693 = vmatprep.subr.mxu0 0.0
    %694 = vmatpush2.msra.mxu0 0.0
    %695 = vmatprep.mubr.f32.mxu0 0.0
    %696 = vmatmul.mubr.f32.gmra.mxu0 %v534
    %v697 = vpop.f32.mrf.mxu0
    %v698 = vadd.f32 %v352, %v697
    %v699 = vpop.f32.mrf.mxu0
    %700 = vdwg.mxu0
    %v701 = vsel %vm125, %v527, 0
    %703 = vmatprep.subr.mxu0 0.0
    %704 = vmatpush1.msra.mxu0 0.0
    %705 = vmatprep.subr.mxu0 0.0
    %706 = vmatpush1.msra.mxu0 0.0
    %707 = vmatprep.subr.mxu0 0.0
    %708 = vmatpush1.msra.mxu0 0.0
    %709 = vmatprep.subr.mxu0 0.0
    %710 = vmatpush1.msra.mxu0 0.0
    %711 = vmatprep.subr.mxu0 0.0
    %712 = vmatpush1.msra.mxu0 0.0
    %713 = vmatprep.subr.mxu0 0.0
    %714 = vmatpush1.msra.mxu0 0.0
    %715 = vmatprep.subr.mxu0 0.0
    %716 = vmatpush1.msra.mxu0 0.0
    %717 = vmatprep.subr.mxu0 0.0
    %718 = vmatpush1.msra.mxu0 0.0
    %719 = vmatprep.subr.mxu0 0.0
    %720 = vmatpush1.msra.mxu0 0.0
    %721 = vmatprep.subr.mxu0 0.0
    %722 = vmatpush1.msra.mxu0 0.0
    %723 = vmatprep.subr.mxu0 0.0
    %724 = vmatpush1.msra.mxu0 0.0
    %725 = vmatprep.subr.mxu0 0.0
    %726 = vmatpush1.msra.mxu0 0.0
    %727 = vmatprep.subr.mxu0 0.0
    %728 = vmatpush1.msra.mxu0 %v51
    %729 = vmatprep.subr.mxu0 0.0
    %730 = vmatpush1.msra.mxu0 %v50
    %731 = vmatprep.subr.mxu0 0.0
    %732 = vmatpush1.msra.mxu0 %v49
    %733 = vmatprep.subr.mxu0 0.0
    %734 = vmatpush1.msra.mxu0 %v48
    %735 = vmatprep.subr.mxu0 0.0
    %736 = vmatpush2.msra.mxu0 0.0
    %737 = vmatprep.subr.mxu0 0.0
    %738 = vmatpush2.msra.mxu0 0.0
    %739 = vmatprep.subr.mxu0 0.0
    %740 = vmatpush2.msra.mxu0 0.0
    %741 = vmatprep.subr.mxu0 0.0
    %742 = vmatpush2.msra.mxu0 0.0
    %743 = vmatprep.subr.mxu0 0.0
    %744 = vmatpush2.msra.mxu0 0.0
    %745 = vmatprep.subr.mxu0 0.0
    %746 = vmatpush2.msra.mxu0 0.0
    %747 = vmatprep.subr.mxu0 0.0
    %748 = vmatpush2.msra.mxu0 0.0
    %749 = vmatprep.subr.mxu0 0.0
    %750 = vmatpush2.msra.mxu0 0.0
    %751 = vmatprep.subr.mxu0 0.0
    %752 = vmatpush2.msra.mxu0 0.0
    %753 = vmatprep.subr.mxu0 0.0
    %754 = vmatpush2.msra.mxu0 0.0
    %755 = vmatprep.subr.mxu0 0.0
    %756 = vmatpush2.msra.mxu0 0.0
    %757 = vmatprep.subr.mxu0 0.0
    %758 = vmatpush2.msra.mxu0 0.0
    %759 = vmatprep.subr.mxu0 0.0
    %760 = vmatpush2.msra.mxu0 0.0
    %761 = vmatprep.subr.mxu0 0.0
    %762 = vmatpush2.msra.mxu0 0.0
    %763 = vmatprep.subr.mxu0 0.0
    %764 = vmatpush2.msra.mxu0 0.0
    %765 = vmatprep.subr.mxu0 0.0
    %766 = vmatpush2.msra.mxu0 0.0
    %767 = vmatprep.mubr.f32.mxu0 0.0
    %768 = vmatmul.mubr.f32.gmra.mxu0 %v701
    %v769 = vpop.f32.mrf.mxu0
    %v770 = vadd.f32 0.0, %v769
    %v771 = vpop.f32.mrf.mxu0
    %772 = vdwg.mxu0
    %v773 = vadd.f32 %v698, %v770
    %v774 = vxor.u32 %v773, 2147483648
    %v775 = vmul.f32 %v774, 1.442695
    %v776 = vpow.pop %v775
    %v777 = vadd.f32 %v776, 1.0
    %v778 = vrcp.pop %v777
    %v779 = vmul.f32 1.0, %v778
    %v780 = vtanh.pop %v773
    %v781 = vmul.f32 %v779, %v518
    %783 = vrot.lane.b32.xlu0 %v780, 64
    %v784 = vpop.permute.xlu0 %783
    %v786 = vmul.f32 %v779, %v784
    %788 = vrot.lane.b32.xlu0 %v786, 32
    %v789 = vpop.permute.xlu0 %788
    %v791 = vadd.f32 %v781, %v789
    %v792 = vtanh.pop %v791
    %794 = vrot.lane.b32.xlu0 %v792, 64
    %v795 = vpop.permute.xlu0 %794
    %v797 = vmul.f32 %v779, %v795
    %799 = vrot.lane.b32.xlu0 %v797, 32
    %v800 = vpop.permute.xlu0 %799
    %802 = vst.msk [vmem:[#allocation3 + $0x8] sm:$0xff] %vm125, %v800
    %v803 = vld [vmem:[#allocation2 + $0x18] sm:$0xff]
    %805 = vrot.lane.b32.xlu0 %v630, 32
    %v806 = vpop.permute.xlu0 %805
    %v807 = vsel %vm125, %v806, 0
    %809 = vmatprep.subr.mxu0 0.0
    %810 = vmatpush1.msra.mxu0 0.0
    %811 = vmatprep.subr.mxu0 0.0
    %812 = vmatpush1.msra.mxu0 0.0
    %813 = vmatprep.subr.mxu0 0.0
    %814 = vmatpush1.msra.mxu0 0.0
    %815 = vmatprep.subr.mxu0 0.0
    %816 = vmatpush1.msra.mxu0 0.0
    %817 = vmatprep.subr.mxu0 0.0
    %818 = vmatpush1.msra.mxu0 0.0
    %819 = vmatprep.subr.mxu0 0.0
    %820 = vmatpush1.msra.mxu0 0.0
    %821 = vmatprep.subr.mxu0 0.0
    %822 = vmatpush1.msra.mxu0 0.0
    %823 = vmatprep.subr.mxu0 0.0
    %824 = vmatpush1.msra.mxu0 0.0
    %825 = vmatprep.subr.mxu0 0.0
    %826 = vmatpush1.msra.mxu0 0.0
    %827 = vmatprep.subr.mxu0 0.0
    %828 = vmatpush1.msra.mxu0 0.0
    %829 = vmatprep.subr.mxu0 0.0
    %830 = vmatpush1.msra.mxu0 0.0
    %831 = vmatprep.subr.mxu0 0.0
    %832 = vmatpush1.msra.mxu0 0.0
    %833 = vmatprep.subr.mxu0 0.0
    %834 = vmatpush1.msra.mxu0 %v43
    %835 = vmatprep.subr.mxu0 0.0
    %836 = vmatpush1.msra.mxu0 %v42
    %837 = vmatprep.subr.mxu0 0.0
    %838 = vmatpush1.msra.mxu0 %v41
    %839 = vmatprep.subr.mxu0 0.0
    %840 = vmatpush1.msra.mxu0 %v40
    %841 = vmatprep.subr.mxu0 0.0
    %842 = vmatpush2.msra.mxu0 0.0
    %843 = vmatprep.subr.mxu0 0.0
    %844 = vmatpush2.msra.mxu0 0.0
    %845 = vmatprep.subr.mxu0 0.0
    %846 = vmatpush2.msra.mxu0 0.0
    %847 = vmatprep.subr.mxu0 0.0
    %848 = vmatpush2.msra.mxu0 0.0
    %849 = vmatprep.subr.mxu0 0.0
    %850 = vmatpush2.msra.mxu0 0.0
    %851 = vmatprep.subr.mxu0 0.0
    %852 = vmatpush2.msra.mxu0 0.0
    %853 = vmatprep.subr.mxu0 0.0
    %854 = vmatpush2.msra.mxu0 0.0
    %855 = vmatprep.subr.mxu0 0.0
    %856 = vmatpush2.msra.mxu0 0.0
    %857 = vmatprep.subr.mxu0 0.0
    %858 = vmatpush2.msra.mxu0 0.0
    %859 = vmatprep.subr.mxu0 0.0
    %860 = vmatpush2.msra.mxu0 0.0
    %861 = vmatprep.subr.mxu0 0.0
    %862 = vmatpush2.msra.mxu0 0.0
    %863 = vmatprep.subr.mxu0 0.0
    %864 = vmatpush2.msra.mxu0 0.0
    %865 = vmatprep.subr.mxu0 0.0
    %866 = vmatpush2.msra.mxu0 0.0
    %867 = vmatprep.subr.mxu0 0.0
    %868 = vmatpush2.msra.mxu0 0.0
    %869 = vmatprep.subr.mxu0 0.0
    %870 = vmatpush2.msra.mxu0 0.0
    %871 = vmatprep.subr.mxu0 0.0
    %872 = vmatpush2.msra.mxu0 0.0
    %873 = vmatprep.mubr.f32.mxu0 0.0
    %874 = vmatmul.mubr.f32.gmra.mxu0 %v807
    %v875 = vpop.f32.mrf.mxu0
    %v876 = vadd.f32 0.0, %v875
    %v877 = vpop.f32.mrf.mxu0
    %878 = vdwg.mxu0
    %v879 = vadd.f32 %v803, %v876
    %v880 = vxor.u32 %v879, 2147483648
    %v881 = vmul.f32 %v880, 1.442695
    %v882 = vpow.pop %v881
    %v883 = vadd.f32 %v882, 1.0
    %v884 = vrcp.pop %v883
    %v885 = vmul.f32 1.0, %v884
    %v886 = vtanh.pop %v879
    %v887 = vmul.f32 %v885, %v624
    %889 = vrot.lane.b32.xlu0 %v886, 64
    %v890 = vpop.permute.xlu0 %889
    %v892 = vmul.f32 %v885, %v890
    %894 = vrot.lane.b32.xlu0 %v892, 32
    %v895 = vpop.permute.xlu0 %894
    %v897 = vadd.f32 %v887, %v895
    %v898 = vtanh.pop %v897
    %900 = vrot.lane.b32.xlu0 %v898, 64
    %v901 = vpop.permute.xlu0 %900
    %v903 = vmul.f32 %v885, %v901
    %904 = vmatprep.subr.mxu0 0.0
    %905 = vmatpush1.msra.mxu0 0.0
    %906 = vmatprep.subr.mxu0 0.0
    %907 = vmatpush1.msra.mxu0 0.0
    %908 = vmatprep.subr.mxu0 0.0
    %909 = vmatpush1.msra.mxu0 0.0
    %910 = vmatprep.subr.mxu0 0.0
    %911 = vmatpush1.msra.mxu0 0.0
    %912 = vmatprep.subr.mxu0 0.0
    %913 = vmatpush1.msra.mxu0 0.0
    %914 = vmatprep.subr.mxu0 0.0
    %915 = vmatpush1.msra.mxu0 0.0
    %916 = vmatprep.subr.mxu0 0.0
    %917 = vmatpush1.msra.mxu0 0.0
    %918 = vmatprep.subr.mxu0 0.0
    %919 = vmatpush1.msra.mxu0 0.0
    %920 = vmatprep.subr.mxu0 0.0
    %921 = vmatpush1.msra.mxu0 0.0
    %922 = vmatprep.subr.mxu0 0.0
    %923 = vmatpush1.msra.mxu0 0.0
    %924 = vmatprep.subr.mxu0 0.0
    %925 = vmatpush1.msra.mxu0 0.0
    %926 = vmatprep.subr.mxu0 0.0
    %927 = vmatpush1.msra.mxu0 0.0
    %928 = vmatprep.subr.mxu0 0.0
    %929 = vmatpush1.msra.mxu0 %v47
    %930 = vmatprep.subr.mxu0 0.0
    %931 = vmatpush1.msra.mxu0 %v46
    %932 = vmatprep.subr.mxu0 0.0
    %933 = vmatpush1.msra.mxu0 %v45
    %934 = vmatprep.subr.mxu0 0.0
    %935 = vmatpush1.msra.mxu0 %v44
    %936 = vmatprep.subr.mxu0 0.0
    %937 = vmatpush2.msra.mxu0 0.0
    %938 = vmatprep.subr.mxu0 0.0
    %939 = vmatpush2.msra.mxu0 0.0
    %940 = vmatprep.subr.mxu0 0.0
    %941 = vmatpush2.msra.mxu0 0.0
    %942 = vmatprep.subr.mxu0 0.0
    %943 = vmatpush2.msra.mxu0 0.0
    %944 = vmatprep.subr.mxu0 0.0
    %945 = vmatpush2.msra.mxu0 0.0
    %946 = vmatprep.subr.mxu0 0.0
    %947 = vmatpush2.msra.mxu0 0.0
    %948 = vmatprep.subr.mxu0 0.0
    %949 = vmatpush2.msra.mxu0 0.0
    %950 = vmatprep.subr.mxu0 0.0
    %951 = vmatpush2.msra.mxu0 0.0
    %952 = vmatprep.subr.mxu0 0.0
    %953 = vmatpush2.msra.mxu0 0.0
    %954 = vmatprep.subr.mxu0 0.0
    %955 = vmatpush2.msra.mxu0 0.0
    %956 = vmatprep.subr.mxu0 0.0
    %957 = vmatpush2.msra.mxu0 0.0
    %958 = vmatprep.subr.mxu0 0.0
    %959 = vmatpush2.msra.mxu0 0.0
    %960 = vmatprep.subr.mxu0 0.0
    %961 = vmatpush2.msra.mxu0 0.0
    %962 = vmatprep.subr.mxu0 0.0
    %963 = vmatpush2.msra.mxu0 0.0
    %964 = vmatprep.subr.mxu0 0.0
    %965 = vmatpush2.msra.mxu0 0.0
    %966 = vmatprep.subr.mxu0 0.0
    %967 = vmatpush2.msra.mxu0 0.0
    %968 = vmatprep.mubr.f32.mxu0 0.0
    %969 = vmatmul.mubr.f32.gmra.mxu0 %v807
    %v970 = vpop.f32.mrf.mxu0
    %v971 = vadd.f32 %v352, %v970
    %v972 = vpop.f32.mrf.mxu0
    %973 = vdwg.mxu0
    %v974 = vsel %vm125, %v800, 0
    %976 = vmatprep.subr.mxu0 0.0
    %977 = vmatpush1.msra.mxu0 0.0
    %978 = vmatprep.subr.mxu0 0.0
    %979 = vmatpush1.msra.mxu0 0.0
    %980 = vmatprep.subr.mxu0 0.0
    %981 = vmatpush1.msra.mxu0 0.0
    %982 = vmatprep.subr.mxu0 0.0
    %983 = vmatpush1.msra.mxu0 0.0
    %984 = vmatprep.subr.mxu0 0.0
    %985 = vmatpush1.msra.mxu0 0.0
    %986 = vmatprep.subr.mxu0 0.0
    %987 = vmatpush1.msra.mxu0 0.0
    %988 = vmatprep.subr.mxu0 0.0
    %989 = vmatpush1.msra.mxu0 0.0
    %990 = vmatprep.subr.mxu0 0.0
    %991 = vmatpush1.msra.mxu0 0.0
    %992 = vmatprep.subr.mxu0 0.0
    %993 = vmatpush1.msra.mxu0 0.0
    %994 = vmatprep.subr.mxu0 0.0
    %995 = vmatpush1.msra.mxu0 0.0
    %996 = vmatprep.subr.mxu0 0.0
    %997 = vmatpush1.msra.mxu0 0.0
    %998 = vmatprep.subr.mxu0 0.0
    %999 = vmatpush1.msra.mxu0 0.0
    %1000 = vmatprep.subr.mxu0 0.0
    %1001 = vmatpush1.msra.mxu0 %v51
    %1002 = vmatprep.subr.mxu0 0.0
    %1003 = vmatpush1.msra.mxu0 %v50
    %1004 = vmatprep.subr.mxu0 0.0
    %1005 = vmatpush1.msra.mxu0 %v49
    %1006 = vmatprep.subr.mxu0 0.0
    %1007 = vmatpush1.msra.mxu0 %v48
    %1008 = vmatprep.subr.mxu0 0.0
    %1009 = vmatpush2.msra.mxu0 0.0
    %1010 = vmatprep.subr.mxu0 0.0
    %1011 = vmatpush2.msra.mxu0 0.0
    %1012 = vmatprep.subr.mxu0 0.0
    %1013 = vmatpush2.msra.mxu0 0.0
    %1014 = vmatprep.subr.mxu0 0.0
    %1015 = vmatpush2.msra.mxu0 0.0
    %1016 = vmatprep.subr.mxu0 0.0
    %1017 = vmatpush2.msra.mxu0 0.0
    %1018 = vmatprep.subr.mxu0 0.0
    %1019 = vmatpush2.msra.mxu0 0.0
    %1020 = vmatprep.subr.mxu0 0.0
    %1021 = vmatpush2.msra.mxu0 0.0
    %1022 = vmatprep.subr.mxu0 0.0
    %1023 = vmatpush2.msra.mxu0 0.0
    %1024 = vmatprep.subr.mxu0 0.0
    %1025 = vmatpush2.msra.mxu0 0.0
    %1026 = vmatprep.subr.mxu0 0.0
    %1027 = vmatpush2.msra.mxu0 0.0
    %1028 = vmatprep.subr.mxu0 0.0
    %1029 = vmatpush2.msra.mxu0 0.0
    %1030 = vmatprep.subr.mxu0 0.0
    %1031 = vmatpush2.msra.mxu0 0.0
    %1032 = vmatprep.subr.mxu0 0.0
    %1033 = vmatpush2.msra.mxu0 0.0
    %1034 = vmatprep.subr.mxu0 0.0
    %1035 = vmatpush2.msra.mxu0 0.0
    %1036 = vmatprep.subr.mxu0 0.0
    %1037 = vmatpush2.msra.mxu0 0.0
    %1038 = vmatprep.subr.mxu0 0.0
    %1039 = vmatpush2.msra.mxu0 0.0
    %1040 = vmatprep.mubr.f32.mxu0 0.0
    %1041 = vmatmul.mubr.f32.gmra.mxu0 %v974
    %v1042 = vpop.f32.mrf.mxu0
    %v1043 = vadd.f32 0.0, %v1042
    %v1044 = vpop.f32.mrf.mxu0
    %1045 = vdwg.mxu0
    %v1046 = vadd.f32 %v971, %v1043
    %v1047 = vxor.u32 %v1046, 2147483648
    %v1048 = vmul.f32 %v1047, 1.442695
    %v1049 = vpow.pop %v1048
    %v1050 = vadd.f32 %v1049, 1.0
    %v1051 = vrcp.pop %v1050
    %v1052 = vmul.f32 1.0, %v1051
    %v1053 = vtanh.pop %v1046
    %v1054 = vmul.f32 %v1052, %v791
    %1056 = vrot.lane.b32.xlu0 %v1053, 64
    %v1057 = vpop.permute.xlu0 %1056
    %v1059 = vmul.f32 %v1052, %v1057
    %1061 = vrot.lane.b32.xlu0 %v1059, 32
    %v1062 = vpop.permute.xlu0 %1061
    %v1064 = vadd.f32 %v1054, %v1062
    %v1065 = vtanh.pop %v1064
    %1067 = vrot.lane.b32.xlu0 %v1065, 64
    %v1068 = vpop.permute.xlu0 %1067
    %v1070 = vmul.f32 %v1052, %v1068
    %1072 = vrot.lane.b32.xlu0 %v1070, 32
    %v1073 = vpop.permute.xlu0 %1072
    %1075 = vst.msk [vmem:[#allocation3 + $0x10] sm:$0xff] %vm125, %v1073
    %v1076 = vld [vmem:[#allocation2 + $0x20] sm:$0xff]
    %1078 = vrot.lane.b32.xlu0 %v903, 32
    %v1079 = vpop.permute.xlu0 %1078
    %v1080 = vsel %vm125, %v1079, 0
    %1082 = vmatprep.subr.mxu0 0.0
    %1083 = vmatpush1.msra.mxu0 0.0
    %1084 = vmatprep.subr.mxu0 0.0
    %1085 = vmatpush1.msra.mxu0 0.0
    %1086 = vmatprep.subr.mxu0 0.0
    %1087 = vmatpush1.msra.mxu0 0.0
    %1088 = vmatprep.subr.mxu0 0.0
    %1089 = vmatpush1.msra.mxu0 0.0
    %1090 = vmatprep.subr.mxu0 0.0
    %1091 = vmatpush1.msra.mxu0 0.0
    %1092 = vmatprep.subr.mxu0 0.0
    %1093 = vmatpush1.msra.mxu0 0.0
    %1094 = vmatprep.subr.mxu0 0.0
    %1095 = vmatpush1.msra.mxu0 0.0
    %1096 = vmatprep.subr.mxu0 0.0
    %1097 = vmatpush1.msra.mxu0 0.0
    %1098 = vmatprep.subr.mxu0 0.0
    %1099 = vmatpush1.msra.mxu0 0.0
    %1100 = vmatprep.subr.mxu0 0.0
    %1101 = vmatpush1.msra.mxu0 0.0
    %1102 = vmatprep.subr.mxu0 0.0
    %1103 = vmatpush1.msra.mxu0 0.0
    %1104 = vmatprep.subr.mxu0 0.0
    %1105 = vmatpush1.msra.mxu0 0.0
    %1106 = vmatprep.subr.mxu0 0.0
    %1107 = vmatpush1.msra.mxu0 %v43
    %1108 = vmatprep.subr.mxu0 0.0
    %1109 = vmatpush1.msra.mxu0 %v42
    %1110 = vmatprep.subr.mxu0 0.0
    %1111 = vmatpush1.msra.mxu0 %v41
    %1112 = vmatprep.subr.mxu0 0.0
    %1113 = vmatpush1.msra.mxu0 %v40
    %1114 = vmatprep.subr.mxu0 0.0
    %1115 = vmatpush2.msra.mxu0 0.0
    %1116 = vmatprep.subr.mxu0 0.0
    %1117 = vmatpush2.msra.mxu0 0.0
    %1118 = vmatprep.subr.mxu0 0.0
    %1119 = vmatpush2.msra.mxu0 0.0
    %1120 = vmatprep.subr.mxu0 0.0
    %1121 = vmatpush2.msra.mxu0 0.0
    %1122 = vmatprep.subr.mxu0 0.0
    %1123 = vmatpush2.msra.mxu0 0.0
    %1124 = vmatprep.subr.mxu0 0.0
    %1125 = vmatpush2.msra.mxu0 0.0
    %1126 = vmatprep.subr.mxu0 0.0
    %1127 = vmatpush2.msra.mxu0 0.0
    %1128 = vmatprep.subr.mxu0 0.0
    %1129 = vmatpush2.msra.mxu0 0.0
    %1130 = vmatprep.subr.mxu0 0.0
    %1131 = vmatpush2.msra.mxu0 0.0
    %1132 = vmatprep.subr.mxu0 0.0
    %1133 = vmatpush2.msra.mxu0 0.0
    %1134 = vmatprep.subr.mxu0 0.0
    %1135 = vmatpush2.msra.mxu0 0.0
    %1136 = vmatprep.subr.mxu0 0.0
    %1137 = vmatpush2.msra.mxu0 0.0
    %1138 = vmatprep.subr.mxu0 0.0
    %1139 = vmatpush2.msra.mxu0 0.0
    %1140 = vmatprep.subr.mxu0 0.0
    %1141 = vmatpush2.msra.mxu0 0.0
    %1142 = vmatprep.subr.mxu0 0.0
    %1143 = vmatpush2.msra.mxu0 0.0
    %1144 = vmatprep.subr.mxu0 0.0
    %1145 = vmatpush2.msra.mxu0 0.0
    %1146 = vmatprep.mubr.f32.mxu0 0.0
    %1147 = vmatmul.mubr.f32.gmra.mxu0 %v1080
    %v1148 = vpop.f32.mrf.mxu0
    %v1149 = vadd.f32 0.0, %v1148
    %v1150 = vpop.f32.mrf.mxu0
    %1151 = vdwg.mxu0
    %v1152 = vadd.f32 %v1076, %v1149
    %v1153 = vxor.u32 %v1152, 2147483648
    %v1154 = vmul.f32 %v1153, 1.442695
    %v1155 = vpow.pop %v1154
    %v1156 = vadd.f32 %v1155, 1.0
    %v1157 = vrcp.pop %v1156
    %v1158 = vmul.f32 1.0, %v1157
    %v1159 = vtanh.pop %v1152
    %v1160 = vmul.f32 %v1158, %v897
    %1162 = vrot.lane.b32.xlu0 %v1159, 64
    %v1163 = vpop.permute.xlu0 %1162
    %v1165 = vmul.f32 %v1158, %v1163
    %1167 = vrot.lane.b32.xlu0 %v1165, 32
    %v1168 = vpop.permute.xlu0 %1167
    %v1170 = vadd.f32 %v1160, %v1168
    %v1171 = vtanh.pop %v1170
    %1173 = vrot.lane.b32.xlu0 %v1171, 64
    %v1174 = vpop.permute.xlu0 %1173
    %v1176 = vmul.f32 %v1158, %v1174
    %1177 = vmatprep.subr.mxu0 0.0
    %1178 = vmatpush1.msra.mxu0 0.0
    %1179 = vmatprep.subr.mxu0 0.0
    %1180 = vmatpush1.msra.mxu0 0.0
    %1181 = vmatprep.subr.mxu0 0.0
    %1182 = vmatpush1.msra.mxu0 0.0
    %1183 = vmatprep.subr.mxu0 0.0
    %1184 = vmatpush1.msra.mxu0 0.0
    %1185 = vmatprep.subr.mxu0 0.0
    %1186 = vmatpush1.msra.mxu0 0.0
    %1187 = vmatprep.subr.mxu0 0.0
    %1188 = vmatpush1.msra.mxu0 0.0
    %1189 = vmatprep.subr.mxu0 0.0
    %1190 = vmatpush1.msra.mxu0 0.0
    %1191 = vmatprep.subr.mxu0 0.0
    %1192 = vmatpush1.msra.mxu0 0.0
    %1193 = vmatprep.subr.mxu0 0.0
    %1194 = vmatpush1.msra.mxu0 0.0
    %1195 = vmatprep.subr.mxu0 0.0
    %1196 = vmatpush1.msra.mxu0 0.0
    %1197 = vmatprep.subr.mxu0 0.0
    %1198 = vmatpush1.msra.mxu0 0.0
    %1199 = vmatprep.subr.mxu0 0.0
    %1200 = vmatpush1.msra.mxu0 0.0
    %1201 = vmatprep.subr.mxu0 0.0
    %1202 = vmatpush1.msra.mxu0 %v47
    %1203 = vmatprep.subr.mxu0 0.0
    %1204 = vmatpush1.msra.mxu0 %v46
    %1205 = vmatprep.subr.mxu0 0.0
    %1206 = vmatpush1.msra.mxu0 %v45
    %1207 = vmatprep.subr.mxu0 0.0
    %1208 = vmatpush1.msra.mxu0 %v44
    %1209 = vmatprep.subr.mxu0 0.0
    %1210 = vmatpush2.msra.mxu0 0.0
    %1211 = vmatprep.subr.mxu0 0.0
    %1212 = vmatpush2.msra.mxu0 0.0
    %1213 = vmatprep.subr.mxu0 0.0
    %1214 = vmatpush2.msra.mxu0 0.0
    %1215 = vmatprep.subr.mxu0 0.0
    %1216 = vmatpush2.msra.mxu0 0.0
    %1217 = vmatprep.subr.mxu0 0.0
    %1218 = vmatpush2.msra.mxu0 0.0
    %1219 = vmatprep.subr.mxu0 0.0
    %1220 = vmatpush2.msra.mxu0 0.0
    %1221 = vmatprep.subr.mxu0 0.0
    %1222 = vmatpush2.msra.mxu0 0.0
    %1223 = vmatprep.subr.mxu0 0.0
    %1224 = vmatpush2.msra.mxu0 0.0
    %1225 = vmatprep.subr.mxu0 0.0
    %1226 = vmatpush2.msra.mxu0 0.0
    %1227 = vmatprep.subr.mxu0 0.0
    %1228 = vmatpush2.msra.mxu0 0.0
    %1229 = vmatprep.subr.mxu0 0.0
    %1230 = vmatpush2.msra.mxu0 0.0
    %1231 = vmatprep.subr.mxu0 0.0
    %1232 = vmatpush2.msra.mxu0 0.0
    %1233 = vmatprep.subr.mxu0 0.0
    %1234 = vmatpush2.msra.mxu0 0.0
    %1235 = vmatprep.subr.mxu0 0.0
    %1236 = vmatpush2.msra.mxu0 0.0
    %1237 = vmatprep.subr.mxu0 0.0
    %1238 = vmatpush2.msra.mxu0 0.0
    %1239 = vmatprep.subr.mxu0 0.0
    %1240 = vmatpush2.msra.mxu0 0.0
    %1241 = vmatprep.mubr.f32.mxu0 0.0
    %1242 = vmatmul.mubr.f32.gmra.mxu0 %v1080
    %v1243 = vpop.f32.mrf.mxu0
    %v1244 = vadd.f32 %v352, %v1243
    %v1245 = vpop.f32.mrf.mxu0
    %1246 = vdwg.mxu0
    %v1247 = vsel %vm125, %v1073, 0
    %1249 = vmatprep.subr.mxu0 0.0
    %1250 = vmatpush1.msra.mxu0 0.0
    %1251 = vmatprep.subr.mxu0 0.0
    %1252 = vmatpush1.msra.mxu0 0.0
    %1253 = vmatprep.subr.mxu0 0.0
    %1254 = vmatpush1.msra.mxu0 0.0
    %1255 = vmatprep.subr.mxu0 0.0
    %1256 = vmatpush1.msra.mxu0 0.0
    %1257 = vmatprep.subr.mxu0 0.0
    %1258 = vmatpush1.msra.mxu0 0.0
    %1259 = vmatprep.subr.mxu0 0.0
    %1260 = vmatpush1.msra.mxu0 0.0
    %1261 = vmatprep.subr.mxu0 0.0
    %1262 = vmatpush1.msra.mxu0 0.0
    %1263 = vmatprep.subr.mxu0 0.0
    %1264 = vmatpush1.msra.mxu0 0.0
    %1265 = vmatprep.subr.mxu0 0.0
    %1266 = vmatpush1.msra.mxu0 0.0
    %1267 = vmatprep.subr.mxu0 0.0
    %1268 = vmatpush1.msra.mxu0 0.0
    %1269 = vmatprep.subr.mxu0 0.0
    %1270 = vmatpush1.msra.mxu0 0.0
    %1271 = vmatprep.subr.mxu0 0.0
    %1272 = vmatpush1.msra.mxu0 0.0
    %1273 = vmatprep.subr.mxu0 0.0
    %1274 = vmatpush1.msra.mxu0 %v51
    %1275 = vmatprep.subr.mxu0 0.0
    %1276 = vmatpush1.msra.mxu0 %v50
    %1277 = vmatprep.subr.mxu0 0.0
    %1278 = vmatpush1.msra.mxu0 %v49
    %1279 = vmatprep.subr.mxu0 0.0
    %1280 = vmatpush1.msra.mxu0 %v48
    %1281 = vmatprep.subr.mxu0 0.0
    %1282 = vmatpush2.msra.mxu0 0.0
    %1283 = vmatprep.subr.mxu0 0.0
    %1284 = vmatpush2.msra.mxu0 0.0
    %1285 = vmatprep.subr.mxu0 0.0
    %1286 = vmatpush2.msra.mxu0 0.0
    %1287 = vmatprep.subr.mxu0 0.0
    %1288 = vmatpush2.msra.mxu0 0.0
    %1289 = vmatprep.subr.mxu0 0.0
    %1290 = vmatpush2.msra.mxu0 0.0
    %1291 = vmatprep.subr.mxu0 0.0
    %1292 = vmatpush2.msra.mxu0 0.0
    %1293 = vmatprep.subr.mxu0 0.0
    %1294 = vmatpush2.msra.mxu0 0.0
    %1295 = vmatprep.subr.mxu0 0.0
    %1296 = vmatpush2.msra.mxu0 0.0
    %1297 = vmatprep.subr.mxu0 0.0
    %1298 = vmatpush2.msra.mxu0 0.0
    %1299 = vmatprep.subr.mxu0 0.0
    %1300 = vmatpush2.msra.mxu0 0.0
    %1301 = vmatprep.subr.mxu0 0.0
    %1302 = vmatpush2.msra.mxu0 0.0
    %1303 = vmatprep.subr.mxu0 0.0
    %1304 = vmatpush2.msra.mxu0 0.0
    %1305 = vmatprep.subr.mxu0 0.0
    %1306 = vmatpush2.msra.mxu0 0.0
    %1307 = vmatprep.subr.mxu0 0.0
    %1308 = vmatpush2.msra.mxu0 0.0
    %1309 = vmatprep.subr.mxu0 0.0
    %1310 = vmatpush2.msra.mxu0 0.0
    %1311 = vmatprep.subr.mxu0 0.0
    %1312 = vmatpush2.msra.mxu0 0.0
    %1313 = vmatprep.mubr.f32.mxu0 0.0
    %1314 = vmatmul.mubr.f32.gmra.mxu0 %v1247
    %v1315 = vpop.f32.mrf.mxu0
    %v1316 = vadd.f32 0.0, %v1315
    %v1317 = vpop.f32.mrf.mxu0
    %1318 = vdwg.mxu0
    %v1319 = vadd.f32 %v1244, %v1316
    %v1320 = vxor.u32 %v1319, 2147483648
    %v1321 = vmul.f32 %v1320, 1.442695
    %v1322 = vpow.pop %v1321
    %v1323 = vadd.f32 %v1322, 1.0
    %v1324 = vrcp.pop %v1323
    %v1325 = vmul.f32 1.0, %v1324
    %v1326 = vtanh.pop %v1319
    %v1327 = vmul.f32 %v1325, %v1064
    %1329 = vrot.lane.b32.xlu0 %v1326, 64
    %v1330 = vpop.permute.xlu0 %1329
    %v1332 = vmul.f32 %v1325, %v1330
    %1334 = vrot.lane.b32.xlu0 %v1332, 32
    %v1335 = vpop.permute.xlu0 %1334
    %v1337 = vadd.f32 %v1327, %v1335
    %v1338 = vtanh.pop %v1337
    %1340 = vrot.lane.b32.xlu0 %v1338, 64
    %v1341 = vpop.permute.xlu0 %1340
    %v1343 = vmul.f32 %v1325, %v1341
    %1345 = vrot.lane.b32.xlu0 %v1343, 32
    %v1346 = vpop.permute.xlu0 %1345
    %1348 = vst.msk [vmem:[#allocation3 + $0x18] sm:$0xff] %vm125, %v1346
    %v1349 = vld [vmem:[#allocation2 + $0x28] sm:$0xff]
    %1351 = vrot.lane.b32.xlu0 %v1176, 32
    %v1352 = vpop.permute.xlu0 %1351
    %v1353 = vsel %vm125, %v1352, 0
    %1355 = vmatprep.subr.mxu0 0.0
    %1356 = vmatpush1.msra.mxu0 0.0
    %1357 = vmatprep.subr.mxu0 0.0
    %1358 = vmatpush1.msra.mxu0 0.0
    %1359 = vmatprep.subr.mxu0 0.0
    %1360 = vmatpush1.msra.mxu0 0.0
    %1361 = vmatprep.subr.mxu0 0.0
    %1362 = vmatpush1.msra.mxu0 0.0
    %1363 = vmatprep.subr.mxu0 0.0
    %1364 = vmatpush1.msra.mxu0 0.0
    %1365 = vmatprep.subr.mxu0 0.0
    %1366 = vmatpush1.msra.mxu0 0.0
    %1367 = vmatprep.subr.mxu0 0.0
    %1368 = vmatpush1.msra.mxu0 0.0
    %1369 = vmatprep.subr.mxu0 0.0
    %1370 = vmatpush1.msra.mxu0 0.0
    %1371 = vmatprep.subr.mxu0 0.0
    %1372 = vmatpush1.msra.mxu0 0.0
    %1373 = vmatprep.subr.mxu0 0.0
    %1374 = vmatpush1.msra.mxu0 0.0
    %1375 = vmatprep.subr.mxu0 0.0
    %1376 = vmatpush1.msra.mxu0 0.0
    %1377 = vmatprep.subr.mxu0 0.0
    %1378 = vmatpush1.msra.mxu0 0.0
    %1379 = vmatprep.subr.mxu0 0.0
    %1380 = vmatpush1.msra.mxu0 %v43
    %1381 = vmatprep.subr.mxu0 0.0
    %1382 = vmatpush1.msra.mxu0 %v42
    %1383 = vmatprep.subr.mxu0 0.0
    %1384 = vmatpush1.msra.mxu0 %v41
    %1385 = vmatprep.subr.mxu0 0.0
    %1386 = vmatpush1.msra.mxu0 %v40
    %1387 = vmatprep.subr.mxu0 0.0
    %1388 = vmatpush2.msra.mxu0 0.0
    %1389 = vmatprep.subr.mxu0 0.0
    %1390 = vmatpush2.msra.mxu0 0.0
    %1391 = vmatprep.subr.mxu0 0.0
    %1392 = vmatpush2.msra.mxu0 0.0
    %1393 = vmatprep.subr.mxu0 0.0
    %1394 = vmatpush2.msra.mxu0 0.0
    %1395 = vmatprep.subr.mxu0 0.0
    %1396 = vmatpush2.msra.mxu0 0.0
    %1397 = vmatprep.subr.mxu0 0.0
    %1398 = vmatpush2.msra.mxu0 0.0
    %1399 = vmatprep.subr.mxu0 0.0
    %1400 = vmatpush2.msra.mxu0 0.0
    %1401 = vmatprep.subr.mxu0 0.0
    %1402 = vmatpush2.msra.mxu0 0.0
    %1403 = vmatprep.subr.mxu0 0.0
    %1404 = vmatpush2.msra.mxu0 0.0
    %1405 = vmatprep.subr.mxu0 0.0
    %1406 = vmatpush2.msra.mxu0 0.0
    %1407 = vmatprep.subr.mxu0 0.0
    %1408 = vmatpush2.msra.mxu0 0.0
    %1409 = vmatprep.subr.mxu0 0.0
    %1410 = vmatpush2.msra.mxu0 0.0
    %1411 = vmatprep.subr.mxu0 0.0
    %1412 = vmatpush2.msra.mxu0 0.0
    %1413 = vmatprep.subr.mxu0 0.0
    %1414 = vmatpush2.msra.mxu0 0.0
    %1415 = vmatprep.subr.mxu0 0.0
    %1416 = vmatpush2.msra.mxu0 0.0
    %1417 = vmatprep.subr.mxu0 0.0
    %1418 = vmatpush2.msra.mxu0 0.0
    %1419 = vmatprep.mubr.f32.mxu0 0.0
    %1420 = vmatmul.mubr.f32.gmra.mxu0 %v1353
    %v1421 = vpop.f32.mrf.mxu0
    %v1422 = vadd.f32 0.0, %v1421
    %v1423 = vpop.f32.mrf.mxu0
    %1424 = vdwg.mxu0
    %v1425 = vadd.f32 %v1349, %v1422
    %v1426 = vxor.u32 %v1425, 2147483648
    %v1427 = vmul.f32 %v1426, 1.442695
    %v1428 = vpow.pop %v1427
    %v1429 = vadd.f32 %v1428, 1.0
    %v1430 = vrcp.pop %v1429
    %v1431 = vmul.f32 1.0, %v1430
    %v1432 = vtanh.pop %v1425
    %v1433 = vmul.f32 %v1431, %v1170
    %1435 = vrot.lane.b32.xlu0 %v1432, 64
    %v1436 = vpop.permute.xlu0 %1435
    %v1438 = vmul.f32 %v1431, %v1436
    %1440 = vrot.lane.b32.xlu0 %v1438, 32
    %v1441 = vpop.permute.xlu0 %1440
    %v1443 = vadd.f32 %v1433, %v1441
    %v1444 = vtanh.pop %v1443
    %1446 = vrot.lane.b32.xlu0 %v1444, 64
    %v1447 = vpop.permute.xlu0 %1446
    %v1449 = vmul.f32 %v1431, %v1447
    %1450 = vmatprep.subr.mxu0 0.0
    %1451 = vmatpush1.msra.mxu0 0.0
    %1452 = vmatprep.subr.mxu0 0.0
    %1453 = vmatpush1.msra.mxu0 0.0
    %1454 = vmatprep.subr.mxu0 0.0
    %1455 = vmatpush1.msra.mxu0 0.0
    %1456 = vmatprep.subr.mxu0 0.0
    %1457 = vmatpush1.msra.mxu0 0.0
    %1458 = vmatprep.subr.mxu0 0.0
    %1459 = vmatpush1.msra.mxu0 0.0
    %1460 = vmatprep.subr.mxu0 0.0
    %1461 = vmatpush1.msra.mxu0 0.0
    %1462 = vmatprep.subr.mxu0 0.0
    %1463 = vmatpush1.msra.mxu0 0.0
    %1464 = vmatprep.subr.mxu0 0.0
    %1465 = vmatpush1.msra.mxu0 0.0
    %1466 = vmatprep.subr.mxu0 0.0
    %1467 = vmatpush1.msra.mxu0 0.0
    %1468 = vmatprep.subr.mxu0 0.0
    %1469 = vmatpush1.msra.mxu0 0.0
    %1470 = vmatprep.subr.mxu0 0.0
    %1471 = vmatpush1.msra.mxu0 0.0
    %1472 = vmatprep.subr.mxu0 0.0
    %1473 = vmatpush1.msra.mxu0 0.0
    %1474 = vmatprep.subr.mxu0 0.0
    %1475 = vmatpush1.msra.mxu0 %v47
    %1476 = vmatprep.subr.mxu0 0.0
    %1477 = vmatpush1.msra.mxu0 %v46
    %1478 = vmatprep.subr.mxu0 0.0
    %1479 = vmatpush1.msra.mxu0 %v45
    %1480 = vmatprep.subr.mxu0 0.0
    %1481 = vmatpush1.msra.mxu0 %v44
    %1482 = vmatprep.subr.mxu0 0.0
    %1483 = vmatpush2.msra.mxu0 0.0
    %1484 = vmatprep.subr.mxu0 0.0
    %1485 = vmatpush2.msra.mxu0 0.0
    %1486 = vmatprep.subr.mxu0 0.0
    %1487 = vmatpush2.msra.mxu0 0.0
    %1488 = vmatprep.subr.mxu0 0.0
    %1489 = vmatpush2.msra.mxu0 0.0
    %1490 = vmatprep.subr.mxu0 0.0
    %1491 = vmatpush2.msra.mxu0 0.0
    %1492 = vmatprep.subr.mxu0 0.0
    %1493 = vmatpush2.msra.mxu0 0.0
    %1494 = vmatprep.subr.mxu0 0.0
    %1495 = vmatpush2.msra.mxu0 0.0
    %1496 = vmatprep.subr.mxu0 0.0
    %1497 = vmatpush2.msra.mxu0 0.0
    %1498 = vmatprep.subr.mxu0 0.0
    %1499 = vmatpush2.msra.mxu0 0.0
    %1500 = vmatprep.subr.mxu0 0.0
    %1501 = vmatpush2.msra.mxu0 0.0
    %1502 = vmatprep.subr.mxu0 0.0
    %1503 = vmatpush2.msra.mxu0 0.0
    %1504 = vmatprep.subr.mxu0 0.0
    %1505 = vmatpush2.msra.mxu0 0.0
    %1506 = vmatprep.subr.mxu0 0.0
    %1507 = vmatpush2.msra.mxu0 0.0
    %1508 = vmatprep.subr.mxu0 0.0
    %1509 = vmatpush2.msra.mxu0 0.0
    %1510 = vmatprep.subr.mxu0 0.0
    %1511 = vmatpush2.msra.mxu0 0.0
    %1512 = vmatprep.subr.mxu0 0.0
    %1513 = vmatpush2.msra.mxu0 0.0
    %1514 = vmatprep.mubr.f32.mxu0 0.0
    %1515 = vmatmul.mubr.f32.gmra.mxu0 %v1353
    %v1516 = vpop.f32.mrf.mxu0
    %v1517 = vadd.f32 %v352, %v1516
    %v1518 = vpop.f32.mrf.mxu0
    %1519 = vdwg.mxu0
    %v1520 = vsel %vm125, %v1346, 0
    %1522 = vmatprep.subr.mxu0 0.0
    %1523 = vmatpush1.msra.mxu0 0.0
    %1524 = vmatprep.subr.mxu0 0.0
    %1525 = vmatpush1.msra.mxu0 0.0
    %1526 = vmatprep.subr.mxu0 0.0
    %1527 = vmatpush1.msra.mxu0 0.0
    %1528 = vmatprep.subr.mxu0 0.0
    %1529 = vmatpush1.msra.mxu0 0.0
    %1530 = vmatprep.subr.mxu0 0.0
    %1531 = vmatpush1.msra.mxu0 0.0
    %1532 = vmatprep.subr.mxu0 0.0
    %1533 = vmatpush1.msra.mxu0 0.0
    %1534 = vmatprep.subr.mxu0 0.0
    %1535 = vmatpush1.msra.mxu0 0.0
    %1536 = vmatprep.subr.mxu0 0.0
    %1537 = vmatpush1.msra.mxu0 0.0
    %1538 = vmatprep.subr.mxu0 0.0
    %1539 = vmatpush1.msra.mxu0 0.0
    %1540 = vmatprep.subr.mxu0 0.0
    %1541 = vmatpush1.msra.mxu0 0.0
    %1542 = vmatprep.subr.mxu0 0.0
    %1543 = vmatpush1.msra.mxu0 0.0
    %1544 = vmatprep.subr.mxu0 0.0
    %1545 = vmatpush1.msra.mxu0 0.0
    %1546 = vmatprep.subr.mxu0 0.0
    %1547 = vmatpush1.msra.mxu0 %v51
    %1548 = vmatprep.subr.mxu0 0.0
    %1549 = vmatpush1.msra.mxu0 %v50
    %1550 = vmatprep.subr.mxu0 0.0
    %1551 = vmatpush1.msra.mxu0 %v49
    %1552 = vmatprep.subr.mxu0 0.0
    %1553 = vmatpush1.msra.mxu0 %v48
    %1554 = vmatprep.subr.mxu0 0.0
    %1555 = vmatpush2.msra.mxu0 0.0
    %1556 = vmatprep.subr.mxu0 0.0
    %1557 = vmatpush2.msra.mxu0 0.0
    %1558 = vmatprep.subr.mxu0 0.0
    %1559 = vmatpush2.msra.mxu0 0.0
    %1560 = vmatprep.subr.mxu0 0.0
    %1561 = vmatpush2.msra.mxu0 0.0
    %1562 = vmatprep.subr.mxu0 0.0
    %1563 = vmatpush2.msra.mxu0 0.0
    %1564 = vmatprep.subr.mxu0 0.0
    %1565 = vmatpush2.msra.mxu0 0.0
    %1566 = vmatprep.subr.mxu0 0.0
    %1567 = vmatpush2.msra.mxu0 0.0
    %1568 = vmatprep.subr.mxu0 0.0
    %1569 = vmatpush2.msra.mxu0 0.0
    %1570 = vmatprep.subr.mxu0 0.0
    %1571 = vmatpush2.msra.mxu0 0.0
    %1572 = vmatprep.subr.mxu0 0.0
    %1573 = vmatpush2.msra.mxu0 0.0
    %1574 = vmatprep.subr.mxu0 0.0
    %1575 = vmatpush2.msra.mxu0 0.0
    %1576 = vmatprep.subr.mxu0 0.0
    %1577 = vmatpush2.msra.mxu0 0.0
    %1578 = vmatprep.subr.mxu0 0.0
    %1579 = vmatpush2.msra.mxu0 0.0
    %1580 = vmatprep.subr.mxu0 0.0
    %1581 = vmatpush2.msra.mxu0 0.0
    %1582 = vmatprep.subr.mxu0 0.0
    %1583 = vmatpush2.msra.mxu0 0.0
    %1584 = vmatprep.subr.mxu0 0.0
    %1585 = vmatpush2.msra.mxu0 0.0
    %1586 = vmatprep.mubr.f32.mxu0 0.0
    %1587 = vmatmul.mubr.f32.gmra.mxu0 %v1520
    %v1588 = vpop.f32.mrf.mxu0
    %v1589 = vadd.f32 0.0, %v1588
    %v1590 = vpop.f32.mrf.mxu0
    %1591 = vdwg.mxu0
    %v1592 = vadd.f32 %v1517, %v1589
    %v1593 = vxor.u32 %v1592, 2147483648
    %v1594 = vmul.f32 %v1593, 1.442695
    %v1595 = vpow.pop %v1594
    %v1596 = vadd.f32 %v1595, 1.0
    %v1597 = vrcp.pop %v1596
    %v1598 = vmul.f32 1.0, %v1597
    %v1599 = vtanh.pop %v1592
    %v1600 = vmul.f32 %v1598, %v1337
    %1602 = vrot.lane.b32.xlu0 %v1599, 64
    %v1603 = vpop.permute.xlu0 %1602
    %v1605 = vmul.f32 %v1598, %v1603
    %1607 = vrot.lane.b32.xlu0 %v1605, 32
    %v1608 = vpop.permute.xlu0 %1607
    %v1610 = vadd.f32 %v1600, %v1608
    %v1611 = vtanh.pop %v1610
    %1613 = vrot.lane.b32.xlu0 %v1611, 64
    %v1614 = vpop.permute.xlu0 %1613
    %v1616 = vmul.f32 %v1598, %v1614
    %1618 = vrot.lane.b32.xlu0 %v1616, 32
    %v1619 = vpop.permute.xlu0 %1618
    %1621 = vst.msk [vmem:[#allocation3 + $0x20] sm:$0xff] %vm125, %v1619
    %v1622 = vld [vmem:[#allocation2 + $0x30] sm:$0xff]
    %1624 = vrot.lane.b32.xlu0 %v1449, 32
    %v1625 = vpop.permute.xlu0 %1624
    %v1626 = vsel %vm125, %v1625, 0
    %1628 = vmatprep.subr.mxu0 0.0
    %1629 = vmatpush1.msra.mxu0 0.0
    %1630 = vmatprep.subr.mxu0 0.0
    %1631 = vmatpush1.msra.mxu0 0.0
    %1632 = vmatprep.subr.mxu0 0.0
    %1633 = vmatpush1.msra.mxu0 0.0
    %1634 = vmatprep.subr.mxu0 0.0
    %1635 = vmatpush1.msra.mxu0 0.0
    %1636 = vmatprep.subr.mxu0 0.0
    %1637 = vmatpush1.msra.mxu0 0.0
    %1638 = vmatprep.subr.mxu0 0.0
    %1639 = vmatpush1.msra.mxu0 0.0
    %1640 = vmatprep.subr.mxu0 0.0
    %1641 = vmatpush1.msra.mxu0 0.0
    %1642 = vmatprep.subr.mxu0 0.0
    %1643 = vmatpush1.msra.mxu0 0.0
    %1644 = vmatprep.subr.mxu0 0.0
    %1645 = vmatpush1.msra.mxu0 0.0
    %1646 = vmatprep.subr.mxu0 0.0
    %1647 = vmatpush1.msra.mxu0 0.0
    %1648 = vmatprep.subr.mxu0 0.0
    %1649 = vmatpush1.msra.mxu0 0.0
    %1650 = vmatprep.subr.mxu0 0.0
    %1651 = vmatpush1.msra.mxu0 0.0
    %1652 = vmatprep.subr.mxu0 0.0
    %1653 = vmatpush1.msra.mxu0 %v43
    %1654 = vmatprep.subr.mxu0 0.0
    %1655 = vmatpush1.msra.mxu0 %v42
    %1656 = vmatprep.subr.mxu0 0.0
    %1657 = vmatpush1.msra.mxu0 %v41
    %1658 = vmatprep.subr.mxu0 0.0
    %1659 = vmatpush1.msra.mxu0 %v40
    %1660 = vmatprep.subr.mxu0 0.0
    %1661 = vmatpush2.msra.mxu0 0.0
    %1662 = vmatprep.subr.mxu0 0.0
    %1663 = vmatpush2.msra.mxu0 0.0
    %1664 = vmatprep.subr.mxu0 0.0
    %1665 = vmatpush2.msra.mxu0 0.0
    %1666 = vmatprep.subr.mxu0 0.0
    %1667 = vmatpush2.msra.mxu0 0.0
    %1668 = vmatprep.subr.mxu0 0.0
    %1669 = vmatpush2.msra.mxu0 0.0
    %1670 = vmatprep.subr.mxu0 0.0
    %1671 = vmatpush2.msra.mxu0 0.0
    %1672 = vmatprep.subr.mxu0 0.0
    %1673 = vmatpush2.msra.mxu0 0.0
    %1674 = vmatprep.subr.mxu0 0.0
    %1675 = vmatpush2.msra.mxu0 0.0
    %1676 = vmatprep.subr.mxu0 0.0
    %1677 = vmatpush2.msra.mxu0 0.0
    %1678 = vmatprep.subr.mxu0 0.0
    %1679 = vmatpush2.msra.mxu0 0.0
    %1680 = vmatprep.subr.mxu0 0.0
    %1681 = vmatpush2.msra.mxu0 0.0
    %1682 = vmatprep.subr.mxu0 0.0
    %1683 = vmatpush2.msra.mxu0 0.0
    %1684 = vmatprep.subr.mxu0 0.0
    %1685 = vmatpush2.msra.mxu0 0.0
    %1686 = vmatprep.subr.mxu0 0.0
    %1687 = vmatpush2.msra.mxu0 0.0
    %1688 = vmatprep.subr.mxu0 0.0
    %1689 = vmatpush2.msra.mxu0 0.0
    %1690 = vmatprep.subr.mxu0 0.0
    %1691 = vmatpush2.msra.mxu0 0.0
    %1692 = vmatprep.mubr.f32.mxu0 0.0
    %1693 = vmatmul.mubr.f32.gmra.mxu0 %v1626
    %v1694 = vpop.f32.mrf.mxu0
    %v1695 = vadd.f32 0.0, %v1694
    %v1696 = vpop.f32.mrf.mxu0
    %1697 = vdwg.mxu0
    %v1698 = vadd.f32 %v1622, %v1695
    %v1699 = vxor.u32 %v1698, 2147483648
    %v1700 = vmul.f32 %v1699, 1.442695
    %v1701 = vpow.pop %v1700
    %v1702 = vadd.f32 %v1701, 1.0
    %v1703 = vrcp.pop %v1702
    %v1704 = vmul.f32 1.0, %v1703
    %v1705 = vtanh.pop %v1698
    %v1706 = vmul.f32 %v1704, %v1443
    %1708 = vrot.lane.b32.xlu0 %v1705, 64
    %v1709 = vpop.permute.xlu0 %1708
    %v1711 = vmul.f32 %v1704, %v1709
    %1713 = vrot.lane.b32.xlu0 %v1711, 32
    %v1714 = vpop.permute.xlu0 %1713
    %v1716 = vadd.f32 %v1706, %v1714
    %v1717 = vtanh.pop %v1716
    %1719 = vrot.lane.b32.xlu0 %v1717, 64
    %v1720 = vpop.permute.xlu0 %1719
    %v1722 = vmul.f32 %v1704, %v1720
    %1723 = vmatprep.subr.mxu0 0.0
    %1724 = vmatpush1.msra.mxu0 0.0
    %1725 = vmatprep.subr.mxu0 0.0
    %1726 = vmatpush1.msra.mxu0 0.0
    %1727 = vmatprep.subr.mxu0 0.0
    %1728 = vmatpush1.msra.mxu0 0.0
    %1729 = vmatprep.subr.mxu0 0.0
    %1730 = vmatpush1.msra.mxu0 0.0
    %1731 = vmatprep.subr.mxu0 0.0
    %1732 = vmatpush1.msra.mxu0 0.0
    %1733 = vmatprep.subr.mxu0 0.0
    %1734 = vmatpush1.msra.mxu0 0.0
    %1735 = vmatprep.subr.mxu0 0.0
    %1736 = vmatpush1.msra.mxu0 0.0
    %1737 = vmatprep.subr.mxu0 0.0
    %1738 = vmatpush1.msra.mxu0 0.0
    %1739 = vmatprep.subr.mxu0 0.0
    %1740 = vmatpush1.msra.mxu0 0.0
    %1741 = vmatprep.subr.mxu0 0.0
    %1742 = vmatpush1.msra.mxu0 0.0
    %1743 = vmatprep.subr.mxu0 0.0
    %1744 = vmatpush1.msra.mxu0 0.0
    %1745 = vmatprep.subr.mxu0 0.0
    %1746 = vmatpush1.msra.mxu0 0.0
    %1747 = vmatprep.subr.mxu0 0.0
    %1748 = vmatpush1.msra.mxu0 %v47
    %1749 = vmatprep.subr.mxu0 0.0
    %1750 = vmatpush1.msra.mxu0 %v46
    %1751 = vmatprep.subr.mxu0 0.0
    %1752 = vmatpush1.msra.mxu0 %v45
    %1753 = vmatprep.subr.mxu0 0.0
    %1754 = vmatpush1.msra.mxu0 %v44
    %1755 = vmatprep.subr.mxu0 0.0
    %1756 = vmatpush2.msra.mxu0 0.0
    %1757 = vmatprep.subr.mxu0 0.0
    %1758 = vmatpush2.msra.mxu0 0.0
    %1759 = vmatprep.subr.mxu0 0.0
    %1760 = vmatpush2.msra.mxu0 0.0
    %1761 = vmatprep.subr.mxu0 0.0
    %1762 = vmatpush2.msra.mxu0 0.0
    %1763 = vmatprep.subr.mxu0 0.0
    %1764 = vmatpush2.msra.mxu0 0.0
    %1765 = vmatprep.subr.mxu0 0.0
    %1766 = vmatpush2.msra.mxu0 0.0
    %1767 = vmatprep.subr.mxu0 0.0
    %1768 = vmatpush2.msra.mxu0 0.0
    %1769 = vmatprep.subr.mxu0 0.0
    %1770 = vmatpush2.msra.mxu0 0.0
    %1771 = vmatprep.subr.mxu0 0.0
    %1772 = vmatpush2.msra.mxu0 0.0
    %1773 = vmatprep.subr.mxu0 0.0
    %1774 = vmatpush2.msra.mxu0 0.0
    %1775 = vmatprep.subr.mxu0 0.0
    %1776 = vmatpush2.msra.mxu0 0.0
    %1777 = vmatprep.subr.mxu0 0.0
    %1778 = vmatpush2.msra.mxu0 0.0
    %1779 = vmatprep.subr.mxu0 0.0
    %1780 = vmatpush2.msra.mxu0 0.0
    %1781 = vmatprep.subr.mxu0 0.0
    %1782 = vmatpush2.msra.mxu0 0.0
    %1783 = vmatprep.subr.mxu0 0.0
    %1784 = vmatpush2.msra.mxu0 0.0
    %1785 = vmatprep.subr.mxu0 0.0
    %1786 = vmatpush2.msra.mxu0 0.0
    %1787 = vmatprep.mubr.f32.mxu0 0.0
    %1788 = vmatmul.mubr.f32.gmra.mxu0 %v1626
    %v1789 = vpop.f32.mrf.mxu0
    %v1790 = vadd.f32 %v352, %v1789
    %v1791 = vpop.f32.mrf.mxu0
    %1792 = vdwg.mxu0
    %v1793 = vsel %vm125, %v1619, 0
    %1795 = vmatprep.subr.mxu0 0.0
    %1796 = vmatpush1.msra.mxu0 0.0
    %1797 = vmatprep.subr.mxu0 0.0
    %1798 = vmatpush1.msra.mxu0 0.0
    %1799 = vmatprep.subr.mxu0 0.0
    %1800 = vmatpush1.msra.mxu0 0.0
    %1801 = vmatprep.subr.mxu0 0.0
    %1802 = vmatpush1.msra.mxu0 0.0
    %1803 = vmatprep.subr.mxu0 0.0
    %1804 = vmatpush1.msra.mxu0 0.0
    %1805 = vmatprep.subr.mxu0 0.0
    %1806 = vmatpush1.msra.mxu0 0.0
    %1807 = vmatprep.subr.mxu0 0.0
    %1808 = vmatpush1.msra.mxu0 0.0
    %1809 = vmatprep.subr.mxu0 0.0
    %1810 = vmatpush1.msra.mxu0 0.0
    %1811 = vmatprep.subr.mxu0 0.0
    %1812 = vmatpush1.msra.mxu0 0.0
    %1813 = vmatprep.subr.mxu0 0.0
    %1814 = vmatpush1.msra.mxu0 0.0
    %1815 = vmatprep.subr.mxu0 0.0
    %1816 = vmatpush1.msra.mxu0 0.0
    %1817 = vmatprep.subr.mxu0 0.0
    %1818 = vmatpush1.msra.mxu0 0.0
    %1819 = vmatprep.subr.mxu0 0.0
    %1820 = vmatpush1.msra.mxu0 %v51
    %1821 = vmatprep.subr.mxu0 0.0
    %1822 = vmatpush1.msra.mxu0 %v50
    %1823 = vmatprep.subr.mxu0 0.0
    %1824 = vmatpush1.msra.mxu0 %v49
    %1825 = vmatprep.subr.mxu0 0.0
    %1826 = vmatpush1.msra.mxu0 %v48
    %1827 = vmatprep.subr.mxu0 0.0
    %1828 = vmatpush2.msra.mxu0 0.0
    %1829 = vmatprep.subr.mxu0 0.0
    %1830 = vmatpush2.msra.mxu0 0.0
    %1831 = vmatprep.subr.mxu0 0.0
    %1832 = vmatpush2.msra.mxu0 0.0
    %1833 = vmatprep.subr.mxu0 0.0
    %1834 = vmatpush2.msra.mxu0 0.0
    %1835 = vmatprep.subr.mxu0 0.0
    %1836 = vmatpush2.msra.mxu0 0.0
    %1837 = vmatprep.subr.mxu0 0.0
    %1838 = vmatpush2.msra.mxu0 0.0
    %1839 = vmatprep.subr.mxu0 0.0
    %1840 = vmatpush2.msra.mxu0 0.0
    %1841 = vmatprep.subr.mxu0 0.0
    %1842 = vmatpush2.msra.mxu0 0.0
    %1843 = vmatprep.subr.mxu0 0.0
    %1844 = vmatpush2.msra.mxu0 0.0
    %1845 = vmatprep.subr.mxu0 0.0
    %1846 = vmatpush2.msra.mxu0 0.0
    %1847 = vmatprep.subr.mxu0 0.0
    %1848 = vmatpush2.msra.mxu0 0.0
    %1849 = vmatprep.subr.mxu0 0.0
    %1850 = vmatpush2.msra.mxu0 0.0
    %1851 = vmatprep.subr.mxu0 0.0
    %1852 = vmatpush2.msra.mxu0 0.0
    %1853 = vmatprep.subr.mxu0 0.0
    %1854 = vmatpush2.msra.mxu0 0.0
    %1855 = vmatprep.subr.mxu0 0.0
    %1856 = vmatpush2.msra.mxu0 0.0
    %1857 = vmatprep.subr.mxu0 0.0
    %1858 = vmatpush2.msra.mxu0 0.0
    %1859 = vmatprep.mubr.f32.mxu0 0.0
    %1860 = vmatmul.mubr.f32.gmra.mxu0 %v1793
    %v1861 = vpop.f32.mrf.mxu0
    %v1862 = vadd.f32 0.0, %v1861
    %v1863 = vpop.f32.mrf.mxu0
    %1864 = vdwg.mxu0
    %v1865 = vadd.f32 %v1790, %v1862
    %v1866 = vxor.u32 %v1865, 2147483648
    %v1867 = vmul.f32 %v1866, 1.442695
    %v1868 = vpow.pop %v1867
    %v1869 = vadd.f32 %v1868, 1.0
    %v1870 = vrcp.pop %v1869
    %v1871 = vmul.f32 1.0, %v1870
    %v1872 = vtanh.pop %v1865
    %v1873 = vmul.f32 %v1871, %v1610
    %1875 = vrot.lane.b32.xlu0 %v1872, 64
    %v1876 = vpop.permute.xlu0 %1875
    %v1878 = vmul.f32 %v1871, %v1876
    %1880 = vrot.lane.b32.xlu0 %v1878, 32
    %v1881 = vpop.permute.xlu0 %1880
    %v1883 = vadd.f32 %v1873, %v1881
    %v1884 = vtanh.pop %v1883
    %1886 = vrot.lane.b32.xlu0 %v1884, 64
    %v1887 = vpop.permute.xlu0 %1886
    %v1889 = vmul.f32 %v1871, %v1887
    %1891 = vrot.lane.b32.xlu0 %v1889, 32
    %v1892 = vpop.permute.xlu0 %1891
    %1894 = vst.msk [vmem:[#allocation3 + $0x28] sm:$0xff] %vm125, %v1892
    %v1895 = vld [vmem:[#allocation2 + $0x38] sm:$0xff]
    %1897 = vrot.lane.b32.xlu0 %v1722, 32
    %v1898 = vpop.permute.xlu0 %1897
    %v1899 = vsel %vm125, %v1898, 0
    %1901 = vmatprep.subr.mxu0 0.0
    %1902 = vmatpush1.msra.mxu0 0.0
    %1903 = vmatprep.subr.mxu0 0.0
    %1904 = vmatpush1.msra.mxu0 0.0
    %1905 = vmatprep.subr.mxu0 0.0
    %1906 = vmatpush1.msra.mxu0 0.0
    %1907 = vmatprep.subr.mxu0 0.0
    %1908 = vmatpush1.msra.mxu0 0.0
    %1909 = vmatprep.subr.mxu0 0.0
    %1910 = vmatpush1.msra.mxu0 0.0
    %1911 = vmatprep.subr.mxu0 0.0
    %1912 = vmatpush1.msra.mxu0 0.0
    %1913 = vmatprep.subr.mxu0 0.0
    %1914 = vmatpush1.msra.mxu0 0.0
    %1915 = vmatprep.subr.mxu0 0.0
    %1916 = vmatpush1.msra.mxu0 0.0
    %1917 = vmatprep.subr.mxu0 0.0
    %1918 = vmatpush1.msra.mxu0 0.0
    %1919 = vmatprep.subr.mxu0 0.0
    %1920 = vmatpush1.msra.mxu0 0.0
    %1921 = vmatprep.subr.mxu0 0.0
    %1922 = vmatpush1.msra.mxu0 0.0
    %1923 = vmatprep.subr.mxu0 0.0
    %1924 = vmatpush1.msra.mxu0 0.0
    %1925 = vmatprep.subr.mxu0 0.0
    %1926 = vmatpush1.msra.mxu0 %v43
    %1927 = vmatprep.subr.mxu0 0.0
    %1928 = vmatpush1.msra.mxu0 %v42
    %1929 = vmatprep.subr.mxu0 0.0
    %1930 = vmatpush1.msra.mxu0 %v41
    %1931 = vmatprep.subr.mxu0 0.0
    %1932 = vmatpush1.msra.mxu0 %v40
    %1933 = vmatprep.subr.mxu0 0.0
    %1934 = vmatpush2.msra.mxu0 0.0
    %1935 = vmatprep.subr.mxu0 0.0
    %1936 = vmatpush2.msra.mxu0 0.0
    %1937 = vmatprep.subr.mxu0 0.0
    %1938 = vmatpush2.msra.mxu0 0.0
    %1939 = vmatprep.subr.mxu0 0.0
    %1940 = vmatpush2.msra.mxu0 0.0
    %1941 = vmatprep.subr.mxu0 0.0
    %1942 = vmatpush2.msra.mxu0 0.0
    %1943 = vmatprep.subr.mxu0 0.0
    %1944 = vmatpush2.msra.mxu0 0.0
    %1945 = vmatprep.subr.mxu0 0.0
    %1946 = vmatpush2.msra.mxu0 0.0
    %1947 = vmatprep.subr.mxu0 0.0
    %1948 = vmatpush2.msra.mxu0 0.0
    %1949 = vmatprep.subr.mxu0 0.0
    %1950 = vmatpush2.msra.mxu0 0.0
    %1951 = vmatprep.subr.mxu0 0.0
    %1952 = vmatpush2.msra.mxu0 0.0
    %1953 = vmatprep.subr.mxu0 0.0
    %1954 = vmatpush2.msra.mxu0 0.0
    %1955 = vmatprep.subr.mxu0 0.0
    %1956 = vmatpush2.msra.mxu0 0.0
    %1957 = vmatprep.subr.mxu0 0.0
    %1958 = vmatpush2.msra.mxu0 0.0
    %1959 = vmatprep.subr.mxu0 0.0
    %1960 = vmatpush2.msra.mxu0 0.0
    %1961 = vmatprep.subr.mxu0 0.0
    %1962 = vmatpush2.msra.mxu0 0.0
    %1963 = vmatprep.subr.mxu0 0.0
    %1964 = vmatpush2.msra.mxu0 0.0
    %1965 = vmatprep.mubr.f32.mxu0 0.0
    %1966 = vmatmul.mubr.f32.gmra.mxu0 %v1899
    %v1967 = vpop.f32.mrf.mxu0
    %v1968 = vadd.f32 0.0, %v1967
    %v1969 = vpop.f32.mrf.mxu0
    %1970 = vdwg.mxu0
    %v1971 = vadd.f32 %v1895, %v1968
    %v1972 = vxor.u32 %v1971, 2147483648
    %v1973 = vmul.f32 %v1972, 1.442695
    %v1974 = vpow.pop %v1973
    %v1975 = vadd.f32 %v1974, 1.0
    %v1976 = vrcp.pop %v1975
    %v1977 = vmul.f32 1.0, %v1976
    %v1978 = vtanh.pop %v1971
    %v1979 = vmul.f32 %v1977, %v1716
    %1981 = vrot.lane.b32.xlu0 %v1978, 64
    %v1982 = vpop.permute.xlu0 %1981
    %v1984 = vmul.f32 %v1977, %v1982
    %1986 = vrot.lane.b32.xlu0 %v1984, 32
    %v1987 = vpop.permute.xlu0 %1986
    %v1989 = vadd.f32 %v1979, %v1987
    %v1990 = vtanh.pop %v1989
    %1992 = vrot.lane.b32.xlu0 %v1990, 64
    %v1993 = vpop.permute.xlu0 %1992
    %v1995 = vmul.f32 %v1977, %v1993
    %1996 = vmatprep.subr.mxu0 0.0
    %1997 = vmatpush1.msra.mxu0 0.0
    %1998 = vmatprep.subr.mxu0 0.0
    %1999 = vmatpush1.msra.mxu0 0.0
    %2000 = vmatprep.subr.mxu0 0.0
    %2001 = vmatpush1.msra.mxu0 0.0
    %2002 = vmatprep.subr.mxu0 0.0
    %2003 = vmatpush1.msra.mxu0 0.0
    %2004 = vmatprep.subr.mxu0 0.0
    %2005 = vmatpush1.msra.mxu0 0.0
    %2006 = vmatprep.subr.mxu0 0.0
    %2007 = vmatpush1.msra.mxu0 0.0
    %2008 = vmatprep.subr.mxu0 0.0
    %2009 = vmatpush1.msra.mxu0 0.0
    %2010 = vmatprep.subr.mxu0 0.0
    %2011 = vmatpush1.msra.mxu0 0.0
    %2012 = vmatprep.subr.mxu0 0.0
    %2013 = vmatpush1.msra.mxu0 0.0
    %2014 = vmatprep.subr.mxu0 0.0
    %2015 = vmatpush1.msra.mxu0 0.0
    %2016 = vmatprep.subr.mxu0 0.0
    %2017 = vmatpush1.msra.mxu0 0.0
    %2018 = vmatprep.subr.mxu0 0.0
    %2019 = vmatpush1.msra.mxu0 0.0
    %2020 = vmatprep.subr.mxu0 0.0
    %2021 = vmatpush1.msra.mxu0 %v47
    %2022 = vmatprep.subr.mxu0 0.0
    %2023 = vmatpush1.msra.mxu0 %v46
    %2024 = vmatprep.subr.mxu0 0.0
    %2025 = vmatpush1.msra.mxu0 %v45
    %2026 = vmatprep.subr.mxu0 0.0
    %2027 = vmatpush1.msra.mxu0 %v44
    %2028 = vmatprep.subr.mxu0 0.0
    %2029 = vmatpush2.msra.mxu0 0.0
    %2030 = vmatprep.subr.mxu0 0.0
    %2031 = vmatpush2.msra.mxu0 0.0
    %2032 = vmatprep.subr.mxu0 0.0
    %2033 = vmatpush2.msra.mxu0 0.0
    %2034 = vmatprep.subr.mxu0 0.0
    %2035 = vmatpush2.msra.mxu0 0.0
    %2036 = vmatprep.subr.mxu0 0.0
    %2037 = vmatpush2.msra.mxu0 0.0
    %2038 = vmatprep.subr.mxu0 0.0
    %2039 = vmatpush2.msra.mxu0 0.0
    %2040 = vmatprep.subr.mxu0 0.0
    %2041 = vmatpush2.msra.mxu0 0.0
    %2042 = vmatprep.subr.mxu0 0.0
    %2043 = vmatpush2.msra.mxu0 0.0
    %2044 = vmatprep.subr.mxu0 0.0
    %2045 = vmatpush2.msra.mxu0 0.0
    %2046 = vmatprep.subr.mxu0 0.0
    %2047 = vmatpush2.msra.mxu0 0.0
    %2048 = vmatprep.subr.mxu0 0.0
    %2049 = vmatpush2.msra.mxu0 0.0
    %2050 = vmatprep.subr.mxu0 0.0
    %2051 = vmatpush2.msra.mxu0 0.0
    %2052 = vmatprep.subr.mxu0 0.0
    %2053 = vmatpush2.msra.mxu0 0.0
    %2054 = vmatprep.subr.mxu0 0.0
    %2055 = vmatpush2.msra.mxu0 0.0
    %2056 = vmatprep.subr.mxu0 0.0
    %2057 = vmatpush2.msra.mxu0 0.0
    %2058 = vmatprep.subr.mxu0 0.0
    %2059 = vmatpush2.msra.mxu0 0.0
    %2060 = vmatprep.mubr.f32.mxu0 0.0
    %2061 = vmatmul.mubr.f32.gmra.mxu0 %v1899
    %v2062 = vpop.f32.mrf.mxu0
    %v2063 = vadd.f32 %v352, %v2062
    %v2064 = vpop.f32.mrf.mxu0
    %2065 = vdwg.mxu0
    %v2066 = vsel %vm125, %v1892, 0
    %2068 = vmatprep.subr.mxu0 0.0
    %2069 = vmatpush1.msra.mxu0 0.0
    %2070 = vmatprep.subr.mxu0 0.0
    %2071 = vmatpush1.msra.mxu0 0.0
    %2072 = vmatprep.subr.mxu0 0.0
    %2073 = vmatpush1.msra.mxu0 0.0
    %2074 = vmatprep.subr.mxu0 0.0
    %2075 = vmatpush1.msra.mxu0 0.0
    %2076 = vmatprep.subr.mxu0 0.0
    %2077 = vmatpush1.msra.mxu0 0.0
    %2078 = vmatprep.subr.mxu0 0.0
    %2079 = vmatpush1.msra.mxu0 0.0
    %2080 = vmatprep.subr.mxu0 0.0
    %2081 = vmatpush1.msra.mxu0 0.0
    %2082 = vmatprep.subr.mxu0 0.0
    %2083 = vmatpush1.msra.mxu0 0.0
    %2084 = vmatprep.subr.mxu0 0.0
    %2085 = vmatpush1.msra.mxu0 0.0
    %2086 = vmatprep.subr.mxu0 0.0
    %2087 = vmatpush1.msra.mxu0 0.0
    %2088 = vmatprep.subr.mxu0 0.0
    %2089 = vmatpush1.msra.mxu0 0.0
    %2090 = vmatprep.subr.mxu0 0.0
    %2091 = vmatpush1.msra.mxu0 0.0
    %2092 = vmatprep.subr.mxu0 0.0
    %2093 = vmatpush1.msra.mxu0 %v51
    %2094 = vmatprep.subr.mxu0 0.0
    %2095 = vmatpush1.msra.mxu0 %v50
    %2096 = vmatprep.subr.mxu0 0.0
    %2097 = vmatpush1.msra.mxu0 %v49
    %2098 = vmatprep.subr.mxu0 0.0
    %2099 = vmatpush1.msra.mxu0 %v48
    %2100 = vmatprep.subr.mxu0 0.0
    %2101 = vmatpush2.msra.mxu0 0.0
    %2102 = vmatprep.subr.mxu0 0.0
    %2103 = vmatpush2.msra.mxu0 0.0
    %2104 = vmatprep.subr.mxu0 0.0
    %2105 = vmatpush2.msra.mxu0 0.0
    %2106 = vmatprep.subr.mxu0 0.0
    %2107 = vmatpush2.msra.mxu0 0.0
    %2108 = vmatprep.subr.mxu0 0.0
    %2109 = vmatpush2.msra.mxu0 0.0
    %2110 = vmatprep.subr.mxu0 0.0
    %2111 = vmatpush2.msra.mxu0 0.0
    %2112 = vmatprep.subr.mxu0 0.0
    %2113 = vmatpush2.msra.mxu0 0.0
    %2114 = vmatprep.subr.mxu0 0.0
    %2115 = vmatpush2.msra.mxu0 0.0
    %2116 = vmatprep.subr.mxu0 0.0
    %2117 = vmatpush2.msra.mxu0 0.0
    %2118 = vmatprep.subr.mxu0 0.0
    %2119 = vmatpush2.msra.mxu0 0.0
    %2120 = vmatprep.subr.mxu0 0.0
    %2121 = vmatpush2.msra.mxu0 0.0
    %2122 = vmatprep.subr.mxu0 0.0
    %2123 = vmatpush2.msra.mxu0 0.0
    %2124 = vmatprep.subr.mxu0 0.0
    %2125 = vmatpush2.msra.mxu0 0.0
    %2126 = vmatprep.subr.mxu0 0.0
    %2127 = vmatpush2.msra.mxu0 0.0
    %2128 = vmatprep.subr.mxu0 0.0
    %2129 = vmatpush2.msra.mxu0 0.0
    %2130 = vmatprep.subr.mxu0 0.0
    %2131 = vmatpush2.msra.mxu0 0.0
    %2132 = vmatprep.mubr.f32.mxu0 0.0
    %2133 = vmatmul.mubr.f32.gmra.mxu0 %v2066
    %v2134 = vpop.f32.mrf.mxu0
    %v2135 = vadd.f32 0.0, %v2134
    %v2136 = vpop.f32.mrf.mxu0
    %2137 = vdwg.mxu0
    %v2138 = vadd.f32 %v2063, %v2135
    %v2139 = vxor.u32 %v2138, 2147483648
    %v2140 = vmul.f32 %v2139, 1.442695
    %v2141 = vpow.pop %v2140
    %v2142 = vadd.f32 %v2141, 1.0
    %v2143 = vrcp.pop %v2142
    %v2144 = vmul.f32 1.0, %v2143
    %v2145 = vtanh.pop %v2138
    %v2146 = vmul.f32 %v2144, %v1883
    %2148 = vrot.lane.b32.xlu0 %v2145, 64
    %v2149 = vpop.permute.xlu0 %2148
    %v2151 = vmul.f32 %v2144, %v2149
    %2153 = vrot.lane.b32.xlu0 %v2151, 32
    %v2154 = vpop.permute.xlu0 %2153
    %v2156 = vadd.f32 %v2146, %v2154
    %v2157 = vtanh.pop %v2156
    %2159 = vrot.lane.b32.xlu0 %v2157, 64
    %v2160 = vpop.permute.xlu0 %2159
    %v2162 = vmul.f32 %v2144, %v2160
    %2164 = vrot.lane.b32.xlu0 %v2162, 32
    %v2165 = vpop.permute.xlu0 %2164
    %2167 = vst.msk [vmem:[#allocation3 + $0x30] sm:$0xff] %vm125, %v2165
    %2169 = vrot.lane.b32.xlu0 %v1995, 32
    %v2170 = vpop.permute.xlu0 %2169
    %v2171 = vsel %vm125, %v2170, 0
    %2173 = vmatprep.subr.mxu0 0.0
    %2174 = vmatpush1.msra.mxu0 0.0
    %2175 = vmatprep.subr.mxu0 0.0
    %2176 = vmatpush1.msra.mxu0 0.0
    %2177 = vmatprep.subr.mxu0 0.0
    %2178 = vmatpush1.msra.mxu0 0.0
    %2179 = vmatprep.subr.mxu0 0.0
    %2180 = vmatpush1.msra.mxu0 0.0
    %2181 = vmatprep.subr.mxu0 0.0
    %2182 = vmatpush1.msra.mxu0 0.0
    %2183 = vmatprep.subr.mxu0 0.0
    %2184 = vmatpush1.msra.mxu0 0.0
    %2185 = vmatprep.subr.mxu0 0.0
    %2186 = vmatpush1.msra.mxu0 0.0
    %2187 = vmatprep.subr.mxu0 0.0
    %2188 = vmatpush1.msra.mxu0 0.0
    %2189 = vmatprep.subr.mxu0 0.0
    %2190 = vmatpush1.msra.mxu0 0.0
    %2191 = vmatprep.subr.mxu0 0.0
    %2192 = vmatpush1.msra.mxu0 0.0
    %2193 = vmatprep.subr.mxu0 0.0
    %2194 = vmatpush1.msra.mxu0 0.0
    %2195 = vmatprep.subr.mxu0 0.0
    %2196 = vmatpush1.msra.mxu0 0.0
    %2197 = vmatprep.subr.mxu0 0.0
    %2198 = vmatpush1.msra.mxu0 %v47
    %2199 = vmatprep.subr.mxu0 0.0
    %2200 = vmatpush1.msra.mxu0 %v46
    %2201 = vmatprep.subr.mxu0 0.0
    %2202 = vmatpush1.msra.mxu0 %v45
    %2203 = vmatprep.subr.mxu0 0.0
    %2204 = vmatpush1.msra.mxu0 %v44
    %2205 = vmatprep.subr.mxu0 0.0
    %2206 = vmatpush2.msra.mxu0 0.0
    %2207 = vmatprep.subr.mxu0 0.0
    %2208 = vmatpush2.msra.mxu0 0.0
    %2209 = vmatprep.subr.mxu0 0.0
    %2210 = vmatpush2.msra.mxu0 0.0
    %2211 = vmatprep.subr.mxu0 0.0
    %2212 = vmatpush2.msra.mxu0 0.0
    %2213 = vmatprep.subr.mxu0 0.0
    %2214 = vmatpush2.msra.mxu0 0.0
    %2215 = vmatprep.subr.mxu0 0.0
    %2216 = vmatpush2.msra.mxu0 0.0
    %2217 = vmatprep.subr.mxu0 0.0
    %2218 = vmatpush2.msra.mxu0 0.0
    %2219 = vmatprep.subr.mxu0 0.0
    %2220 = vmatpush2.msra.mxu0 0.0
    %2221 = vmatprep.subr.mxu0 0.0
    %2222 = vmatpush2.msra.mxu0 0.0
    %2223 = vmatprep.subr.mxu0 0.0
    %2224 = vmatpush2.msra.mxu0 0.0
    %2225 = vmatprep.subr.mxu0 0.0
    %2226 = vmatpush2.msra.mxu0 0.0
    %2227 = vmatprep.subr.mxu0 0.0
    %2228 = vmatpush2.msra.mxu0 0.0
    %2229 = vmatprep.subr.mxu0 0.0
    %2230 = vmatpush2.msra.mxu0 0.0
    %2231 = vmatprep.subr.mxu0 0.0
    %2232 = vmatpush2.msra.mxu0 0.0
    %2233 = vmatprep.subr.mxu0 0.0
    %2234 = vmatpush2.msra.mxu0 0.0
    %2235 = vmatprep.subr.mxu0 0.0
    %2236 = vmatpush2.msra.mxu0 0.0
    %2237 = vmatprep.mubr.f32.mxu0 0.0
    %2238 = vmatmul.mubr.f32.gmra.mxu0 %v2171
    %v2239 = vpop.f32.mrf.mxu0
    %v2240 = vadd.f32 %v352, %v2239
    %v2241 = vpop.f32.mrf.mxu0
    %2242 = vdwg.mxu0
    %v2243 = vsel %vm125, %v2165, 0
    %2245 = vmatprep.subr.mxu0 0.0
    %2246 = vmatpush1.msra.mxu0 0.0
    %2247 = vmatprep.subr.mxu0 0.0
    %2248 = vmatpush1.msra.mxu0 0.0
    %2249 = vmatprep.subr.mxu0 0.0
    %2250 = vmatpush1.msra.mxu0 0.0
    %2251 = vmatprep.subr.mxu0 0.0
    %2252 = vmatpush1.msra.mxu0 0.0
    %2253 = vmatprep.subr.mxu0 0.0
    %2254 = vmatpush1.msra.mxu0 0.0
    %2255 = vmatprep.subr.mxu0 0.0
    %2256 = vmatpush1.msra.mxu0 0.0
    %2257 = vmatprep.subr.mxu0 0.0
    %2258 = vmatpush1.msra.mxu0 0.0
    %2259 = vmatprep.subr.mxu0 0.0
    %2260 = vmatpush1.msra.mxu0 0.0
    %2261 = vmatprep.subr.mxu0 0.0
    %2262 = vmatpush1.msra.mxu0 0.0
    %2263 = vmatprep.subr.mxu0 0.0
    %2264 = vmatpush1.msra.mxu0 0.0
    %2265 = vmatprep.subr.mxu0 0.0
    %2266 = vmatpush1.msra.mxu0 0.0
    %2267 = vmatprep.subr.mxu0 0.0
    %2268 = vmatpush1.msra.mxu0 0.0
    %2269 = vmatprep.subr.mxu0 0.0
    %2270 = vmatpush1.msra.mxu0 %v51
    %2271 = vmatprep.subr.mxu0 0.0
    %2272 = vmatpush1.msra.mxu0 %v50
    %2273 = vmatprep.subr.mxu0 0.0
    %2274 = vmatpush1.msra.mxu0 %v49
    %2275 = vmatprep.subr.mxu0 0.0
    %2276 = vmatpush1.msra.mxu0 %v48
    %2277 = vmatprep.subr.mxu0 0.0
    %2278 = vmatpush2.msra.mxu0 0.0
    %2279 = vmatprep.subr.mxu0 0.0
    %2280 = vmatpush2.msra.mxu0 0.0
    %2281 = vmatprep.subr.mxu0 0.0
    %2282 = vmatpush2.msra.mxu0 0.0
    %2283 = vmatprep.subr.mxu0 0.0
    %2284 = vmatpush2.msra.mxu0 0.0
    %2285 = vmatprep.subr.mxu0 0.0
    %2286 = vmatpush2.msra.mxu0 0.0
    %2287 = vmatprep.subr.mxu0 0.0
    %2288 = vmatpush2.msra.mxu0 0.0
    %2289 = vmatprep.subr.mxu0 0.0
    %2290 = vmatpush2.msra.mxu0 0.0
    %2291 = vmatprep.subr.mxu0 0.0
    %2292 = vmatpush2.msra.mxu0 0.0
    %2293 = vmatprep.subr.mxu0 0.0
    %2294 = vmatpush2.msra.mxu0 0.0
    %2295 = vmatprep.subr.mxu0 0.0
    %2296 = vmatpush2.msra.mxu0 0.0
    %2297 = vmatprep.subr.mxu0 0.0
    %2298 = vmatpush2.msra.mxu0 0.0
    %2299 = vmatprep.subr.mxu0 0.0
    %2300 = vmatpush2.msra.mxu0 0.0
    %2301 = vmatprep.subr.mxu0 0.0
    %2302 = vmatpush2.msra.mxu0 0.0
    %2303 = vmatprep.subr.mxu0 0.0
    %2304 = vmatpush2.msra.mxu0 0.0
    %2305 = vmatprep.subr.mxu0 0.0
    %2306 = vmatpush2.msra.mxu0 0.0
    %2307 = vmatprep.subr.mxu0 0.0
    %2308 = vmatpush2.msra.mxu0 0.0
    %2309 = vmatprep.mubr.f32.mxu0 0.0
    %2310 = vmatmul.mubr.f32.gmra.mxu0 %v2243
    %v2311 = vpop.f32.mrf.mxu0
    %v2312 = vadd.f32 0.0, %v2311
    %v2313 = vpop.f32.mrf.mxu0
    %2314 = vdwg.mxu0
    %v2315 = vadd.f32 %v2240, %v2312
    %v2316 = vxor.u32 %v2315, 2147483648
    %v2317 = vmul.f32 %v2316, 1.442695
    %v2318 = vpow.pop %v2317
    %v2319 = vadd.f32 %v2318, 1.0
    %v2320 = vrcp.pop %v2319
    %v2321 = vmul.f32 1.0, %v2320
    %v2322 = vtanh.pop %v2315
    %v2323 = vmul.f32 %v2321, %v2156
    %2325 = vrot.lane.b32.xlu0 %v2322, 64
    %v2326 = vpop.permute.xlu0 %2325
    %v2328 = vmul.f32 %v2321, %v2326
    %2330 = vrot.lane.b32.xlu0 %v2328, 32
    %v2331 = vpop.permute.xlu0 %2330
    %v2333 = vadd.f32 %v2323, %v2331
    %v2334 = vtanh.pop %v2333
    %2336 = vrot.lane.b32.xlu0 %v2334, 64
    %v2337 = vpop.permute.xlu0 %2336
    %v2339 = vmul.f32 %v2321, %v2337
    %2341 = vrot.lane.b32.xlu0 %v2339, 32
    %v2342 = vpop.permute.xlu0 %2341
    %2344 = vst.msk [vmem:[#allocation3 + $0x38] sm:$0xff] %vm125, %v2342
    %2346 = vst.msk [vmem:[#allocation11] sm:$0x3] %vm131, %v2170
    %2348 = vrot.lane.b32.xlu0 %v1989, 96
    %v2349 = vpop.permute.xlu0 %2348
    %2351 = vst.msk [vmem:[#allocation12] sm:$0x3] %vm131, %v2349
    %s2352 = scalar_lea.vmem [#allocation11], 2
    %2353 = vst.msk [vmem:[%s2352] sm:$0x3] %vm131, %v2342
    %2355 = vrot.lane.b32.xlu0 %v2333, 96
    %v2356 = vpop.permute.xlu0 %2355
    %s2358 = scalar_lea.vmem [#allocation12], 2
    %2359 = vst.msk [vmem:[%s2358] sm:$0x3] %vm131, %v2356
    %v2360 = vld [vmem:[#allocation8 + $0xa8] sm:$0xff]
    %v2361 = vld [vmem:[#allocation8 + $0xb0] sm:$0xff]
    %v2362 = vld [vmem:[#allocation8 + $0xb8] sm:$0xff]
    %v2363 = vld [vmem:[#allocation8 + $0xc0] sm:$0xff]
    %v2364 = vld [vmem:[#allocation8 + $0xc8] sm:$0x1]
    %v2365 = vld [vmem:[#allocation3] sm:$0xff]
    %v2366 = vld [vmem:[#allocation3 + $0x8] sm:$0xff]
    %v2367 = vld [vmem:[#allocation3 + $0x10] sm:$0xff]
    %v2368 = vld [vmem:[#allocation3 + $0x18] sm:$0xff]
    %v2369 = vld [vmem:[#allocation3 + $0x20] sm:$0xff]
    %v2370 = vld [vmem:[#allocation3 + $0x28] sm:$0xff]
    %v2371 = vld [vmem:[#allocation3 + $0x30] sm:$0xff]
    %v2372 = vld [vmem:[#allocation3 + $0x38] sm:$0xff]
    %v2373 = vlaneseq
    %v2374 = vshrl.u32 %v2373, 7
    %v2375 = vsub.s32 0, %v2374
    %v2376 = vrot.slane %v2364, %v2375
    %v2378 = vsel %vm125, %v2365, 0
    %v2381 = vsel %vm125, %v2366, 0
    %v2384 = vsel %vm125, %v2367, 0
    %v2387 = vsel %vm125, %v2368, 0
    %v2390 = vsel %vm125, %v2369, 0
    %v2393 = vsel %vm125, %v2370, 0
    %v2396 = vsel %vm125, %v2371, 0
    %v2399 = vsel %vm125, %v2372, 0
    %2401 = vmatprep.subr.mxu0 0.0
    %2402 = vmatpush1.msra.mxu0 0.0
    %2403 = vmatprep.subr.mxu0 0.0
    %2404 = vmatpush1.msra.mxu0 0.0
    %2405 = vmatprep.subr.mxu0 0.0
    %2406 = vmatpush1.msra.mxu0 0.0
    %2407 = vmatprep.subr.mxu0 0.0
    %2408 = vmatpush1.msra.mxu0 0.0
    %2409 = vmatprep.subr.mxu0 0.0
    %2410 = vmatpush1.msra.mxu0 0.0
    %2411 = vmatprep.subr.mxu0 0.0
    %2412 = vmatpush1.msra.mxu0 0.0
    %2413 = vmatprep.subr.mxu0 0.0
    %2414 = vmatpush1.msra.mxu0 0.0
    %2415 = vmatprep.subr.mxu0 0.0
    %2416 = vmatpush1.msra.mxu0 0.0
    %2417 = vmatprep.subr.mxu0 0.0
    %2418 = vmatpush1.msra.mxu0 0.0
    %2419 = vmatprep.subr.mxu0 0.0
    %2420 = vmatpush1.msra.mxu0 0.0
    %2421 = vmatprep.subr.mxu0 0.0
    %2422 = vmatpush1.msra.mxu0 0.0
    %2423 = vmatprep.subr.mxu0 0.0
    %2424 = vmatpush1.msra.mxu0 0.0
    %2425 = vmatprep.subr.mxu0 0.0
    %2426 = vmatpush1.msra.mxu0 %v2363
    %2427 = vmatprep.subr.mxu0 0.0
    %2428 = vmatpush1.msra.mxu0 %v2362
    %2429 = vmatprep.subr.mxu0 0.0
    %2430 = vmatpush1.msra.mxu0 %v2361
    %2431 = vmatprep.subr.mxu0 0.0
    %2432 = vmatpush1.msra.mxu0 %v2360
    %2433 = vmatprep.subr.mxu0 0.0
    %2434 = vmatpush2.msra.mxu0 0.0
    %2435 = vmatprep.subr.mxu0 0.0
    %2436 = vmatpush2.msra.mxu0 0.0
    %2437 = vmatprep.subr.mxu0 0.0
    %2438 = vmatpush2.msra.mxu0 0.0
    %2439 = vmatprep.subr.mxu0 0.0
    %2440 = vmatpush2.msra.mxu0 0.0
    %2441 = vmatprep.subr.mxu0 0.0
    %2442 = vmatpush2.msra.mxu0 0.0
    %2443 = vmatprep.subr.mxu0 0.0
    %2444 = vmatpush2.msra.mxu0 0.0
    %2445 = vmatprep.subr.mxu0 0.0
    %2446 = vmatpush2.msra.mxu0 0.0
    %2447 = vmatprep.subr.mxu0 0.0
    %2448 = vmatpush2.msra.mxu0 0.0
    %2449 = vmatprep.subr.mxu0 0.0
    %2450 = vmatpush2.msra.mxu0 0.0
    %2451 = vmatprep.subr.mxu0 0.0
    %2452 = vmatpush2.msra.mxu0 0.0
    %2453 = vmatprep.subr.mxu0 0.0
    %2454 = vmatpush2.msra.mxu0 0.0
    %2455 = vmatprep.subr.mxu0 0.0
    %2456 = vmatpush2.msra.mxu0 0.0
    %2457 = vmatprep.subr.mxu0 0.0
    %2458 = vmatpush2.msra.mxu0 0.0
    %2459 = vmatprep.subr.mxu0 0.0
    %2460 = vmatpush2.msra.mxu0 0.0
    %2461 = vmatprep.subr.mxu0 0.0
    %2462 = vmatpush2.msra.mxu0 0.0
    %2463 = vmatprep.subr.mxu0 0.0
    %2464 = vmatpush2.msra.mxu0 0.0
    %2465 = vmatprep.mubr.f32.mxu0 0.0
    %2466 = vmatmul.mubr.f32.gmra.mxu0 %v2378
    %v2467 = vpop.f32.mrf.mxu0
    %v2468 = vadd.f32 %v2376, %v2467
    %v2469 = vpop.f32.mrf.mxu0
    %2470 = vmatprep.mubr.f32.mxu0 0.0
    %2471 = vmatmul.mubr.f32.gmra.mxu0 %v2381
    %v2472 = vpop.f32.mrf.mxu0
    %v2473 = vadd.f32 %v2376, %v2472
    %v2474 = vpop.f32.mrf.mxu0
    %2475 = vmatprep.mubr.f32.mxu0 0.0
    %2476 = vmatmul.mubr.f32.gmra.mxu0 %v2384
    %v2477 = vpop.f32.mrf.mxu0
    %v2478 = vadd.f32 %v2376, %v2477
    %v2479 = vpop.f32.mrf.mxu0
    %2480 = vmatprep.mubr.f32.mxu0 0.0
    %2481 = vmatmul.mubr.f32.gmra.mxu0 %v2387
    %v2482 = vpop.f32.mrf.mxu0
    %v2483 = vadd.f32 %v2376, %v2482
    %v2484 = vpop.f32.mrf.mxu0
    %2485 = vmatprep.mubr.f32.mxu0 0.0
    %2486 = vmatmul.mubr.f32.gmra.mxu0 %v2390
    %v2487 = vpop.f32.mrf.mxu0
    %v2488 = vadd.f32 %v2376, %v2487
    %v2489 = vpop.f32.mrf.mxu0
    %2490 = vmatprep.mubr.f32.mxu0 0.0
    %2491 = vmatmul.mubr.f32.gmra.mxu0 %v2393
    %v2492 = vpop.f32.mrf.mxu0
    %v2493 = vadd.f32 %v2376, %v2492
    %v2494 = vpop.f32.mrf.mxu0
    %2495 = vmatprep.mubr.f32.mxu0 0.0
    %2496 = vmatmul.mubr.f32.gmra.mxu0 %v2396
    %v2497 = vpop.f32.mrf.mxu0
    %v2498 = vadd.f32 %v2376, %v2497
    %v2499 = vpop.f32.mrf.mxu0
    %2500 = vmatprep.mubr.f32.mxu0 0.0
    %2501 = vmatmul.mubr.f32.gmra.mxu0 %v2399
    %v2502 = vpop.f32.mrf.mxu0
    %v2503 = vadd.f32 %v2376, %v2502
    %v2504 = vpop.f32.mrf.mxu0
    %2505 = vdwg.mxu0
    %2506 = vst [vmem:[%s4] sm:$0xff] %v2468
    %2507 = vst [vmem:[%s4 + $0x8] sm:$0xff] %v2473
    %2508 = vst [vmem:[%s4 + $0x10] sm:$0xff] %v2478
    %2509 = vst [vmem:[%s4 + $0x18] sm:$0xff] %v2483
    %2510 = vst [vmem:[%s4 + $0x20] sm:$0xff] %v2488
    %2511 = vst [vmem:[%s4 + $0x28] sm:$0xff] %v2493
    %2512 = vst [vmem:[%s4 + $0x30] sm:$0xff] %v2498
    %2513 = vst [vmem:[%s4 + $0x38] sm:$0xff] %v2503
    // Predicated region
    $region18: #{lstm_lm_forward.1} parent=1 // pred_check
      _
    $region19: #{lstm_lm_forward.1} parent=1 // pred_check_branch
      %2515 = sbr.rel (0) target = $region21
    $region20: #{lstm_lm_forward.1} parent=1 // pred_region
      _
    $region21: #{lstm_lm_forward.1} parent=1 // pred_fallthru
      _
    // Predicated region
    $region22: #{lstm_lm_forward.1} parent=1 // pred_check
      _
    $region23: #{lstm_lm_forward.1} parent=1 // pred_check_branch
      %2517 = sbr.rel (0) target = $region25
    $region24: #{lstm_lm_forward.1} parent=1 // pred_region
      %s2519 = ssub.s32 64, 64
      %2520 = vsyncadd [#allocation10], %s2519
      %s2521 = sshll.u32 [#allocation11], 4
      %s2522 = int_to_ptr.vmem [resolvable:$true] %s2521
      %2527 = dma.vmem_to_hbm [thread:$0]  %s2522, 64, %s5, [#allocation10], 32, 32, 2
    $region25: #{lstm_lm_forward.1} parent=1 // pred_fallthru
      _
    // Predicated region
    $region26: #{lstm_lm_forward.1} parent=1 // pred_check
      _
    $region27: #{lstm_lm_forward.1} parent=1 // pred_check_branch
      %2529 = sbr.rel (0) target = $region29
    $region28: #{lstm_lm_forward.1} parent=1 // pred_region
      %s2531 = ssub.s32 64, 64
      %2532 = vsyncadd [#allocation13], %s2531
      %s2533 = sshll.u32 [#allocation12], 4
      %s2534 = int_to_ptr.vmem [resolvable:$true] %s2533
      %2539 = dma.vmem_to_hbm [thread:$0]  %s2534, 64, %s6, [#allocation13], 32, 32, 2
    $region29: #{lstm_lm_forward.1} parent=1 // pred_fallthru
      _
    // Predicated region
    $region30: #{lstm_lm_forward.1} parent=1 // pred_check
      _
    $region31: #{lstm_lm_forward.1} parent=1 // pred_check_branch
      %2541 = sbr.rel (0) target = $region33
    $region32: #{lstm_lm_forward.1} parent=1 // pred_region
      _
    $region33: #{lstm_lm_forward.1} parent=1 // pred_fallthru
      _
    // Predicated region
    $region34: #{lstm_lm_forward.1} parent=1 // pred_check
      _
    $region35: #{lstm_lm_forward.1} parent=1 // pred_check_branch
      %2543 = sbr.rel (0) target = $region37
    $region36: #{lstm_lm_forward.1} parent=1 // pred_region
      %2544 = dma.done [#allocation10], 64
    $region37: #{lstm_lm_forward.1} parent=1 // pred_fallthru
      _
    // Predicated region
    $region38: #{lstm_lm_forward.1} parent=1 // pred_check
      _
    $region39: #{lstm_lm_forward.1} parent=1 // pred_check_branch
      %2546 = sbr.rel (0) target = $region41
    $region40: #{lstm_lm_forward.1} parent=1 // pred_region
      %2547 = dma.done [#allocation13], 64
    $region41: #{lstm_lm_forward.1} parent=1 // pred_fallthru
      _
    %2548 = vsyncpa [#allocation9], 1
    %2549 = vsyncpa [#allocation10], 1
    %2550 = vsyncpa [#allocation13], 1

</llo_original>
